<compile_context>
chip_gen: v6e
topology: v6e:2x2x1
jax: 0.10.0
libtpu: 0.0.40
codegen_flags: <defaults>
</compile_context>

<pallas_src>
import jax
import jax.numpy as jnp
from jax.experimental import pallas as pl
from jax.experimental.pallas import tpu as pltpu


def _round_up(x, m):
    return (x + m - 1) // m * m


def _make_kernel(H, W, B, Cin8, Cmid, Ccat8, Cout, margin):
    f32 = jnp.float32
    bf16 = jnp.bfloat16
    Hp, Wp = H + 4, W + 4
    L = Hp * Wp
    BL = B * L

    def im2col(slab, ksize, pad):
        # slab: (C, margin + BL + margin) f32 value living on the padded flat grid.
        # A conv tap (ky, kx) is a constant shift of (ky-pad)*Wp + (kx-pad) in the
        # flat index; stack all taps along the contraction (sublane) axis.
        cols = []
        for ky in range(ksize):
            for kx in range(ksize):
                off = margin + (ky - pad) * Wp + (kx - pad)
                cols.append(slab[:, off:off + BL])
        return jnp.concatenate(cols, axis=0).astype(bf16)     # (k*k*C, BL)

    def kernel(x_ref, w1_ref, b1_ref, w2_ref, b2_ref, w3_ref, b3_ref,
               mask_ref, pre_ref, o_ref):
        xs = x_ref[0]                      # (Cin8, margin + BL + margin) f32
        a1 = pre_ref[0, 0]                 # PReLU #1 slope (SMEM scalar)
        a2 = pre_ref[0, 1]                 # PReLU #2 slope (SMEM scalar)
        mask = mask_ref[...]               # (1, BL) f32, 1 on the HxW interior, 0 on the ring

        # ---- conv1: 5x5, pad 2 -- single MXU matmul, taps packed into K
        rhs1 = im2col(xs, 5, 2)                                          # (25*Cin8, BL) bf16
        z1 = jnp.dot(w1_ref[...], rhs1, preferred_element_type=f32) + b1_ref[...]
        y1 = jnp.where(z1 >= 0.0, z1, a1 * z1) * mask                    # PReLU1 + zero the border ring

        zpad1 = jnp.zeros((Cmid, margin), f32)
        s1 = jnp.concatenate([zpad1, y1, zpad1], axis=1)                 # lane-aligned margins

        # ---- conv2: 3x3, pad 1
        rhs2 = im2col(s1, 3, 1)                                          # (9*Cmid, BL) bf16
        z2 = jnp.dot(w2_ref[...], rhs2, preferred_element_type=f32) + b2_ref[...]

        # ---- concat([conv2(x), x1]) along channels (sublanes), then PReLU2 + mask
        x1v = xs[:, margin:margin + BL]                                  # (Cin8, BL) original padded input
        cat = jnp.concatenate([z2, x1v], axis=0)                         # (Ccat8, BL)
        y2 = jnp.where(cat >= 0.0, cat, a2 * cat) * mask

        zpad2 = jnp.zeros((Ccat8, margin), f32)
        s2 = jnp.concatenate([zpad2, y2, zpad2], axis=1)

        # ---- conv3: 3x3, pad 1
        rhs3 = im2col(s2, 3, 1)                                          # (9*Ccat8, BL) bf16
        z3 = jnp.dot(w3_ref[...], rhs3, preferred_element_type=f32) + b3_ref[...]

        # lane-dense store; border/ring positions are cropped away in the wrapper
        o_ref[0] = z3[:Cout].astype(o_ref.dtype)                         # (Cout, BL)

    return kernel


def error_attention_forward(x_nchw, params, block_imgs=None):
    """Pallas forward.  x_nchw: (N, Cin, H, W) float32.  Returns (N, Cout, H, W)."""
    f32 = jnp.float32
    bf16 = jnp.bfloat16

    w1, b1 = params["w1"], params["b1"]          # (32, Cin, 5, 5), (32,)
    w2, b2 = params["w2"], params["b2"]          # (32, 32, 3, 3), (32,)
    w3, b3 = params["w3"], params["b3"]          # (Cout, 38, 3, 3), (Cout,)
    p1, p2 = params["p1"], params["p2"]          # (1,), (1,)

    N, Cin, H, W = x_nchw.shape
    Cmid = w1.shape[0]
    Cout = w3.shape[0]
    assert w3.shape[1] == Cmid + Cin, "conv3 expects concat(conv2_out, x1) channels"

    Hp, Wp = H + 4, W + 4                        # one shared 2-pixel padded grid
    L = Hp * Wp
    Cin8 = _round_up(Cin, 8)
    Ccat8 = Cmid + Cin8
    Cout_p = _round_up(Cout, 8)

    # several images per grid step (amortizes per-step overhead, grows the matmul N dim)
    if block_imgs is None:
        block_imgs = 1
        for b in (8, 4, 2, 1):
            if N % b == 0:
                block_imgs = b
                break
    B = block_imgs
    G = N // B
    BL = B * L
    margin = max(128, _round_up(2 * Wp + 2, 128))   # 128-aligned zero margin at slab ends
    Mtot = BL + 2 * margin

    # ---- input: NCHW (no layout transpose needed), pad channels to 8, pad spatially
    # by 2, flatten the padded grid onto lanes, concat B images per step, add margins.
    xp = jnp.pad(x_nchw.astype(f32),
                 ((0, 0), (0, Cin8 - Cin), (2, 2), (2, 2)))              # (N, Cin8, Hp, Wp)
    xf = xp.reshape(N, Cin8, L)
    xg = xf.reshape(G, B, Cin8, L).transpose(0, 2, 1, 3).reshape(G, Cin8, BL)
    xg = jnp.pad(xg, ((0, 0), (0, 0), (margin, margin)))                 # (G, Cin8, Mtot)

    # ---- weights: pack (ky, kx, cin) into the contraction dim; bf16 for native MXU rate
    def pack_w(w, cpad):
        co, ci, kh, kw = w.shape
        wz = jnp.pad(w, ((0, 0), (0, cpad - ci), (0, 0), (0, 0)))
        return jnp.transpose(wz, (0, 2, 3, 1)).reshape(co, kh * kw * cpad).astype(bf16)

    w1p = pack_w(w1, Cin8)                                               # (32, 25*Cin8)
    w2p = pack_w(w2, Cmid)                                               # (32, 9*Cmid)
    w3o = jnp.pad(w3, ((0, Cout_p - Cout), (0, 0), (0, 0), (0, 0)))
    w3p = pack_w(w3o, Ccat8)                                             # (Cout_p, 9*Ccat8)
    b1c = b1.reshape(Cmid, 1).astype(f32)
    b2c = b2.reshape(Cmid, 1).astype(f32)
    b3c = jnp.pad(b3, (0, Cout_p - Cout)).reshape(Cout_p, 1).astype(f32)
    pre = jnp.stack([p1.reshape(()), p2.reshape(())]).reshape(1, 2).astype(f32)

    # ---- interior mask on the padded grid (1 on HxW interior, 0 on the 2-pixel ring)
    yy = jax.lax.broadcasted_iota(jnp.int32, (Hp, Wp), 0)
    xx = jax.lax.broadcasted_iota(jnp.int32, (Hp, Wp), 1)
    m = ((yy >= 2) & (yy < H + 2) & (xx >= 2) & (xx < W + 2)).astype(f32)
    mask = jnp.tile(m.reshape(1, L), (1, B))                             # (1, BL)

    kernel = _make_kernel(H, W, B, Cin8, Cmid, Ccat8, Cout, margin)

    out = pl.pallas_call(
        kernel,
        out_shape=jax.ShapeDtypeStruct((G, Cout, BL), f32),
        grid=(G,),
        in_specs=[
            pl.BlockSpec((1, Cin8, Mtot), lambda g: (g, 0, 0)),
            pl.BlockSpec(w1p.shape, lambda g: (0, 0)),
            pl.BlockSpec(b1c.shape, lambda g: (0, 0)),
            pl.BlockSpec(w2p.shape, lambda g: (0, 0)),
            pl.BlockSpec(b2c.shape, lambda g: (0, 0)),
            pl.BlockSpec(w3p.shape, lambda g: (0, 0)),
            pl.BlockSpec(b3c.shape, lambda g: (0, 0)),
            pl.BlockSpec(mask.shape, lambda g: (0, 0)),
            pl.BlockSpec((1, 2), lambda g: (0, 0),
                         memory_space=pltpu.MemorySpace.SMEM),
        ],
        out_specs=pl.BlockSpec((1, Cout, BL), lambda g: (g, 0, 0)),
        compiler_params=pltpu.CompilerParams(
            dimension_semantics=("parallel",),          # v7x: shard batch groups across TCs
            vmem_limit_bytes=32 * 1024 * 1024),
    )(xg, w1p, b1c, w2p, b2c, w3p, b3c, mask, pre)

    # ---- unpack: (G, Cout, B*L) -> (N, Cout, Hp, Wp) -> crop the 2-pixel ring
    out = out.reshape(G, Cout, B, Hp, Wp).transpose(0, 2, 1, 3, 4)
    out = out.reshape(N, Cout, Hp, Wp)[:, :, 2:2 + H, 2:2 + W]
    return out


def ref_forward(x_nchw, params):
    """Pure-JAX reference (matches the PyTorch module semantics, f32 HIGHEST)."""
    HIGH = jax.lax.Precision.HIGHEST

    def conv(x, w, b, pad):
        y = jax.lax.conv_general_dilated(
            x, w, window_strides=(1, 1),
            padding=[(pad, pad), (pad, pad)],
            dimension_numbers=("NCHW", "OIHW", "NCHW"),
            precision=HIGH)
        return y + b[None, :, None, None]

    def prelu(x, a):
        return jnp.where(x >= 0, x, a * x)

    x = prelu(conv(x_nchw, params["w1"], params["b1"], 2), params["p1"])
    x = prelu(jnp.concatenate(
        [conv(x, params["w2"], params["b2"], 1), x_nchw], axis=1), params["p2"])
    x = conv(x, params["w3"], params["b3"], 1)
    return x


if __name__ == "__main__":
    N, Cin, H, W = 2, 6, 16, 16     # Cin must be 6: conv3 expects 32 + 6 = 38 channels
    Cout = 1

    key = jax.random.PRNGKey(0)
    keys = jax.random.split(key, 8)
    params = {
        "w1": 0.1 * jax.random.normal(keys[0], (32, Cin, 5, 5), jnp.float32),
        "b1": 0.1 * jax.random.normal(keys[1], (32,), jnp.float32),
        "w2": 0.1 * jax.random.normal(keys[2], (32, 32, 3, 3), jnp.float32),
        "b2": 0.1 * jax.random.normal(keys[3], (32,), jnp.float32),
        "w3": 0.1 * jax.random.normal(keys[4], (Cout, 38, 3, 3), jnp.float32),
        "b3": 0.1 * jax.random.normal(keys[5], (Cout,), jnp.float32),
        "p1": jnp.full((1,), 0.25, jnp.float32),   # PReLU default init
        "p2": jnp.full((1,), 0.25, jnp.float32),
    }
    x = jax.random.normal(keys[6], (N, Cin, H, W), jnp.float32)

    out = jax.block_until_ready(jax.jit(error_attention_forward)(x, params))
    ref = jax.block_until_ready(ref_forward(x, params))

    assert out.shape == (N, Cout, H, W), out.shape
    max_err = float(jnp.max(jnp.abs(out - ref)))
    # bf16 MXU operands with f32 accumulation: ~1e-2-scale abs deviation vs f32 HIGHEST ref.
    assert max_err < 1e-1, f"max abs error too large: {max_err}"
    print("KERNEL_OK")
</pallas_src>

<mosaic_0001>
module attributes {stable_mosaic.version = 11 : i64} {
  func.func @kernel(%arg0: i32, %arg1: memref<1x8x1056xf32, #tpu.memory_space<vmem>>, %arg2: memref<32x200xbf16, #tpu.memory_space<vmem>>, %arg3: memref<32x1xf32, #tpu.memory_space<vmem>>, %arg4: memref<32x288xbf16, #tpu.memory_space<vmem>>, %arg5: memref<32x1xf32, #tpu.memory_space<vmem>>, %arg6: memref<8x360xbf16, #tpu.memory_space<vmem>>, %arg7: memref<8x1xf32, #tpu.memory_space<vmem>>, %arg8: memref<1x800xf32, #tpu.memory_space<vmem>>, %arg9: memref<1x2xf32, #tpu.memory_space<smem>>, %arg10: memref<1x1x800xf32, #tpu.memory_space<vmem>>) attributes {dimension_semantics = [#tpu.dimension_semantics<parallel>], iteration_bounds = array<i64: 1>, scalar_prefetch = 0 : i64, scratch_operands = 0 : i64, tpu.core_type = #tpu.core_type<tc>, window_params = [{transform_indices = @transform_0, window_bounds = array<i64: 1, 8, 1056>}, {pipeline_mode = #tpu.pipeline_mode<synchronous>, transform_indices = @transform_1, window_bounds = array<i64: 32, 200>}, {pipeline_mode = #tpu.pipeline_mode<synchronous>, transform_indices = @transform_2, window_bounds = array<i64: 32, 1>}, {pipeline_mode = #tpu.pipeline_mode<synchronous>, transform_indices = @transform_3, window_bounds = array<i64: 32, 288>}, {pipeline_mode = #tpu.pipeline_mode<synchronous>, transform_indices = @transform_4, window_bounds = array<i64: 32, 1>}, {pipeline_mode = #tpu.pipeline_mode<synchronous>, transform_indices = @transform_5, window_bounds = array<i64: 8, 360>}, {pipeline_mode = #tpu.pipeline_mode<synchronous>, transform_indices = @transform_6, window_bounds = array<i64: 8, 1>}, {pipeline_mode = #tpu.pipeline_mode<synchronous>, transform_indices = @transform_7, window_bounds = array<i64: 1, 800>}, {transform_indices = @transform_8, window_bounds = array<i64: 1, 2>}, {transform_indices = @transform_9, window_bounds = array<i64: 1, 1, 800>}]} {
    %c0 = arith.constant 0 : index
    %c0_0 = arith.constant 0 : index
    %c0_1 = arith.constant 0 : index
    %0 = vector.load %arg1[%c0, %c0_0, %c0_1] : memref<1x8x1056xf32, #tpu.memory_space<vmem>>, vector<1x8x1056xf32>
    %1 = vector.shape_cast %0 : vector<1x8x1056xf32> to vector<8x1056xf32>
    %c0_2 = arith.constant 0 : index
    %c0_3 = arith.constant 0 : index
    %2 = memref.load %arg9[%c0_2, %c0_3] : memref<1x2xf32, #tpu.memory_space<smem>>
    %c0_4 = arith.constant 0 : index
    %c1 = arith.constant 1 : index
    %3 = memref.load %arg9[%c0_4, %c1] : memref<1x2xf32, #tpu.memory_space<smem>>
    %c0_5 = arith.constant 0 : index
    %c0_6 = arith.constant 0 : index
    %4 = vector.load %arg8[%c0_5, %c0_6] : memref<1x800xf32, #tpu.memory_space<vmem>>, vector<1x800xf32>
    %5 = vector.extract_strided_slice %1 {offsets = [0, 86], sizes = [8, 800], strides = [1, 1]} : vector<8x1056xf32> to vector<8x800xf32>
    %6 = vector.extract_strided_slice %1 {offsets = [0, 87], sizes = [8, 800], strides = [1, 1]} : vector<8x1056xf32> to vector<8x800xf32>
    %7 = vector.extract_strided_slice %1 {offsets = [0, 88], sizes = [8, 800], strides = [1, 1]} : vector<8x1056xf32> to vector<8x800xf32>
    %8 = vector.extract_strided_slice %1 {offsets = [0, 89], sizes = [8, 800], strides = [1, 1]} : vector<8x1056xf32> to vector<8x800xf32>
    %9 = vector.extract_strided_slice %1 {offsets = [0, 90], sizes = [8, 800], strides = [1, 1]} : vector<8x1056xf32> to vector<8x800xf32>
    %10 = vector.extract_strided_slice %1 {offsets = [0, 106], sizes = [8, 800], strides = [1, 1]} : vector<8x1056xf32> to vector<8x800xf32>
    %11 = vector.extract_strided_slice %1 {offsets = [0, 107], sizes = [8, 800], strides = [1, 1]} : vector<8x1056xf32> to vector<8x800xf32>
    %12 = vector.extract_strided_slice %1 {offsets = [0, 108], sizes = [8, 800], strides = [1, 1]} : vector<8x1056xf32> to vector<8x800xf32>
    %13 = vector.extract_strided_slice %1 {offsets = [0, 109], sizes = [8, 800], strides = [1, 1]} : vector<8x1056xf32> to vector<8x800xf32>
    %14 = vector.extract_strided_slice %1 {offsets = [0, 110], sizes = [8, 800], strides = [1, 1]} : vector<8x1056xf32> to vector<8x800xf32>
    %15 = vector.extract_strided_slice %1 {offsets = [0, 126], sizes = [8, 800], strides = [1, 1]} : vector<8x1056xf32> to vector<8x800xf32>
    %16 = vector.extract_strided_slice %1 {offsets = [0, 127], sizes = [8, 800], strides = [1, 1]} : vector<8x1056xf32> to vector<8x800xf32>
    %17 = vector.extract_strided_slice %1 {offsets = [0, 128], sizes = [8, 800], strides = [1, 1]} : vector<8x1056xf32> to vector<8x800xf32>
    %18 = vector.extract_strided_slice %1 {offsets = [0, 129], sizes = [8, 800], strides = [1, 1]} : vector<8x1056xf32> to vector<8x800xf32>
    %19 = vector.extract_strided_slice %1 {offsets = [0, 130], sizes = [8, 800], strides = [1, 1]} : vector<8x1056xf32> to vector<8x800xf32>
    %20 = vector.extract_strided_slice %1 {offsets = [0, 146], sizes = [8, 800], strides = [1, 1]} : vector<8x1056xf32> to vector<8x800xf32>
    %21 = vector.extract_strided_slice %1 {offsets = [0, 147], sizes = [8, 800], strides = [1, 1]} : vector<8x1056xf32> to vector<8x800xf32>
    %22 = vector.extract_strided_slice %1 {offsets = [0, 148], sizes = [8, 800], strides = [1, 1]} : vector<8x1056xf32> to vector<8x800xf32>
    %23 = vector.extract_strided_slice %1 {offsets = [0, 149], sizes = [8, 800], strides = [1, 1]} : vector<8x1056xf32> to vector<8x800xf32>
    %24 = vector.extract_strided_slice %1 {offsets = [0, 150], sizes = [8, 800], strides = [1, 1]} : vector<8x1056xf32> to vector<8x800xf32>
    %25 = vector.extract_strided_slice %1 {offsets = [0, 166], sizes = [8, 800], strides = [1, 1]} : vector<8x1056xf32> to vector<8x800xf32>
    %26 = vector.extract_strided_slice %1 {offsets = [0, 167], sizes = [8, 800], strides = [1, 1]} : vector<8x1056xf32> to vector<8x800xf32>
    %27 = vector.extract_strided_slice %1 {offsets = [0, 168], sizes = [8, 800], strides = [1, 1]} : vector<8x1056xf32> to vector<8x800xf32>
    %28 = vector.extract_strided_slice %1 {offsets = [0, 169], sizes = [8, 800], strides = [1, 1]} : vector<8x1056xf32> to vector<8x800xf32>
    %29 = vector.extract_strided_slice %1 {offsets = [0, 170], sizes = [8, 800], strides = [1, 1]} : vector<8x1056xf32> to vector<8x800xf32>
    %30 = tpu.concatenate %5, %6, %7, %8, %9, %10, %11, %12, %13, %14, %15, %16, %17, %18, %19, %20 in 0 : vector<8x800xf32>, vector<8x800xf32>, vector<8x800xf32>, vector<8x800xf32>, vector<8x800xf32>, vector<8x800xf32>, vector<8x800xf32>, vector<8x800xf32>, vector<8x800xf32>, vector<8x800xf32>, vector<8x800xf32>, vector<8x800xf32>, vector<8x800xf32>, vector<8x800xf32>, vector<8x800xf32>, vector<8x800xf32> -> vector<128x800xf32>
    %31 = tpu.concatenate %21, %22, %23, %24, %25, %26, %27, %28, %29 in 0 : vector<8x800xf32>, vector<8x800xf32>, vector<8x800xf32>, vector<8x800xf32>, vector<8x800xf32>, vector<8x800xf32>, vector<8x800xf32>, vector<8x800xf32>, vector<8x800xf32> -> vector<72x800xf32>
    %32 = tpu.concatenate %30, %31 in 0 : vector<128x800xf32>, vector<72x800xf32> -> vector<200x800xf32>
    %33 = arith.truncf %32 : vector<200x800xf32> to vector<200x800xbf16>
    %c0_7 = arith.constant 0 : index
    %c0_8 = arith.constant 0 : index
    %34 = vector.load %arg2[%c0_7, %c0_8] : memref<32x200xbf16, #tpu.memory_space<vmem>>, vector<32x200xbf16>
    %cst = arith.constant dense<0.000000e+00> : vector<32x800xf32>
    %35 = tpu.matmul %34, %33, %cst {dimension_numbers = #tpu.dot_dimension_numbers<[1], [0], [0], [1], [0, 0, 1, 1], [], []>} : vector<32x200xbf16>, vector<200x800xbf16>, vector<32x800xf32> -> vector<32x800xf32>
    %c0_9 = arith.constant 0 : index
    %c0_10 = arith.constant 0 : index
    %36 = vector.load %arg3[%c0_9, %c0_10] : memref<32x1xf32, #tpu.memory_space<vmem>>, vector<32x1xf32>
    %37 = vector.broadcast %36 : vector<32x1xf32> to vector<32x800xf32>
    %38 = arith.addf %35, %37 : vector<32x800xf32>
    %cst_11 = arith.constant 0.000000e+00 : f32
    %39 = vector.broadcast %cst_11 : f32 to vector<32x800xf32>
    %40 = arith.cmpf oge, %38, %39 : vector<32x800xf32>
    %41 = vector.broadcast %2 : f32 to vector<32x800xf32>
    %42 = arith.mulf %41, %38 : vector<32x800xf32>
    %43 = arith.select %40, %38, %42 : vector<32x800xi1>, vector<32x800xf32>
    %44 = vector.broadcast %4 : vector<1x800xf32> to vector<32x800xf32>
    %45 = arith.mulf %43, %44 : vector<32x800xf32>
    %cst_12 = arith.constant 0.000000e+00 : f32
    %46 = vector.broadcast %cst_12 : f32 to vector<32x128xf32>
    %47 = tpu.concatenate %46, %45, %46 in 1 : vector<32x128xf32>, vector<32x800xf32>, vector<32x128xf32> -> vector<32x1056xf32>
    %48 = vector.extract_strided_slice %47 {offsets = [0, 107], sizes = [32, 800], strides = [1, 1]} : vector<32x1056xf32> to vector<32x800xf32>
    %49 = vector.extract_strided_slice %47 {offsets = [0, 108], sizes = [32, 800], strides = [1, 1]} : vector<32x1056xf32> to vector<32x800xf32>
    %50 = vector.extract_strided_slice %47 {offsets = [0, 109], sizes = [32, 800], strides = [1, 1]} : vector<32x1056xf32> to vector<32x800xf32>
    %51 = vector.extract_strided_slice %47 {offsets = [0, 127], sizes = [32, 800], strides = [1, 1]} : vector<32x1056xf32> to vector<32x800xf32>
    %52 = vector.extract_strided_slice %47 {offsets = [0, 128], sizes = [32, 800], strides = [1, 1]} : vector<32x1056xf32> to vector<32x800xf32>
    %53 = vector.extract_strided_slice %47 {offsets = [0, 129], sizes = [32, 800], strides = [1, 1]} : vector<32x1056xf32> to vector<32x800xf32>
    %54 = vector.extract_strided_slice %47 {offsets = [0, 147], sizes = [32, 800], strides = [1, 1]} : vector<32x1056xf32> to vector<32x800xf32>
    %55 = vector.extract_strided_slice %47 {offsets = [0, 148], sizes = [32, 800], strides = [1, 1]} : vector<32x1056xf32> to vector<32x800xf32>
    %56 = vector.extract_strided_slice %47 {offsets = [0, 149], sizes = [32, 800], strides = [1, 1]} : vector<32x1056xf32> to vector<32x800xf32>
    %57 = tpu.concatenate %48, %49, %50, %51, %52, %53, %54, %55, %56 in 0 : vector<32x800xf32>, vector<32x800xf32>, vector<32x800xf32>, vector<32x800xf32>, vector<32x800xf32>, vector<32x800xf32>, vector<32x800xf32>, vector<32x800xf32>, vector<32x800xf32> -> vector<288x800xf32>
    %58 = arith.truncf %57 : vector<288x800xf32> to vector<288x800xbf16>
    %c0_13 = arith.constant 0 : index
    %c0_14 = arith.constant 0 : index
    %59 = vector.load %arg4[%c0_13, %c0_14] : memref<32x288xbf16, #tpu.memory_space<vmem>>, vector<32x288xbf16>
    %cst_15 = arith.constant dense<0.000000e+00> : vector<32x800xf32>
    %60 = tpu.matmul %59, %58, %cst_15 {dimension_numbers = #tpu.dot_dimension_numbers<[1], [0], [0], [1], [0, 0, 1, 1], [], []>} : vector<32x288xbf16>, vector<288x800xbf16>, vector<32x800xf32> -> vector<32x800xf32>
    %c0_16 = arith.constant 0 : index
    %c0_17 = arith.constant 0 : index
    %61 = vector.load %arg5[%c0_16, %c0_17] : memref<32x1xf32, #tpu.memory_space<vmem>>, vector<32x1xf32>
    %62 = vector.broadcast %61 : vector<32x1xf32> to vector<32x800xf32>
    %63 = arith.addf %60, %62 : vector<32x800xf32>
    %64 = vector.extract_strided_slice %1 {offsets = [0, 128], sizes = [8, 800], strides = [1, 1]} : vector<8x1056xf32> to vector<8x800xf32>
    %65 = tpu.concatenate %63, %64 in 0 : vector<32x800xf32>, vector<8x800xf32> -> vector<40x800xf32>
    %cst_18 = arith.constant 0.000000e+00 : f32
    %66 = vector.broadcast %cst_18 : f32 to vector<40x800xf32>
    %67 = arith.cmpf oge, %65, %66 : vector<40x800xf32>
    %68 = vector.broadcast %3 : f32 to vector<40x800xf32>
    %69 = arith.mulf %68, %65 : vector<40x800xf32>
    %70 = arith.select %67, %65, %69 : vector<40x800xi1>, vector<40x800xf32>
    %71 = vector.broadcast %4 : vector<1x800xf32> to vector<40x800xf32>
    %72 = arith.mulf %70, %71 : vector<40x800xf32>
    %cst_19 = arith.constant 0.000000e+00 : f32
    %73 = vector.broadcast %cst_19 : f32 to vector<40x128xf32>
    %74 = tpu.concatenate %73, %72, %73 in 1 : vector<40x128xf32>, vector<40x800xf32>, vector<40x128xf32> -> vector<40x1056xf32>
    %75 = vector.extract_strided_slice %74 {offsets = [0, 107], sizes = [40, 800], strides = [1, 1]} : vector<40x1056xf32> to vector<40x800xf32>
    %76 = vector.extract_strided_slice %74 {offsets = [0, 108], sizes = [40, 800], strides = [1, 1]} : vector<40x1056xf32> to vector<40x800xf32>
    %77 = vector.extract_strided_slice %74 {offsets = [0, 109], sizes = [40, 800], strides = [1, 1]} : vector<40x1056xf32> to vector<40x800xf32>
    %78 = vector.extract_strided_slice %74 {offsets = [0, 127], sizes = [40, 800], strides = [1, 1]} : vector<40x1056xf32> to vector<40x800xf32>
    %79 = vector.extract_strided_slice %74 {offsets = [0, 128], sizes = [40, 800], strides = [1, 1]} : vector<40x1056xf32> to vector<40x800xf32>
    %80 = vector.extract_strided_slice %74 {offsets = [0, 129], sizes = [40, 800], strides = [1, 1]} : vector<40x1056xf32> to vector<40x800xf32>
    %81 = vector.extract_strided_slice %74 {offsets = [0, 147], sizes = [40, 800], strides = [1, 1]} : vector<40x1056xf32> to vector<40x800xf32>
    %82 = vector.extract_strided_slice %74 {offsets = [0, 148], sizes = [40, 800], strides = [1, 1]} : vector<40x1056xf32> to vector<40x800xf32>
    %83 = vector.extract_strided_slice %74 {offsets = [0, 149], sizes = [40, 800], strides = [1, 1]} : vector<40x1056xf32> to vector<40x800xf32>
    %84 = tpu.concatenate %75, %76, %77, %78, %79, %80, %81, %82, %83 in 0 : vector<40x800xf32>, vector<40x800xf32>, vector<40x800xf32>, vector<40x800xf32>, vector<40x800xf32>, vector<40x800xf32>, vector<40x800xf32>, vector<40x800xf32>, vector<40x800xf32> -> vector<360x800xf32>
    %85 = arith.truncf %84 : vector<360x800xf32> to vector<360x800xbf16>
    %c0_20 = arith.constant 0 : index
    %c0_21 = arith.constant 0 : index
    %86 = vector.load %arg6[%c0_20, %c0_21] : memref<8x360xbf16, #tpu.memory_space<vmem>>, vector<8x360xbf16>
    %cst_22 = arith.constant dense<0.000000e+00> : vector<8x800xf32>
    %87 = tpu.matmul %86, %85, %cst_22 {dimension_numbers = #tpu.dot_dimension_numbers<[1], [0], [0], [1], [0, 0, 1, 1], [], []>} : vector<8x360xbf16>, vector<360x800xbf16>, vector<8x800xf32> -> vector<8x800xf32>
    %c0_23 = arith.constant 0 : index
    %c0_24 = arith.constant 0 : index
    %88 = vector.load %arg7[%c0_23, %c0_24] : memref<8x1xf32, #tpu.memory_space<vmem>>, vector<8x1xf32>
    %89 = vector.broadcast %88 : vector<8x1xf32> to vector<8x800xf32>
    %90 = arith.addf %87, %89 : vector<8x800xf32>
    %91 = vector.extract_strided_slice %90 {offsets = [0, 0], sizes = [1, 800], strides = [1, 1]} : vector<8x800xf32> to vector<1x800xf32>
    %c0_25 = arith.constant 0 : index
    %c0_26 = arith.constant 0 : index
    %c0_27 = arith.constant 0 : index
    %92 = vector.load %arg10[%c0_25, %c0_26, %c0_27] : memref<1x1x800xf32, #tpu.memory_space<vmem>>, vector<1x1x800xf32>
    %93 = vector.shape_cast %92 : vector<1x1x800xf32> to vector<1x800xf32>
    %94 = vector.shape_cast %91 : vector<1x800xf32> to vector<1x1x800xf32>
    tpu.vector_store %arg10[%c0_25, %c0_26, %c0_27], %94 {strides = array<i32>} : memref<1x1x800xf32, #tpu.memory_space<vmem>>, vector<1x1x800xf32>,
    return
  }
  func.func @transform_0(%arg0: i32) -> (i32, i32, i32) {
    %c0_i32 = arith.constant 0 : i32
    %c0_i32_0 = arith.constant 0 : i32
    %c0_i32_1 = arith.constant 0 : i32
    return %arg0, %c0_i32, %c0_i32_0 : i32, i32, i32
  }
  func.func @transform_1(%arg0: i32) -> (i32, i32) {
    %c0_i32 = arith.constant 0 : i32
    %c0_i32_0 = arith.constant 0 : i32
    %c0_i32_1 = arith.constant 0 : i32
    return %c0_i32, %c0_i32_0 : i32, i32
  }
  func.func @transform_2(%arg0: i32) -> (i32, i32) {
    %c0_i32 = arith.constant 0 : i32
    %c0_i32_0 = arith.constant 0 : i32
    %c0_i32_1 = arith.constant 0 : i32
    return %c0_i32, %c0_i32_0 : i32, i32
  }
  func.func @transform_3(%arg0: i32) -> (i32, i32) {
    %c0_i32 = arith.constant 0 : i32
    %c0_i32_0 = arith.constant 0 : i32
    %c0_i32_1 = arith.constant 0 : i32
    return %c0_i32, %c0_i32_0 : i32, i32
  }
  func.func @transform_4(%arg0: i32) -> (i32, i32) {
    %c0_i32 = arith.constant 0 : i32
    %c0_i32_0 = arith.constant 0 : i32
    %c0_i32_1 = arith.constant 0 : i32
    return %c0_i32, %c0_i32_0 : i32, i32
  }
  func.func @transform_5(%arg0: i32) -> (i32, i32) {
    %c0_i32 = arith.constant 0 : i32
    %c0_i32_0 = arith.constant 0 : i32
    %c0_i32_1 = arith.constant 0 : i32
    return %c0_i32, %c0_i32_0 : i32, i32
  }
  func.func @transform_6(%arg0: i32) -> (i32, i32) {
    %c0_i32 = arith.constant 0 : i32
    %c0_i32_0 = arith.constant 0 : i32
    %c0_i32_1 = arith.constant 0 : i32
    return %c0_i32, %c0_i32_0 : i32, i32
  }
  func.func @transform_7(%arg0: i32) -> (i32, i32) {
    %c0_i32 = arith.constant 0 : i32
    %c0_i32_0 = arith.constant 0 : i32
    %c0_i32_1 = arith.constant 0 : i32
    return %c0_i32, %c0_i32_0 : i32, i32
  }
  func.func @transform_8(%arg0: i32) -> (i32, i32) {
    %c0_i32 = arith.constant 0 : i32
    %c0_i32_0 = arith.constant 0 : i32
    %c0_i32_1 = arith.constant 0 : i32
    return %c0_i32, %c0_i32_0 : i32, i32
  }
  func.func @transform_9(%arg0: i32) -> (i32, i32, i32) {
    %c0_i32 = arith.constant 0 : i32
    %c0_i32_0 = arith.constant 0 : i32
    %c0_i32_1 = arith.constant 0 : i32
    return %arg0, %c0_i32, %c0_i32_0 : i32, i32, i32
  }
}

</mosaic_0001>

<llo_original>
// kernel: error_attention_forward.1
$region0: #{error_attention_forward.1}
  #allocation0 [shape = 'u32[]', space=smem, size = 0x4, offset = 0x4, fixed_abs, tag = 'smem constant byte address 0x4 - core index']
  #allocation1 [shape = 'u32[144,128]{1,0:T(1,128)}', space=vmem, size = 0x12000, scoped, tag = 'internal scratch']
  %s0 = inlined_call_operand.vmem [shape: f32[1,8,1056], index: 0, kind: input, shape index: {}]
  %s1 = inlined_call_operand.vmem [shape: bf16[32,200], index: 1, kind: input, shape index: {}]
  %s2 = inlined_call_operand.vmem [shape: f32[32,1], index: 2, kind: input, shape index: {}]
  %s3 = inlined_call_operand.vmem [shape: bf16[32,288], index: 3, kind: input, shape index: {}]
  %s4 = inlined_call_operand.vmem [shape: f32[32,1], index: 4, kind: input, shape index: {}]
  %s5 = inlined_call_operand.vmem [shape: bf16[8,360], index: 5, kind: input, shape index: {}]
  %s6 = inlined_call_operand.vmem [shape: f32[8,1], index: 6, kind: input, shape index: {}]
  %s7 = inlined_call_operand.vmem [shape: f32[1,800], index: 7, kind: input, shape index: {}]
  %s8 = inlined_call_operand.vmem [shape: f32[1,2], index: 8, kind: input, shape index: {}]
  %s9 = inlined_call_operand.vmem [shape: f32[1,1,800], index: 9, kind: output, shape index: {}]
  %s10 = sld [smem:[#allocation0]]
  $region50: #{error_attention_forward.1} parent=0
    _
  %s12 = ssub.s32 1, %s10
  %s13 = scalar_select 0, %s12, %s10
  $region1: #{error_attention_forward.1} parent=0
    #allocation2 [shape = 'u8[512]{0}', space=smem, size = 0x200, scoped, tag = 'input window, operand 8, single buffered']
    #allocation3 [shape = 's32[1]{0}', space=sflag, size = 0x4, scoped, tag = 'scoped memory for error_attention_forward.1']
    %14 = vsyncpa [#allocation3], 0
    // Predicated region
    $region2: #{error_attention_forward.1} parent=1 // pred_check
      _
    $region3: #{error_attention_forward.1} parent=1 // pred_check_branch
      %16 = sbr.rel (0) target = $region5
    $region4: #{error_attention_forward.1} parent=1 // pred_region
      _
    $region5: #{error_attention_forward.1} parent=1 // pred_fallthru
      _
    // Predicated region
    $region6: #{error_attention_forward.1} parent=1 // pred_check
      _
    $region7: #{error_attention_forward.1} parent=1 // pred_check_branch
      %18 = sbr.rel (0) target = $region9
    $region8: #{error_attention_forward.1} parent=1 // pred_region
      _
    $region9: #{error_attention_forward.1} parent=1 // pred_fallthru
      _
    // Predicated region
    $region10: #{error_attention_forward.1} parent=1 // pred_check
      _
    $region11: #{error_attention_forward.1} parent=1 // pred_check_branch
      %20 = sbr.rel (0) target = $region13
    $region12: #{error_attention_forward.1} parent=1 // pred_region
      _
    $region13: #{error_attention_forward.1} parent=1 // pred_fallthru
      _
    // Predicated region
    $region14: #{error_attention_forward.1} parent=1 // pred_check
      _
    $region15: #{error_attention_forward.1} parent=1 // pred_check_branch
      %22 = sbr.rel (0) target = $region17
    $region16: #{error_attention_forward.1} parent=1 // pred_region
      _
    $region17: #{error_attention_forward.1} parent=1 // pred_fallthru
      _
    // Predicated region
    $region18: #{error_attention_forward.1} parent=1 // pred_check
      _
    $region19: #{error_attention_forward.1} parent=1 // pred_check_branch
      %24 = sbr.rel (0) target = $region21
    $region20: #{error_attention_forward.1} parent=1 // pred_region
      _
    $region21: #{error_attention_forward.1} parent=1 // pred_fallthru
      _
    // Predicated region
    $region22: #{error_attention_forward.1} parent=1 // pred_check
      _
    $region23: #{error_attention_forward.1} parent=1 // pred_check_branch
      %26 = sbr.rel (0) target = $region25
    $region24: #{error_attention_forward.1} parent=1 // pred_region
      _
    $region25: #{error_attention_forward.1} parent=1 // pred_fallthru
      _
    // Predicated region
    $region26: #{error_attention_forward.1} parent=1 // pred_check
      _
    $region27: #{error_attention_forward.1} parent=1 // pred_check_branch
      %28 = sbr.rel (0) target = $region29
    $region28: #{error_attention_forward.1} parent=1 // pred_region
      _
    $region29: #{error_attention_forward.1} parent=1 // pred_fallthru
      _
    // Predicated region
    $region30: #{error_attention_forward.1} parent=1 // pred_check
      _
    $region31: #{error_attention_forward.1} parent=1 // pred_check_branch
      %30 = sbr.rel (0) target = $region33
    $region32: #{error_attention_forward.1} parent=1 // pred_region
      _
    $region33: #{error_attention_forward.1} parent=1 // pred_fallthru
      _
    // Predicated region
    $region34: #{error_attention_forward.1} parent=1 // pred_check
      _
    $region35: #{error_attention_forward.1} parent=1 // pred_check_branch
      %32 = sbr.rel (0) target = $region37
    $region36: #{error_attention_forward.1} parent=1 // pred_region
      %s34 = ssub.s32 16, 16
      %35 = vsyncadd [#allocation3], %s34
      %s37 = sshll.u32 %s8, 4
      %s38 = int_to_ptr.vmem [resolvable:$true] %s37
      %40 = dma.vmem_to_smem %s38, 16, [#allocation2], [#allocation3]
    $region37: #{error_attention_forward.1} parent=1 // pred_fallthru
      _
    // Predicated region
    $region38: #{error_attention_forward.1} parent=1 // pred_check
      _
    $region39: #{error_attention_forward.1} parent=1 // pred_check_branch
      %42 = sbr.rel (0) target = $region41
    $region40: #{error_attention_forward.1} parent=1 // pred_region
      %43 = dma.done [#allocation3], 16
    $region41: #{error_attention_forward.1} parent=1 // pred_fallthru
      _
    %44 = sfence
    %v46 = vld [vmem:[%s0] sm:$0xff]
    %v47 = vld [vmem:[%s0 + $0x8] sm:$0xff]
    %v48 = vld [vmem:[%s0 + $0x10] sm:$0xff]
    %v49 = vld [vmem:[%s0 + $0x18] sm:$0xff]
    %v50 = vld [vmem:[%s0 + $0x20] sm:$0xff]
    %v51 = vld [vmem:[%s0 + $0x28] sm:$0xff]
    %v52 = vld [vmem:[%s0 + $0x30] sm:$0xff]
    %v53 = vld [vmem:[%s0 + $0x38] sm:$0xff]
    %s54 = sld [smem:[#allocation2]]
    %s55 = sld [smem:[#allocation2 + $0x1]]
    %v56 = vld [vmem:[%s7] sm:$0x7f]
    %64 = vrot.lane.b32.xlu0 %v46, 127
    %v65 = vpop.permute.xlu0 %64
    %66 = vrot.lane.b32.xlu0 %v47, 127
    %v67 = vpop.permute.xlu0 %66
    %68 = vrot.lane.b32.xlu0 %v48, 127
    %v69 = vpop.permute.xlu0 %68
    %70 = vrot.lane.b32.xlu0 %v49, 127
    %v71 = vpop.permute.xlu0 %70
    %72 = vrot.lane.b32.xlu0 %v50, 127
    %v73 = vpop.permute.xlu0 %72
    %74 = vrot.lane.b32.xlu0 %v51, 127
    %v75 = vpop.permute.xlu0 %74
    %76 = vrot.lane.b32.xlu0 %v52, 127
    %v77 = vpop.permute.xlu0 %76
    %vm78 = vcmask 1039360
    %v79 = vsel %vm78, %v65, %v67
    %v80 = vsel %vm78, %v67, %v69
    %v81 = vsel %vm78, %v69, %v71
    %v82 = vsel %vm78, %v71, %v73
    %v83 = vsel %vm78, %v73, %v75
    %v84 = vsel %vm78, %v75, %v77
    %92 = vrot.lane.b32.xlu0 %v46, 126
    %v93 = vpop.permute.xlu0 %92
    %94 = vrot.lane.b32.xlu0 %v47, 126
    %v95 = vpop.permute.xlu0 %94
    %96 = vrot.lane.b32.xlu0 %v48, 126
    %v97 = vpop.permute.xlu0 %96
    %98 = vrot.lane.b32.xlu0 %v49, 126
    %v99 = vpop.permute.xlu0 %98
    %100 = vrot.lane.b32.xlu0 %v50, 126
    %v101 = vpop.permute.xlu0 %100
    %102 = vrot.lane.b32.xlu0 %v51, 126
    %v103 = vpop.permute.xlu0 %102
    %104 = vrot.lane.b32.xlu0 %v52, 126
    %v105 = vpop.permute.xlu0 %104
    %vm106 = vcmask 1031168
    %v107 = vsel %vm106, %v93, %v95
    %v108 = vsel %vm106, %v95, %v97
    %v109 = vsel %vm106, %v97, %v99
    %v110 = vsel %vm106, %v99, %v101
    %v111 = vsel %vm106, %v101, %v103
    %v112 = vsel %vm106, %v103, %v105
    %120 = vrot.lane.b32.xlu0 %v46, 125
    %v121 = vpop.permute.xlu0 %120
    %122 = vrot.lane.b32.xlu0 %v47, 125
    %v123 = vpop.permute.xlu0 %122
    %124 = vrot.lane.b32.xlu0 %v48, 125
    %v125 = vpop.permute.xlu0 %124
    %126 = vrot.lane.b32.xlu0 %v49, 125
    %v127 = vpop.permute.xlu0 %126
    %128 = vrot.lane.b32.xlu0 %v50, 125
    %v129 = vpop.permute.xlu0 %128
    %130 = vrot.lane.b32.xlu0 %v51, 125
    %v131 = vpop.permute.xlu0 %130
    %132 = vrot.lane.b32.xlu0 %v52, 125
    %v133 = vpop.permute.xlu0 %132
    %vm134 = vcmask 1022976
    %v135 = vsel %vm134, %v121, %v123
    %v136 = vsel %vm134, %v123, %v125
    %v137 = vsel %vm134, %v125, %v127
    %v138 = vsel %vm134, %v127, %v129
    %v139 = vsel %vm134, %v129, %v131
    %v140 = vsel %vm134, %v131, %v133
    %148 = vrot.lane.b32.xlu0 %v46, 124
    %v149 = vpop.permute.xlu0 %148
    %150 = vrot.lane.b32.xlu0 %v47, 124
    %v151 = vpop.permute.xlu0 %150
    %152 = vrot.lane.b32.xlu0 %v48, 124
    %v153 = vpop.permute.xlu0 %152
    %154 = vrot.lane.b32.xlu0 %v49, 124
    %v155 = vpop.permute.xlu0 %154
    %156 = vrot.lane.b32.xlu0 %v50, 124
    %v157 = vpop.permute.xlu0 %156
    %158 = vrot.lane.b32.xlu0 %v51, 124
    %v159 = vpop.permute.xlu0 %158
    %160 = vrot.lane.b32.xlu0 %v52, 124
    %v161 = vpop.permute.xlu0 %160
    %vm162 = vcmask 1014784
    %v163 = vsel %vm162, %v149, %v151
    %v164 = vsel %vm162, %v151, %v153
    %v165 = vsel %vm162, %v153, %v155
    %v166 = vsel %vm162, %v155, %v157
    %v167 = vsel %vm162, %v157, %v159
    %v168 = vsel %vm162, %v159, %v161
    %177 = vrot.lane.b32.xlu0 %v46, 108
    %v178 = vpop.permute.xlu0 %177
    %179 = vrot.lane.b32.xlu0 %v47, 108
    %v180 = vpop.permute.xlu0 %179
    %181 = vrot.lane.b32.xlu0 %v48, 108
    %v182 = vpop.permute.xlu0 %181
    %183 = vrot.lane.b32.xlu0 %v49, 108
    %v184 = vpop.permute.xlu0 %183
    %185 = vrot.lane.b32.xlu0 %v50, 108
    %v186 = vpop.permute.xlu0 %185
    %187 = vrot.lane.b32.xlu0 %v51, 108
    %v188 = vpop.permute.xlu0 %187
    %189 = vrot.lane.b32.xlu0 %v52, 108
    %v190 = vpop.permute.xlu0 %189
    %191 = vrot.lane.b32.xlu0 %v53, 108
    %v192 = vpop.permute.xlu0 %191
    %vm193 = vcmask 883712
    %v194 = vsel %vm193, %v178, %v180
    %v195 = vsel %vm193, %v180, %v182
    %v196 = vsel %vm193, %v182, %v184
    %v197 = vsel %vm193, %v184, %v186
    %v198 = vsel %vm193, %v186, %v188
    %v199 = vsel %vm193, %v188, %v190
    %v200 = vsel %vm193, %v190, %v192
    %208 = vrot.lane.b32.xlu0 %v46, 107
    %v209 = vpop.permute.xlu0 %208
    %210 = vrot.lane.b32.xlu0 %v47, 107
    %v211 = vpop.permute.xlu0 %210
    %212 = vrot.lane.b32.xlu0 %v48, 107
    %v213 = vpop.permute.xlu0 %212
    %214 = vrot.lane.b32.xlu0 %v49, 107
    %v215 = vpop.permute.xlu0 %214
    %216 = vrot.lane.b32.xlu0 %v50, 107
    %v217 = vpop.permute.xlu0 %216
    %218 = vrot.lane.b32.xlu0 %v51, 107
    %v219 = vpop.permute.xlu0 %218
    %220 = vrot.lane.b32.xlu0 %v52, 107
    %v221 = vpop.permute.xlu0 %220
    %222 = vrot.lane.b32.xlu0 %v53, 107
    %v223 = vpop.permute.xlu0 %222
    %vm224 = vcmask 875520
    %v225 = vsel %vm224, %v209, %v211
    %v226 = vsel %vm224, %v211, %v213
    %v227 = vsel %vm224, %v213, %v215
    %v228 = vsel %vm224, %v215, %v217
    %v229 = vsel %vm224, %v217, %v219
    %v230 = vsel %vm224, %v219, %v221
    %v231 = vsel %vm224, %v221, %v223
    %239 = vrot.lane.b32.xlu0 %v46, 106
    %v240 = vpop.permute.xlu0 %239
    %241 = vrot.lane.b32.xlu0 %v47, 106
    %v242 = vpop.permute.xlu0 %241
    %243 = vrot.lane.b32.xlu0 %v48, 106
    %v244 = vpop.permute.xlu0 %243
    %245 = vrot.lane.b32.xlu0 %v49, 106
    %v246 = vpop.permute.xlu0 %245
    %247 = vrot.lane.b32.xlu0 %v50, 106
    %v248 = vpop.permute.xlu0 %247
    %249 = vrot.lane.b32.xlu0 %v51, 106
    %v250 = vpop.permute.xlu0 %249
    %251 = vrot.lane.b32.xlu0 %v52, 106
    %v252 = vpop.permute.xlu0 %251
    %253 = vrot.lane.b32.xlu0 %v53, 106
    %v254 = vpop.permute.xlu0 %253
    %vm255 = vcmask 867328
    %v256 = vsel %vm255, %v240, %v242
    %v257 = vsel %vm255, %v242, %v244
    %v258 = vsel %vm255, %v244, %v246
    %v259 = vsel %vm255, %v246, %v248
    %v260 = vsel %vm255, %v248, %v250
    %v261 = vsel %vm255, %v250, %v252
    %v262 = vsel %vm255, %v252, %v254
    %270 = vrot.lane.b32.xlu0 %v46, 105
    %v271 = vpop.permute.xlu0 %270
    %272 = vrot.lane.b32.xlu0 %v47, 105
    %v273 = vpop.permute.xlu0 %272
    %274 = vrot.lane.b32.xlu0 %v48, 105
    %v275 = vpop.permute.xlu0 %274
    %276 = vrot.lane.b32.xlu0 %v49, 105
    %v277 = vpop.permute.xlu0 %276
    %278 = vrot.lane.b32.xlu0 %v50, 105
    %v279 = vpop.permute.xlu0 %278
    %280 = vrot.lane.b32.xlu0 %v51, 105
    %v281 = vpop.permute.xlu0 %280
    %282 = vrot.lane.b32.xlu0 %v52, 105
    %v283 = vpop.permute.xlu0 %282
    %284 = vrot.lane.b32.xlu0 %v53, 105
    %v285 = vpop.permute.xlu0 %284
    %vm286 = vcmask 859136
    %v287 = vsel %vm286, %v271, %v273
    %v288 = vsel %vm286, %v273, %v275
    %v289 = vsel %vm286, %v275, %v277
    %v290 = vsel %vm286, %v277, %v279
    %v291 = vsel %vm286, %v279, %v281
    %v292 = vsel %vm286, %v281, %v283
    %v293 = vsel %vm286, %v283, %v285
    %301 = vrot.lane.b32.xlu0 %v46, 104
    %v302 = vpop.permute.xlu0 %301
    %303 = vrot.lane.b32.xlu0 %v47, 104
    %v304 = vpop.permute.xlu0 %303
    %305 = vrot.lane.b32.xlu0 %v48, 104
    %v306 = vpop.permute.xlu0 %305
    %307 = vrot.lane.b32.xlu0 %v49, 104
    %v308 = vpop.permute.xlu0 %307
    %309 = vrot.lane.b32.xlu0 %v50, 104
    %v310 = vpop.permute.xlu0 %309
    %311 = vrot.lane.b32.xlu0 %v51, 104
    %v312 = vpop.permute.xlu0 %311
    %313 = vrot.lane.b32.xlu0 %v52, 104
    %v314 = vpop.permute.xlu0 %313
    %315 = vrot.lane.b32.xlu0 %v53, 104
    %v316 = vpop.permute.xlu0 %315
    %vm317 = vcmask 850944
    %v318 = vsel %vm317, %v302, %v304
    %v319 = vsel %vm317, %v304, %v306
    %v320 = vsel %vm317, %v306, %v308
    %v321 = vsel %vm317, %v308, %v310
    %v322 = vsel %vm317, %v310, %v312
    %v323 = vsel %vm317, %v312, %v314
    %v324 = vsel %vm317, %v314, %v316
    %332 = vrot.lane.b32.xlu0 %v46, 88
    %v333 = vpop.permute.xlu0 %332
    %334 = vrot.lane.b32.xlu0 %v47, 88
    %v335 = vpop.permute.xlu0 %334
    %336 = vrot.lane.b32.xlu0 %v48, 88
    %v337 = vpop.permute.xlu0 %336
    %338 = vrot.lane.b32.xlu0 %v49, 88
    %v339 = vpop.permute.xlu0 %338
    %340 = vrot.lane.b32.xlu0 %v50, 88
    %v341 = vpop.permute.xlu0 %340
    %342 = vrot.lane.b32.xlu0 %v51, 88
    %v343 = vpop.permute.xlu0 %342
    %344 = vrot.lane.b32.xlu0 %v52, 88
    %v345 = vpop.permute.xlu0 %344
    %346 = vrot.lane.b32.xlu0 %v53, 88
    %v347 = vpop.permute.xlu0 %346
    %vm348 = vcmask 719872
    %v349 = vsel %vm348, %v333, %v335
    %v350 = vsel %vm348, %v335, %v337
    %v351 = vsel %vm348, %v337, %v339
    %v352 = vsel %vm348, %v339, %v341
    %v353 = vsel %vm348, %v341, %v343
    %v354 = vsel %vm348, %v343, %v345
    %v355 = vsel %vm348, %v345, %v347
    %363 = vrot.lane.b32.xlu0 %v46, 87
    %v364 = vpop.permute.xlu0 %363
    %365 = vrot.lane.b32.xlu0 %v47, 87
    %v366 = vpop.permute.xlu0 %365
    %367 = vrot.lane.b32.xlu0 %v48, 87
    %v368 = vpop.permute.xlu0 %367
    %369 = vrot.lane.b32.xlu0 %v49, 87
    %v370 = vpop.permute.xlu0 %369
    %371 = vrot.lane.b32.xlu0 %v50, 87
    %v372 = vpop.permute.xlu0 %371
    %373 = vrot.lane.b32.xlu0 %v51, 87
    %v374 = vpop.permute.xlu0 %373
    %375 = vrot.lane.b32.xlu0 %v52, 87
    %v376 = vpop.permute.xlu0 %375
    %377 = vrot.lane.b32.xlu0 %v53, 87
    %v378 = vpop.permute.xlu0 %377
    %vm379 = vcmask 711680
    %v380 = vsel %vm379, %v364, %v366
    %v381 = vsel %vm379, %v366, %v368
    %v382 = vsel %vm379, %v368, %v370
    %v383 = vsel %vm379, %v370, %v372
    %v384 = vsel %vm379, %v372, %v374
    %v385 = vsel %vm379, %v374, %v376
    %v386 = vsel %vm379, %v376, %v378
    %394 = vrot.lane.b32.xlu0 %v47, 86
    %v395 = vpop.permute.xlu0 %394
    %396 = vrot.lane.b32.xlu0 %v48, 86
    %v397 = vpop.permute.xlu0 %396
    %398 = vrot.lane.b32.xlu0 %v49, 86
    %v399 = vpop.permute.xlu0 %398
    %400 = vrot.lane.b32.xlu0 %v50, 86
    %v401 = vpop.permute.xlu0 %400
    %402 = vrot.lane.b32.xlu0 %v51, 86
    %v403 = vpop.permute.xlu0 %402
    %404 = vrot.lane.b32.xlu0 %v52, 86
    %v405 = vpop.permute.xlu0 %404
    %406 = vrot.lane.b32.xlu0 %v53, 86
    %v407 = vpop.permute.xlu0 %406
    %vm408 = vcmask 703488
    %v409 = vsel %vm408, %v395, %v397
    %v410 = vsel %vm408, %v397, %v399
    %v411 = vsel %vm408, %v399, %v401
    %v412 = vsel %vm408, %v401, %v403
    %v413 = vsel %vm408, %v403, %v405
    %v414 = vsel %vm408, %v405, %v407
    %422 = vrot.lane.b32.xlu0 %v47, 85
    %v423 = vpop.permute.xlu0 %422
    %424 = vrot.lane.b32.xlu0 %v48, 85
    %v425 = vpop.permute.xlu0 %424
    %426 = vrot.lane.b32.xlu0 %v49, 85
    %v427 = vpop.permute.xlu0 %426
    %428 = vrot.lane.b32.xlu0 %v50, 85
    %v429 = vpop.permute.xlu0 %428
    %430 = vrot.lane.b32.xlu0 %v51, 85
    %v431 = vpop.permute.xlu0 %430
    %432 = vrot.lane.b32.xlu0 %v52, 85
    %v433 = vpop.permute.xlu0 %432
    %434 = vrot.lane.b32.xlu0 %v53, 85
    %v435 = vpop.permute.xlu0 %434
    %vm436 = vcmask 695296
    %v437 = vsel %vm436, %v423, %v425
    %v438 = vsel %vm436, %v425, %v427
    %v439 = vsel %vm436, %v427, %v429
    %v440 = vsel %vm436, %v429, %v431
    %v441 = vsel %vm436, %v431, %v433
    %v442 = vsel %vm436, %v433, %v435
    %450 = vrot.lane.b32.xlu0 %v47, 84
    %v451 = vpop.permute.xlu0 %450
    %452 = vrot.lane.b32.xlu0 %v48, 84
    %v453 = vpop.permute.xlu0 %452
    %454 = vrot.lane.b32.xlu0 %v49, 84
    %v455 = vpop.permute.xlu0 %454
    %456 = vrot.lane.b32.xlu0 %v50, 84
    %v457 = vpop.permute.xlu0 %456
    %458 = vrot.lane.b32.xlu0 %v51, 84
    %v459 = vpop.permute.xlu0 %458
    %460 = vrot.lane.b32.xlu0 %v52, 84
    %v461 = vpop.permute.xlu0 %460
    %462 = vrot.lane.b32.xlu0 %v53, 84
    %v463 = vpop.permute.xlu0 %462
    %vm464 = vcmask 687104
    %v465 = vsel %vm464, %v451, %v453
    %v466 = vsel %vm464, %v453, %v455
    %v467 = vsel %vm464, %v455, %v457
    %v468 = vsel %vm464, %v457, %v459
    %v469 = vsel %vm464, %v459, %v461
    %v470 = vsel %vm464, %v461, %v463
    %478 = vrot.lane.b32.xlu0 %v47, 68
    %v479 = vpop.permute.xlu0 %478
    %480 = vrot.lane.b32.xlu0 %v48, 68
    %v481 = vpop.permute.xlu0 %480
    %482 = vrot.lane.b32.xlu0 %v49, 68
    %v483 = vpop.permute.xlu0 %482
    %484 = vrot.lane.b32.xlu0 %v50, 68
    %v485 = vpop.permute.xlu0 %484
    %486 = vrot.lane.b32.xlu0 %v51, 68
    %v487 = vpop.permute.xlu0 %486
    %488 = vrot.lane.b32.xlu0 %v52, 68
    %v489 = vpop.permute.xlu0 %488
    %490 = vrot.lane.b32.xlu0 %v53, 68
    %v491 = vpop.permute.xlu0 %490
    %vm492 = vcmask 556032
    %v493 = vsel %vm492, %v479, %v481
    %v494 = vsel %vm492, %v481, %v483
    %v495 = vsel %vm492, %v483, %v485
    %v496 = vsel %vm492, %v485, %v487
    %v497 = vsel %vm492, %v487, %v489
    %v498 = vsel %vm492, %v489, %v491
    %506 = vrot.lane.b32.xlu0 %v53, 127
    %v507 = vpop.permute.xlu0 %506
    %v508 = vsel %vm78, %v77, %v507
    %509 = vrot.lane.b32.xlu0 %v53, 126
    %v510 = vpop.permute.xlu0 %509
    %v511 = vsel %vm106, %v105, %v510
    %512 = vrot.lane.b32.xlu0 %v53, 125
    %v513 = vpop.permute.xlu0 %512
    %v514 = vsel %vm134, %v133, %v513
    %515 = vrot.lane.b32.xlu0 %v47, 109
    %v516 = vpop.permute.xlu0 %515
    %517 = vrot.lane.b32.xlu0 %v48, 109
    %v518 = vpop.permute.xlu0 %517
    %519 = vrot.lane.b32.xlu0 %v49, 109
    %v520 = vpop.permute.xlu0 %519
    %521 = vrot.lane.b32.xlu0 %v50, 109
    %v522 = vpop.permute.xlu0 %521
    %523 = vrot.lane.b32.xlu0 %v51, 109
    %v524 = vpop.permute.xlu0 %523
    %525 = vrot.lane.b32.xlu0 %v52, 109
    %v526 = vpop.permute.xlu0 %525
    %527 = vrot.lane.b32.xlu0 %v53, 109
    %v528 = vpop.permute.xlu0 %527
    %vm529 = vcmask 891904
    %v530 = vsel %vm529, %v516, %v518
    %v531 = vsel %vm529, %v518, %v520
    %v532 = vsel %vm529, %v520, %v522
    %v533 = vsel %vm529, %v522, %v524
    %v534 = vsel %vm529, %v524, %v526
    %v535 = vsel %vm529, %v526, %v528
    %536 = vrot.lane.b32.xlu0 %v47, 67
    %v537 = vpop.permute.xlu0 %536
    %538 = vrot.lane.b32.xlu0 %v48, 67
    %v539 = vpop.permute.xlu0 %538
    %540 = vrot.lane.b32.xlu0 %v49, 67
    %v541 = vpop.permute.xlu0 %540
    %542 = vrot.lane.b32.xlu0 %v50, 67
    %v543 = vpop.permute.xlu0 %542
    %544 = vrot.lane.b32.xlu0 %v51, 67
    %v545 = vpop.permute.xlu0 %544
    %546 = vrot.lane.b32.xlu0 %v52, 67
    %v547 = vpop.permute.xlu0 %546
    %548 = vrot.lane.b32.xlu0 %v53, 67
    %v549 = vpop.permute.xlu0 %548
    %550 = vrot.lane.b32.xlu0 %v80, 67
    %v551 = vpop.permute.xlu0 %550
    %552 = vrot.lane.b32.xlu0 %v81, 67
    %v553 = vpop.permute.xlu0 %552
    %554 = vrot.lane.b32.xlu0 %v82, 67
    %v555 = vpop.permute.xlu0 %554
    %556 = vrot.lane.b32.xlu0 %v83, 67
    %v557 = vpop.permute.xlu0 %556
    %558 = vrot.lane.b32.xlu0 %v84, 67
    %v559 = vpop.permute.xlu0 %558
    %560 = vrot.lane.b32.xlu0 %v508, 67
    %v561 = vpop.permute.xlu0 %560
    %562 = vrot.lane.b32.xlu0 %v507, 67
    %v563 = vpop.permute.xlu0 %562
    %564 = vrot.lane.b32.xlu0 %v108, 67
    %v565 = vpop.permute.xlu0 %564
    %566 = vrot.lane.b32.xlu0 %v109, 67
    %v567 = vpop.permute.xlu0 %566
    %568 = vrot.lane.b32.xlu0 %v110, 67
    %v569 = vpop.permute.xlu0 %568
    %570 = vrot.lane.b32.xlu0 %v111, 67
    %v571 = vpop.permute.xlu0 %570
    %572 = vrot.lane.b32.xlu0 %v112, 67
    %v573 = vpop.permute.xlu0 %572
    %574 = vrot.lane.b32.xlu0 %v511, 67
    %v575 = vpop.permute.xlu0 %574
    %576 = vrot.lane.b32.xlu0 %v510, 67
    %v577 = vpop.permute.xlu0 %576
    %578 = vrot.lane.b32.xlu0 %v136, 67
    %v579 = vpop.permute.xlu0 %578
    %580 = vrot.lane.b32.xlu0 %v137, 67
    %v581 = vpop.permute.xlu0 %580
    %582 = vrot.lane.b32.xlu0 %v138, 67
    %v583 = vpop.permute.xlu0 %582
    %584 = vrot.lane.b32.xlu0 %v139, 67
    %v585 = vpop.permute.xlu0 %584
    %586 = vrot.lane.b32.xlu0 %v140, 67
    %v587 = vpop.permute.xlu0 %586
    %588 = vrot.lane.b32.xlu0 %v514, 67
    %v589 = vpop.permute.xlu0 %588
    %590 = vrot.lane.b32.xlu0 %v513, 67
    %v591 = vpop.permute.xlu0 %590
    %592 = vrot.lane.b32.xlu0 %v530, 67
    %v593 = vpop.permute.xlu0 %592
    %594 = vrot.lane.b32.xlu0 %v531, 67
    %v595 = vpop.permute.xlu0 %594
    %596 = vrot.lane.b32.xlu0 %v532, 67
    %v597 = vpop.permute.xlu0 %596
    %598 = vrot.lane.b32.xlu0 %v533, 67
    %v599 = vpop.permute.xlu0 %598
    %600 = vrot.lane.b32.xlu0 %v534, 67
    %v601 = vpop.permute.xlu0 %600
    %602 = vrot.lane.b32.xlu0 %v535, 67
    %v603 = vpop.permute.xlu0 %602
    %604 = vrot.lane.b32.xlu0 %v528, 67
    %v605 = vpop.permute.xlu0 %604
    %606 = vrot.lane.b32.xlu0 %v195, 67
    %v607 = vpop.permute.xlu0 %606
    %608 = vrot.lane.b32.xlu0 %v196, 67
    %v609 = vpop.permute.xlu0 %608
    %610 = vrot.lane.b32.xlu0 %v197, 67
    %v611 = vpop.permute.xlu0 %610
    %612 = vrot.lane.b32.xlu0 %v198, 67
    %v613 = vpop.permute.xlu0 %612
    %614 = vrot.lane.b32.xlu0 %v199, 67
    %v615 = vpop.permute.xlu0 %614
    %616 = vrot.lane.b32.xlu0 %v200, 67
    %v617 = vpop.permute.xlu0 %616
    %618 = vrot.lane.b32.xlu0 %v192, 67
    %v619 = vpop.permute.xlu0 %618
    %620 = vrot.lane.b32.xlu0 %v226, 67
    %v621 = vpop.permute.xlu0 %620
    %622 = vrot.lane.b32.xlu0 %v227, 67
    %v623 = vpop.permute.xlu0 %622
    %624 = vrot.lane.b32.xlu0 %v228, 67
    %v625 = vpop.permute.xlu0 %624
    %626 = vrot.lane.b32.xlu0 %v229, 67
    %v627 = vpop.permute.xlu0 %626
    %628 = vrot.lane.b32.xlu0 %v230, 67
    %v629 = vpop.permute.xlu0 %628
    %630 = vrot.lane.b32.xlu0 %v231, 67
    %v631 = vpop.permute.xlu0 %630
    %632 = vrot.lane.b32.xlu0 %v223, 67
    %v633 = vpop.permute.xlu0 %632
    %634 = vrot.lane.b32.xlu0 %v257, 67
    %v635 = vpop.permute.xlu0 %634
    %636 = vrot.lane.b32.xlu0 %v258, 67
    %v637 = vpop.permute.xlu0 %636
    %638 = vrot.lane.b32.xlu0 %v259, 67
    %v639 = vpop.permute.xlu0 %638
    %640 = vrot.lane.b32.xlu0 %v260, 67
    %v641 = vpop.permute.xlu0 %640
    %642 = vrot.lane.b32.xlu0 %v261, 67
    %v643 = vpop.permute.xlu0 %642
    %644 = vrot.lane.b32.xlu0 %v262, 67
    %v645 = vpop.permute.xlu0 %644
    %646 = vrot.lane.b32.xlu0 %v254, 67
    %v647 = vpop.permute.xlu0 %646
    %648 = vrot.lane.b32.xlu0 %v288, 67
    %v649 = vpop.permute.xlu0 %648
    %650 = vrot.lane.b32.xlu0 %v289, 67
    %v651 = vpop.permute.xlu0 %650
    %652 = vrot.lane.b32.xlu0 %v290, 67
    %v653 = vpop.permute.xlu0 %652
    %654 = vrot.lane.b32.xlu0 %v291, 67
    %v655 = vpop.permute.xlu0 %654
    %656 = vrot.lane.b32.xlu0 %v292, 67
    %v657 = vpop.permute.xlu0 %656
    %658 = vrot.lane.b32.xlu0 %v293, 67
    %v659 = vpop.permute.xlu0 %658
    %660 = vrot.lane.b32.xlu0 %v285, 67
    %v661 = vpop.permute.xlu0 %660
    %vm662 = vcmask 547840
    %v663 = vsel %vm662, %v537, %v539
    %v664 = vsel %vm662, %v539, %v541
    %v665 = vsel %vm662, %v541, %v543
    %v666 = vsel %vm662, %v543, %v545
    %v667 = vsel %vm662, %v545, %v547
    %v668 = vsel %vm662, %v547, %v549
    %v669 = vsel %vm662, %v551, %v553
    %v670 = vsel %vm662, %v553, %v555
    %v671 = vsel %vm662, %v555, %v557
    %v672 = vsel %vm662, %v557, %v559
    %v673 = vsel %vm662, %v559, %v561
    %v674 = vsel %vm662, %v561, %v563
    %v675 = vsel %vm662, %v565, %v567
    %v676 = vsel %vm662, %v567, %v569
    %v677 = vsel %vm662, %v569, %v571
    %v678 = vsel %vm662, %v571, %v573
    %v679 = vsel %vm662, %v573, %v575
    %v680 = vsel %vm662, %v575, %v577
    %v681 = vsel %vm662, %v579, %v581
    %v682 = vsel %vm662, %v581, %v583
    %v683 = vsel %vm662, %v583, %v585
    %v684 = vsel %vm662, %v585, %v587
    %v685 = vsel %vm662, %v587, %v589
    %v686 = vsel %vm662, %v589, %v591
    %v687 = vsel %vm662, %v593, %v595
    %v688 = vsel %vm662, %v595, %v597
    %v689 = vsel %vm662, %v597, %v599
    %v690 = vsel %vm662, %v599, %v601
    %v691 = vsel %vm662, %v601, %v603
    %v692 = vsel %vm662, %v603, %v605
    %v693 = vsel %vm662, %v607, %v609
    %v694 = vsel %vm662, %v609, %v611
    %v695 = vsel %vm662, %v611, %v613
    %v696 = vsel %vm662, %v613, %v615
    %v697 = vsel %vm662, %v615, %v617
    %v698 = vsel %vm662, %v617, %v619
    %v699 = vsel %vm662, %v621, %v623
    %v700 = vsel %vm662, %v623, %v625
    %v701 = vsel %vm662, %v625, %v627
    %v702 = vsel %vm662, %v627, %v629
    %v703 = vsel %vm662, %v629, %v631
    %v704 = vsel %vm662, %v631, %v633
    %v705 = vsel %vm662, %v635, %v637
    %v706 = vsel %vm662, %v637, %v639
    %v707 = vsel %vm662, %v639, %v641
    %v708 = vsel %vm662, %v641, %v643
    %v709 = vsel %vm662, %v643, %v645
    %v710 = vsel %vm662, %v645, %v647
    %v711 = vsel %vm662, %v649, %v651
    %v712 = vsel %vm662, %v651, %v653
    %v713 = vsel %vm662, %v653, %v655
    %v714 = vsel %vm662, %v655, %v657
    %v715 = vsel %vm662, %v657, %v659
    %v716 = vsel %vm662, %v659, %v661
    %v780 = vpack.c.bf16 %v79, %v46
    %v781 = vpack.c.bf16 %v80, %v47
    %v782 = vpack.c.bf16 %v81, %v48
    %v783 = vpack.c.bf16 %v82, %v49
    %v784 = vpack.c.bf16 %v83, %v50
    %v785 = vpack.c.bf16 %v84, %v51
    %v786 = vpack.c.bf16 %v77, %v52
    %v787 = vpack.c.bf16 %v135, %v107
    %v788 = vpack.c.bf16 %v136, %v108
    %v789 = vpack.c.bf16 %v137, %v109
    %v790 = vpack.c.bf16 %v138, %v110
    %v791 = vpack.c.bf16 %v139, %v111
    %v792 = vpack.c.bf16 %v140, %v112
    %v793 = vpack.c.bf16 %v133, %v105
    %v794 = vpack.c.bf16 %v194, %v163
    %v795 = vpack.c.bf16 %v195, %v164
    %v796 = vpack.c.bf16 %v196, %v165
    %v797 = vpack.c.bf16 %v197, %v166
    %v798 = vpack.c.bf16 %v198, %v167
    %v799 = vpack.c.bf16 %v199, %v168
    %v800 = vpack.c.bf16 %v200, %v161
    %v801 = vpack.c.bf16 %v256, %v225
    %v802 = vpack.c.bf16 %v257, %v226
    %v803 = vpack.c.bf16 %v258, %v227
    %v804 = vpack.c.bf16 %v259, %v228
    %v805 = vpack.c.bf16 %v260, %v229
    %v806 = vpack.c.bf16 %v261, %v230
    %v807 = vpack.c.bf16 %v262, %v231
    %v808 = vpack.c.bf16 %v318, %v287
    %v809 = vpack.c.bf16 %v319, %v288
    %v810 = vpack.c.bf16 %v320, %v289
    %v811 = vpack.c.bf16 %v321, %v290
    %v812 = vpack.c.bf16 %v322, %v291
    %v813 = vpack.c.bf16 %v323, %v292
    %v814 = vpack.c.bf16 %v324, %v293
    %v815 = vpack.c.bf16 %v380, %v349
    %v816 = vpack.c.bf16 %v381, %v350
    %v817 = vpack.c.bf16 %v382, %v351
    %v818 = vpack.c.bf16 %v383, %v352
    %v819 = vpack.c.bf16 %v384, %v353
    %v820 = vpack.c.bf16 %v385, %v354
    %v821 = vpack.c.bf16 %v386, %v355
    %v822 = vpack.c.bf16 %v423, %v395
    %v823 = vpack.c.bf16 %v437, %v409
    %v824 = vpack.c.bf16 %v438, %v410
    %v825 = vpack.c.bf16 %v439, %v411
    %v826 = vpack.c.bf16 %v440, %v412
    %v827 = vpack.c.bf16 %v441, %v413
    %v828 = vpack.c.bf16 %v442, %v414
    %v829 = vpack.c.bf16 %v479, %v451
    %v830 = vpack.c.bf16 %v493, %v465
    %v831 = vpack.c.bf16 %v494, %v466
    %v832 = vpack.c.bf16 %v495, %v467
    %v833 = vpack.c.bf16 %v496, %v468
    %v834 = vpack.c.bf16 %v497, %v469
    %v835 = vpack.c.bf16 %v498, %v470
    %v836 = vpack.c.bf16 %v551, %v537
    %v837 = vpack.c.bf16 %v669, %v663
    %v838 = vpack.c.bf16 %v670, %v664
    %v839 = vpack.c.bf16 %v671, %v665
    %v840 = vpack.c.bf16 %v672, %v666
    %v841 = vpack.c.bf16 %v673, %v667
    %v842 = vpack.c.bf16 %v674, %v668
    %v843 = vpack.c.bf16 %v579, %v565
    %v844 = vpack.c.bf16 %v681, %v675
    %v845 = vpack.c.bf16 %v682, %v676
    %v846 = vpack.c.bf16 %v683, %v677
    %v847 = vpack.c.bf16 %v684, %v678
    %v848 = vpack.c.bf16 %v685, %v679
    %v849 = vpack.c.bf16 %v686, %v680
    %v850 = vpack.c.bf16 %v607, %v593
    %v851 = vpack.c.bf16 %v693, %v687
    %v852 = vpack.c.bf16 %v694, %v688
    %v853 = vpack.c.bf16 %v695, %v689
    %v854 = vpack.c.bf16 %v696, %v690
    %v855 = vpack.c.bf16 %v697, %v691
    %v856 = vpack.c.bf16 %v698, %v692
    %v857 = vpack.c.bf16 %v635, %v621
    %v858 = vpack.c.bf16 %v705, %v699
    %v859 = vpack.c.bf16 %v706, %v700
    %v860 = vpack.c.bf16 %v707, %v701
    %v861 = vpack.c.bf16 %v708, %v702
    %v862 = vpack.c.bf16 %v709, %v703
    %v863 = vpack.c.bf16 %v710, %v704
    %v864 = vpack.c.bf16 %v649, %v649
    %v865 = vpack.c.bf16 %v711, %v711
    %v866 = vpack.c.bf16 %v712, %v712
    %v867 = vpack.c.bf16 %v713, %v713
    %v868 = vpack.c.bf16 %v714, %v714
    %v869 = vpack.c.bf16 %v715, %v715
    %v870 = vpack.c.bf16 %v716, %v716
    %v871 = vld [vmem:[%s1] sm:$0xff]
    %v872 = vld [vmem:[%s1 + $0x8] sm:$0xff]
    %v873 = vld [vmem:[%s1 + $0x10] sm:$0xff]
    %v874 = vld [vmem:[%s1 + $0x18] sm:$0xff]
    %v875 = vld [vmem:[%s2] sm:$0xff]
    %v876 = vld [vmem:[%s2 + $0x8] sm:$0xff]
    %v877 = vld [vmem:[%s2 + $0x10] sm:$0xff]
    %v878 = vld [vmem:[%s2 + $0x18] sm:$0xff]
    %880 = vset.pattern.permute.xlu0 0
    %881 = vperm.xlu0 %880, %v875
    %v882 = vpop.permute.xlu0 %881
    %885 = vset.pattern.permute.xlu0 0
    %886 = vperm.xlu0 %885, %v876
    %v887 = vpop.permute.xlu0 %886
    %890 = vset.pattern.permute.xlu0 0
    %891 = vperm.xlu0 %890, %v877
    %v892 = vpop.permute.xlu0 %891
    %895 = vset.pattern.permute.xlu0 0
    %896 = vperm.xlu0 %895, %v878
    %v897 = vpop.permute.xlu0 %896
    %v903 = vunpack.c.l.b16 %v871
    %v904 = vunpack.c.h.b16 %v871
    %v905 = vunpack.c.l.b16 %v872
    %v906 = vunpack.c.h.b16 %v872
    %v907 = vunpack.c.l.b16 %v873
    %v908 = vunpack.c.h.b16 %v873
    %v909 = vunpack.c.l.b16 %v874
    %v910 = vunpack.c.h.b16 %v874
    %v911 = vpack.c.b16 %v905, %v903
    %v912 = vpack.c.b16 %v906, %v904
    %v913 = vpack.c.b16 %v909, %v907
    %v914 = vpack.c.b16 %v910, %v908
    %1008 = vrot.lane.b32.xlu0 %v780, 42
    %v1009 = vpop.permute.xlu0 %1008
    %1010 = vrot.lane.b32.xlu0 %v781, 42
    %v1011 = vpop.permute.xlu0 %1010
    %1012 = vrot.lane.b32.xlu0 %v782, 42
    %v1013 = vpop.permute.xlu0 %1012
    %1014 = vrot.lane.b32.xlu0 %v783, 42
    %v1015 = vpop.permute.xlu0 %1014
    %1016 = vrot.lane.b32.xlu0 %v784, 42
    %v1017 = vpop.permute.xlu0 %1016
    %1018 = vrot.lane.b32.xlu0 %v785, 42
    %v1019 = vpop.permute.xlu0 %1018
    %1020 = vrot.lane.b32.xlu0 %v786, 42
    %v1021 = vpop.permute.xlu0 %1020
    %1022 = vrot.lane.b32.xlu0 %v787, 42
    %v1023 = vpop.permute.xlu0 %1022
    %1024 = vrot.lane.b32.xlu0 %v788, 42
    %v1025 = vpop.permute.xlu0 %1024
    %1026 = vrot.lane.b32.xlu0 %v789, 42
    %v1027 = vpop.permute.xlu0 %1026
    %1028 = vrot.lane.b32.xlu0 %v790, 42
    %v1029 = vpop.permute.xlu0 %1028
    %1030 = vrot.lane.b32.xlu0 %v791, 42
    %v1031 = vpop.permute.xlu0 %1030
    %1032 = vrot.lane.b32.xlu0 %v792, 42
    %v1033 = vpop.permute.xlu0 %1032
    %1034 = vrot.lane.b32.xlu0 %v793, 42
    %v1035 = vpop.permute.xlu0 %1034
    %1036 = vrot.lane.b32.xlu0 %v794, 42
    %v1037 = vpop.permute.xlu0 %1036
    %1038 = vrot.lane.b32.xlu0 %v795, 42
    %v1039 = vpop.permute.xlu0 %1038
    %1040 = vrot.lane.b32.xlu0 %v796, 42
    %v1041 = vpop.permute.xlu0 %1040
    %1042 = vrot.lane.b32.xlu0 %v797, 42
    %v1043 = vpop.permute.xlu0 %1042
    %1044 = vrot.lane.b32.xlu0 %v798, 42
    %v1045 = vpop.permute.xlu0 %1044
    %1046 = vrot.lane.b32.xlu0 %v799, 42
    %v1047 = vpop.permute.xlu0 %1046
    %1048 = vrot.lane.b32.xlu0 %v800, 42
    %v1049 = vpop.permute.xlu0 %1048
    %1050 = vrot.lane.b32.xlu0 %v801, 42
    %v1051 = vpop.permute.xlu0 %1050
    %1052 = vrot.lane.b32.xlu0 %v802, 42
    %v1053 = vpop.permute.xlu0 %1052
    %1054 = vrot.lane.b32.xlu0 %v803, 42
    %v1055 = vpop.permute.xlu0 %1054
    %1056 = vrot.lane.b32.xlu0 %v804, 42
    %v1057 = vpop.permute.xlu0 %1056
    %1058 = vrot.lane.b32.xlu0 %v805, 42
    %v1059 = vpop.permute.xlu0 %1058
    %1060 = vrot.lane.b32.xlu0 %v806, 42
    %v1061 = vpop.permute.xlu0 %1060
    %1062 = vrot.lane.b32.xlu0 %v807, 42
    %v1063 = vpop.permute.xlu0 %1062
    %1064 = vrot.lane.b32.xlu0 %v808, 42
    %v1065 = vpop.permute.xlu0 %1064
    %1066 = vrot.lane.b32.xlu0 %v809, 42
    %v1067 = vpop.permute.xlu0 %1066
    %1068 = vrot.lane.b32.xlu0 %v810, 42
    %v1069 = vpop.permute.xlu0 %1068
    %1070 = vrot.lane.b32.xlu0 %v811, 42
    %v1071 = vpop.permute.xlu0 %1070
    %1072 = vrot.lane.b32.xlu0 %v812, 42
    %v1073 = vpop.permute.xlu0 %1072
    %1074 = vrot.lane.b32.xlu0 %v813, 42
    %v1075 = vpop.permute.xlu0 %1074
    %1076 = vrot.lane.b32.xlu0 %v814, 42
    %v1077 = vpop.permute.xlu0 %1076
    %1078 = vrot.lane.b32.xlu0 %v815, 42
    %v1079 = vpop.permute.xlu0 %1078
    %1080 = vrot.lane.b32.xlu0 %v816, 42
    %v1081 = vpop.permute.xlu0 %1080
    %1082 = vrot.lane.b32.xlu0 %v817, 42
    %v1083 = vpop.permute.xlu0 %1082
    %1084 = vrot.lane.b32.xlu0 %v818, 42
    %v1085 = vpop.permute.xlu0 %1084
    %1086 = vrot.lane.b32.xlu0 %v819, 42
    %v1087 = vpop.permute.xlu0 %1086
    %1088 = vrot.lane.b32.xlu0 %v820, 42
    %v1089 = vpop.permute.xlu0 %1088
    %1090 = vrot.lane.b32.xlu0 %v821, 42
    %v1091 = vpop.permute.xlu0 %1090
    %1092 = vrot.lane.b32.xlu0 %v822, 42
    %v1093 = vpop.permute.xlu0 %1092
    %1094 = vrot.lane.b32.xlu0 %v823, 42
    %v1095 = vpop.permute.xlu0 %1094
    %1096 = vrot.lane.b32.xlu0 %v824, 42
    %v1097 = vpop.permute.xlu0 %1096
    %1098 = vrot.lane.b32.xlu0 %v825, 42
    %v1099 = vpop.permute.xlu0 %1098
    %1100 = vrot.lane.b32.xlu0 %v826, 42
    %v1101 = vpop.permute.xlu0 %1100
    %1102 = vrot.lane.b32.xlu0 %v827, 42
    %v1103 = vpop.permute.xlu0 %1102
    %1104 = vrot.lane.b32.xlu0 %v828, 42
    %v1105 = vpop.permute.xlu0 %1104
    %1106 = vrot.lane.b32.xlu0 %v829, 42
    %v1107 = vpop.permute.xlu0 %1106
    %1108 = vrot.lane.b32.xlu0 %v830, 42
    %v1109 = vpop.permute.xlu0 %1108
    %1110 = vrot.lane.b32.xlu0 %v831, 42
    %v1111 = vpop.permute.xlu0 %1110
    %1112 = vrot.lane.b32.xlu0 %v832, 42
    %v1113 = vpop.permute.xlu0 %1112
    %1114 = vrot.lane.b32.xlu0 %v833, 42
    %v1115 = vpop.permute.xlu0 %1114
    %1116 = vrot.lane.b32.xlu0 %v834, 42
    %v1117 = vpop.permute.xlu0 %1116
    %1118 = vrot.lane.b32.xlu0 %v835, 42
    %v1119 = vpop.permute.xlu0 %1118
    %1120 = vrot.lane.b32.xlu0 %v836, 42
    %v1121 = vpop.permute.xlu0 %1120
    %1122 = vrot.lane.b32.xlu0 %v837, 42
    %v1123 = vpop.permute.xlu0 %1122
    %1124 = vrot.lane.b32.xlu0 %v838, 42
    %v1125 = vpop.permute.xlu0 %1124
    %1126 = vrot.lane.b32.xlu0 %v839, 42
    %v1127 = vpop.permute.xlu0 %1126
    %1128 = vrot.lane.b32.xlu0 %v840, 42
    %v1129 = vpop.permute.xlu0 %1128
    %1130 = vrot.lane.b32.xlu0 %v841, 42
    %v1131 = vpop.permute.xlu0 %1130
    %1132 = vrot.lane.b32.xlu0 %v842, 42
    %v1133 = vpop.permute.xlu0 %1132
    %1134 = vrot.lane.b32.xlu0 %v843, 42
    %v1135 = vpop.permute.xlu0 %1134
    %1136 = vrot.lane.b32.xlu0 %v844, 42
    %v1137 = vpop.permute.xlu0 %1136
    %1138 = vrot.lane.b32.xlu0 %v845, 42
    %v1139 = vpop.permute.xlu0 %1138
    %1140 = vrot.lane.b32.xlu0 %v846, 42
    %v1141 = vpop.permute.xlu0 %1140
    %1142 = vrot.lane.b32.xlu0 %v847, 42
    %v1143 = vpop.permute.xlu0 %1142
    %1144 = vrot.lane.b32.xlu0 %v848, 42
    %v1145 = vpop.permute.xlu0 %1144
    %1146 = vrot.lane.b32.xlu0 %v849, 42
    %v1147 = vpop.permute.xlu0 %1146
    %1148 = vrot.lane.b32.xlu0 %v850, 42
    %v1149 = vpop.permute.xlu0 %1148
    %1150 = vrot.lane.b32.xlu0 %v851, 42
    %v1151 = vpop.permute.xlu0 %1150
    %1152 = vrot.lane.b32.xlu0 %v852, 42
    %v1153 = vpop.permute.xlu0 %1152
    %1154 = vrot.lane.b32.xlu0 %v853, 42
    %v1155 = vpop.permute.xlu0 %1154
    %1156 = vrot.lane.b32.xlu0 %v854, 42
    %v1157 = vpop.permute.xlu0 %1156
    %1158 = vrot.lane.b32.xlu0 %v855, 42
    %v1159 = vpop.permute.xlu0 %1158
    %1160 = vrot.lane.b32.xlu0 %v856, 42
    %v1161 = vpop.permute.xlu0 %1160
    %1162 = vrot.lane.b32.xlu0 %v857, 42
    %v1163 = vpop.permute.xlu0 %1162
    %1164 = vrot.lane.b32.xlu0 %v858, 42
    %v1165 = vpop.permute.xlu0 %1164
    %1166 = vrot.lane.b32.xlu0 %v859, 42
    %v1167 = vpop.permute.xlu0 %1166
    %1168 = vrot.lane.b32.xlu0 %v860, 42
    %v1169 = vpop.permute.xlu0 %1168
    %1170 = vrot.lane.b32.xlu0 %v861, 42
    %v1171 = vpop.permute.xlu0 %1170
    %1172 = vrot.lane.b32.xlu0 %v862, 42
    %v1173 = vpop.permute.xlu0 %1172
    %1174 = vrot.lane.b32.xlu0 %v863, 42
    %v1175 = vpop.permute.xlu0 %1174
    %1176 = vrot.lane.b32.xlu0 %v864, 42
    %v1177 = vpop.permute.xlu0 %1176
    %1178 = vrot.lane.b32.xlu0 %v865, 42
    %v1179 = vpop.permute.xlu0 %1178
    %1180 = vrot.lane.b32.xlu0 %v866, 42
    %v1181 = vpop.permute.xlu0 %1180
    %1182 = vrot.lane.b32.xlu0 %v867, 42
    %v1183 = vpop.permute.xlu0 %1182
    %1184 = vrot.lane.b32.xlu0 %v868, 42
    %v1185 = vpop.permute.xlu0 %1184
    %1186 = vrot.lane.b32.xlu0 %v869, 42
    %v1187 = vpop.permute.xlu0 %1186
    %1188 = vrot.lane.b32.xlu0 %v870, 42
    %v1189 = vpop.permute.xlu0 %1188
    %vm1190 = vcmask 343040
    %v1191 = vsel %vm1190, %v1009, %v1011
    %v1192 = vsel %vm1190, %v1011, %v1013
    %v1193 = vsel %vm1190, %v1013, %v1015
    %v1194 = vsel %vm1190, %v1015, %v1017
    %v1195 = vsel %vm1190, %v1017, %v1019
    %v1196 = vsel %vm1190, %v1019, %v1021
    %v1197 = vsel %vm1190, %v1023, %v1025
    %v1198 = vsel %vm1190, %v1025, %v1027
    %v1199 = vsel %vm1190, %v1027, %v1029
    %v1200 = vsel %vm1190, %v1029, %v1031
    %v1201 = vsel %vm1190, %v1031, %v1033
    %v1202 = vsel %vm1190, %v1033, %v1035
    %v1203 = vsel %vm1190, %v1037, %v1039
    %v1204 = vsel %vm1190, %v1039, %v1041
    %v1205 = vsel %vm1190, %v1041, %v1043
    %v1206 = vsel %vm1190, %v1043, %v1045
    %v1207 = vsel %vm1190, %v1045, %v1047
    %v1208 = vsel %vm1190, %v1047, %v1049
    %v1209 = vsel %vm1190, %v1051, %v1053
    %v1210 = vsel %vm1190, %v1053, %v1055
    %v1211 = vsel %vm1190, %v1055, %v1057
    %v1212 = vsel %vm1190, %v1057, %v1059
    %v1213 = vsel %vm1190, %v1059, %v1061
    %v1214 = vsel %vm1190, %v1061, %v1063
    %v1215 = vsel %vm1190, %v1065, %v1067
    %v1216 = vsel %vm1190, %v1067, %v1069
    %v1217 = vsel %vm1190, %v1069, %v1071
    %v1218 = vsel %vm1190, %v1071, %v1073
    %v1219 = vsel %vm1190, %v1073, %v1075
    %v1220 = vsel %vm1190, %v1075, %v1077
    %v1221 = vsel %vm1190, %v1079, %v1081
    %v1222 = vsel %vm1190, %v1081, %v1083
    %v1223 = vsel %vm1190, %v1083, %v1085
    %v1224 = vsel %vm1190, %v1085, %v1087
    %v1225 = vsel %vm1190, %v1087, %v1089
    %v1226 = vsel %vm1190, %v1089, %v1091
    %v1227 = vsel %vm1190, %v1093, %v1095
    %v1228 = vsel %vm1190, %v1095, %v1097
    %v1229 = vsel %vm1190, %v1097, %v1099
    %v1230 = vsel %vm1190, %v1099, %v1101
    %v1231 = vsel %vm1190, %v1101, %v1103
    %v1232 = vsel %vm1190, %v1103, %v1105
    %v1233 = vsel %vm1190, %v1107, %v1109
    %v1234 = vsel %vm1190, %v1109, %v1111
    %v1235 = vsel %vm1190, %v1111, %v1113
    %v1236 = vsel %vm1190, %v1113, %v1115
    %v1237 = vsel %vm1190, %v1115, %v1117
    %v1238 = vsel %vm1190, %v1117, %v1119
    %v1239 = vsel %vm1190, %v1121, %v1123
    %v1240 = vsel %vm1190, %v1123, %v1125
    %v1241 = vsel %vm1190, %v1125, %v1127
    %v1242 = vsel %vm1190, %v1127, %v1129
    %v1243 = vsel %vm1190, %v1129, %v1131
    %v1244 = vsel %vm1190, %v1131, %v1133
    %v1245 = vsel %vm1190, %v1135, %v1137
    %v1246 = vsel %vm1190, %v1137, %v1139
    %v1247 = vsel %vm1190, %v1139, %v1141
    %v1248 = vsel %vm1190, %v1141, %v1143
    %v1249 = vsel %vm1190, %v1143, %v1145
    %v1250 = vsel %vm1190, %v1145, %v1147
    %v1251 = vsel %vm1190, %v1149, %v1151
    %v1252 = vsel %vm1190, %v1151, %v1153
    %v1253 = vsel %vm1190, %v1153, %v1155
    %v1254 = vsel %vm1190, %v1155, %v1157
    %v1255 = vsel %vm1190, %v1157, %v1159
    %v1256 = vsel %vm1190, %v1159, %v1161
    %v1257 = vsel %vm1190, %v1163, %v1165
    %v1258 = vsel %vm1190, %v1165, %v1167
    %v1259 = vsel %vm1190, %v1167, %v1169
    %v1260 = vsel %vm1190, %v1169, %v1171
    %v1261 = vsel %vm1190, %v1171, %v1173
    %v1262 = vsel %vm1190, %v1173, %v1175
    %v1263 = vsel %vm1190, %v1177, %v1179
    %v1264 = vsel %vm1190, %v1179, %v1181
    %v1265 = vsel %vm1190, %v1181, %v1183
    %v1266 = vsel %vm1190, %v1183, %v1185
    %v1267 = vsel %vm1190, %v1185, %v1187
    %v1268 = vsel %vm1190, %v1187, %v1189
    %vm1353 = vcmask 588800
    %v1355 = vsel %vm1353, %v912, 0
    %v1358 = vsel %vm1353, %v914, 0
    %vm1360 = vcmask 1043456
    %v1362 = vsel %vm1360, %v1263, 0
    %v1365 = vsel %vm1360, %v1264, 0
    %v1368 = vsel %vm1360, %v1265, 0
    %v1371 = vsel %vm1360, %v1266, 0
    %v1374 = vsel %vm1360, %v1267, 0
    %v1377 = vsel %vm1360, %v1268, 0
    %v1380 = vsel %vm1360, %v1189, 0
    %1382 = vmatprep.subr.bf16.mxu0 %v1234
    %1383 = vmatpush1.bf16.msra.mxu0 %v1233
    %1384 = vmatprep.subr.bf16.mxu0 %v1228
    %1385 = vmatpush1.bf16.msra.mxu0 %v1227
    %1386 = vmatprep.subr.bf16.mxu0 %v1222
    %1387 = vmatpush1.bf16.msra.mxu0 %v1221
    %1388 = vmatprep.subr.bf16.mxu0 %v1216
    %1389 = vmatpush1.bf16.msra.mxu0 %v1215
    %1390 = vmatprep.subr.bf16.mxu0 %v1210
    %1391 = vmatpush1.bf16.msra.mxu0 %v1209
    %1392 = vmatprep.subr.bf16.mxu0 %v1204
    %1393 = vmatpush1.bf16.msra.mxu0 %v1203
    %1394 = vmatprep.subr.bf16.mxu0 %v1198
    %1395 = vmatpush1.bf16.msra.mxu0 %v1197
    %1396 = vmatprep.subr.bf16.mxu0 %v1192
    %1397 = vmatpush1.bf16.msra.mxu0 %v1191
    %1398 = vmatprep.subr.bf16.mxu0 0
    %1399 = vmatpush2.bf16.msra.mxu0 0
    %1400 = vmatprep.subr.bf16.mxu0 0
    %1401 = vmatpush2.bf16.msra.mxu0 0
    %1402 = vmatprep.subr.bf16.mxu0 0
    %1403 = vmatpush2.bf16.msra.mxu0 0
    %1404 = vmatprep.subr.bf16.mxu0 %v1365
    %1405 = vmatpush2.bf16.msra.mxu0 %v1362
    %1406 = vmatprep.subr.bf16.mxu0 %v1258
    %1407 = vmatpush2.bf16.msra.mxu0 %v1257
    %1408 = vmatprep.subr.bf16.mxu0 %v1252
    %1409 = vmatpush2.bf16.msra.mxu0 %v1251
    %1410 = vmatprep.subr.bf16.mxu0 %v1246
    %1411 = vmatpush2.bf16.msra.mxu0 %v1245
    %1412 = vmatprep.subr.bf16.mxu0 %v1240
    %1413 = vmatpush2.bf16.msra.mxu0 %v1239
    %1414 = vmatprep.mubr.bf16.mxu0 %v1355
    %1415 = vmatmul.mubr.bf16.gmra.mxu0 %v911
    %v1416 = vpop.f32.mrf.mxu0
    %v1417 = vadd.f32 %v882, %v1416
    %v1418 = vpop.f32.mrf.mxu0
    %v1419 = vadd.f32 %v882, %v1418
    %v1420 = vpop.f32.mrf.mxu0
    %v1421 = vadd.f32 %v887, %v1420
    %v1422 = vpop.f32.mrf.mxu0
    %v1423 = vadd.f32 %v887, %v1422
    %1424 = vmatprep.mubr.bf16.mxu0 %v1358
    %1425 = vmatmul.mubr.bf16.gmra.mxu0 %v913
    %v1426 = vpop.f32.mrf.mxu0
    %v1427 = vadd.f32 %v892, %v1426
    %v1428 = vpop.f32.mrf.mxu0
    %v1429 = vadd.f32 %v892, %v1428
    %v1430 = vpop.f32.mrf.mxu0
    %v1431 = vadd.f32 %v897, %v1430
    %v1432 = vpop.f32.mrf.mxu0
    %v1433 = vadd.f32 %v897, %v1432
    %1434 = vdwg.mxu0
    %1435 = vmatprep.subr.bf16.mxu0 %v1236
    %1436 = vmatpush1.bf16.msra.mxu0 %v1235
    %1437 = vmatprep.subr.bf16.mxu0 %v1230
    %1438 = vmatpush1.bf16.msra.mxu0 %v1229
    %1439 = vmatprep.subr.bf16.mxu0 %v1224
    %1440 = vmatpush1.bf16.msra.mxu0 %v1223
    %1441 = vmatprep.subr.bf16.mxu0 %v1218
    %1442 = vmatpush1.bf16.msra.mxu0 %v1217
    %1443 = vmatprep.subr.bf16.mxu0 %v1212
    %1444 = vmatpush1.bf16.msra.mxu0 %v1211
    %1445 = vmatprep.subr.bf16.mxu0 %v1206
    %1446 = vmatpush1.bf16.msra.mxu0 %v1205
    %1447 = vmatprep.subr.bf16.mxu0 %v1200
    %1448 = vmatpush1.bf16.msra.mxu0 %v1199
    %1449 = vmatprep.subr.bf16.mxu0 %v1194
    %1450 = vmatpush1.bf16.msra.mxu0 %v1193
    %1451 = vmatprep.subr.bf16.mxu0 0
    %1452 = vmatpush2.bf16.msra.mxu0 0
    %1453 = vmatprep.subr.bf16.mxu0 0
    %1454 = vmatpush2.bf16.msra.mxu0 0
    %1455 = vmatprep.subr.bf16.mxu0 0
    %1456 = vmatpush2.bf16.msra.mxu0 0
    %1457 = vmatprep.subr.bf16.mxu0 %v1371
    %1458 = vmatpush2.bf16.msra.mxu0 %v1368
    %1459 = vmatprep.subr.bf16.mxu0 %v1260
    %1460 = vmatpush2.bf16.msra.mxu0 %v1259
    %1461 = vmatprep.subr.bf16.mxu0 %v1254
    %1462 = vmatpush2.bf16.msra.mxu0 %v1253
    %1463 = vmatprep.subr.bf16.mxu0 %v1248
    %1464 = vmatpush2.bf16.msra.mxu0 %v1247
    %1465 = vmatprep.subr.bf16.mxu0 %v1242
    %1466 = vmatpush2.bf16.msra.mxu0 %v1241
    %1467 = vmatprep.mubr.bf16.mxu0 %v1355
    %1468 = vmatmul.mubr.bf16.gmra.mxu0 %v911
    %v1469 = vpop.f32.mrf.mxu0
    %v1470 = vadd.f32 %v882, %v1469
    %v1471 = vpop.f32.mrf.mxu0
    %v1472 = vadd.f32 %v882, %v1471
    %v1473 = vpop.f32.mrf.mxu0
    %v1474 = vadd.f32 %v887, %v1473
    %v1475 = vpop.f32.mrf.mxu0
    %v1476 = vadd.f32 %v887, %v1475
    %1477 = vmatprep.mubr.bf16.mxu0 %v1358
    %1478 = vmatmul.mubr.bf16.gmra.mxu0 %v913
    %v1479 = vpop.f32.mrf.mxu0
    %v1480 = vadd.f32 %v892, %v1479
    %v1481 = vpop.f32.mrf.mxu0
    %v1482 = vadd.f32 %v892, %v1481
    %v1483 = vpop.f32.mrf.mxu0
    %v1484 = vadd.f32 %v897, %v1483
    %v1485 = vpop.f32.mrf.mxu0
    %v1486 = vadd.f32 %v897, %v1485
    %1487 = vdwg.mxu0
    %1488 = vmatprep.subr.bf16.mxu0 %v1238
    %1489 = vmatpush1.bf16.msra.mxu0 %v1237
    %1490 = vmatprep.subr.bf16.mxu0 %v1232
    %1491 = vmatpush1.bf16.msra.mxu0 %v1231
    %1492 = vmatprep.subr.bf16.mxu0 %v1226
    %1493 = vmatpush1.bf16.msra.mxu0 %v1225
    %1494 = vmatprep.subr.bf16.mxu0 %v1220
    %1495 = vmatpush1.bf16.msra.mxu0 %v1219
    %1496 = vmatprep.subr.bf16.mxu0 %v1214
    %1497 = vmatpush1.bf16.msra.mxu0 %v1213
    %1498 = vmatprep.subr.bf16.mxu0 %v1208
    %1499 = vmatpush1.bf16.msra.mxu0 %v1207
    %1500 = vmatprep.subr.bf16.mxu0 %v1202
    %1501 = vmatpush1.bf16.msra.mxu0 %v1201
    %1502 = vmatprep.subr.bf16.mxu0 %v1196
    %1503 = vmatpush1.bf16.msra.mxu0 %v1195
    %1504 = vmatprep.subr.bf16.mxu0 0
    %1505 = vmatpush2.bf16.msra.mxu0 0
    %1506 = vmatprep.subr.bf16.mxu0 0
    %1507 = vmatpush2.bf16.msra.mxu0 0
    %1508 = vmatprep.subr.bf16.mxu0 0
    %1509 = vmatpush2.bf16.msra.mxu0 0
    %1510 = vmatprep.subr.bf16.mxu0 %v1377
    %1511 = vmatpush2.bf16.msra.mxu0 %v1374
    %1512 = vmatprep.subr.bf16.mxu0 %v1262
    %1513 = vmatpush2.bf16.msra.mxu0 %v1261
    %1514 = vmatprep.subr.bf16.mxu0 %v1256
    %1515 = vmatpush2.bf16.msra.mxu0 %v1255
    %1516 = vmatprep.subr.bf16.mxu0 %v1250
    %1517 = vmatpush2.bf16.msra.mxu0 %v1249
    %1518 = vmatprep.subr.bf16.mxu0 %v1244
    %1519 = vmatpush2.bf16.msra.mxu0 %v1243
    %1520 = vmatprep.mubr.bf16.mxu0 %v1355
    %1521 = vmatmul.mubr.bf16.gmra.mxu0 %v911
    %v1522 = vpop.f32.mrf.mxu0
    %v1523 = vadd.f32 %v882, %v1522
    %v1524 = vpop.f32.mrf.mxu0
    %v1525 = vadd.f32 %v882, %v1524
    %v1526 = vpop.f32.mrf.mxu0
    %v1527 = vadd.f32 %v887, %v1526
    %v1528 = vpop.f32.mrf.mxu0
    %v1529 = vadd.f32 %v887, %v1528
    %1530 = vmatprep.mubr.bf16.mxu0 %v1358
    %1531 = vmatmul.mubr.bf16.gmra.mxu0 %v913
    %v1532 = vpop.f32.mrf.mxu0
    %v1533 = vadd.f32 %v892, %v1532
    %v1534 = vpop.f32.mrf.mxu0
    %v1535 = vadd.f32 %v892, %v1534
    %v1536 = vpop.f32.mrf.mxu0
    %v1537 = vadd.f32 %v897, %v1536
    %v1538 = vpop.f32.mrf.mxu0
    %v1539 = vadd.f32 %v897, %v1538
    %1540 = vdwg.mxu0
    %1541 = vmatprep.subr.bf16.mxu0 0
    %1542 = vmatpush1.bf16.msra.mxu0 %v1119
    %1543 = vmatprep.subr.bf16.mxu0 0
    %1544 = vmatpush1.bf16.msra.mxu0 %v1105
    %1545 = vmatprep.subr.bf16.mxu0 0
    %1546 = vmatpush1.bf16.msra.mxu0 %v1091
    %1547 = vmatprep.subr.bf16.mxu0 0
    %1548 = vmatpush1.bf16.msra.mxu0 %v1077
    %1549 = vmatprep.subr.bf16.mxu0 0
    %1550 = vmatpush1.bf16.msra.mxu0 %v1063
    %1551 = vmatprep.subr.bf16.mxu0 0
    %1552 = vmatpush1.bf16.msra.mxu0 %v1049
    %1553 = vmatprep.subr.bf16.mxu0 0
    %1554 = vmatpush1.bf16.msra.mxu0 %v1035
    %1555 = vmatprep.subr.bf16.mxu0 0
    %1556 = vmatpush1.bf16.msra.mxu0 %v1021
    %1557 = vmatprep.subr.bf16.mxu0 0
    %1558 = vmatpush2.bf16.msra.mxu0 0
    %1559 = vmatprep.subr.bf16.mxu0 0
    %1560 = vmatpush2.bf16.msra.mxu0 0
    %1561 = vmatprep.subr.bf16.mxu0 0
    %1562 = vmatpush2.bf16.msra.mxu0 0
    %1563 = vmatprep.subr.bf16.mxu0 0
    %1564 = vmatpush2.bf16.msra.mxu0 %v1380
    %1565 = vmatprep.subr.bf16.mxu0 0
    %1566 = vmatpush2.bf16.msra.mxu0 %v1175
    %1567 = vmatprep.subr.bf16.mxu0 0
    %1568 = vmatpush2.bf16.msra.mxu0 %v1161
    %1569 = vmatprep.subr.bf16.mxu0 0
    %1570 = vmatpush2.bf16.msra.mxu0 %v1147
    %1571 = vmatprep.subr.bf16.mxu0 0
    %1572 = vmatpush2.bf16.msra.mxu0 %v1133
    %1573 = vmatprep.mubr.bf16.mxu0 %v1355
    %1574 = vmatmul.mubr.bf16.gmra.mxu0 %v911
    %v1575 = vpop.f32.mrf.mxu0
    %v1576 = vadd.f32 %v882, %v1575
    %v1577 = vpop.f32.mrf.mxu0
    %v1578 = vpop.f32.mrf.mxu0
    %v1579 = vadd.f32 %v887, %v1578
    %v1580 = vpop.f32.mrf.mxu0
    %1581 = vmatprep.mubr.bf16.mxu0 %v1358
    %1582 = vmatmul.mubr.bf16.gmra.mxu0 %v913
    %v1583 = vpop.f32.mrf.mxu0
    %v1584 = vadd.f32 %v892, %v1583
    %v1585 = vpop.f32.mrf.mxu0
    %v1586 = vpop.f32.mrf.mxu0
    %v1587 = vadd.f32 %v897, %v1586
    %v1588 = vpop.f32.mrf.mxu0
    %1589 = vdwg.mxu0
    %vm1590 = vcmp.ge.f32.partialorder %v1417, 0.0
    %vm1591 = vcmp.ge.f32.partialorder %v1419, 0.0
    %vm1592 = vcmp.ge.f32.partialorder %v1470, 0.0
    %vm1593 = vcmp.ge.f32.partialorder %v1472, 0.0
    %vm1594 = vcmp.ge.f32.partialorder %v1523, 0.0
    %vm1595 = vcmp.ge.f32.partialorder %v1525, 0.0
    %vm1596 = vcmp.ge.f32.partialorder %v1576, 0.0
    %vm1597 = vcmp.ge.f32.partialorder %v1421, 0.0
    %vm1598 = vcmp.ge.f32.partialorder %v1423, 0.0
    %vm1599 = vcmp.ge.f32.partialorder %v1474, 0.0
    %vm1600 = vcmp.ge.f32.partialorder %v1476, 0.0
    %vm1601 = vcmp.ge.f32.partialorder %v1527, 0.0
    %vm1602 = vcmp.ge.f32.partialorder %v1529, 0.0
    %vm1603 = vcmp.ge.f32.partialorder %v1579, 0.0
    %vm1604 = vcmp.ge.f32.partialorder %v1427, 0.0
    %vm1605 = vcmp.ge.f32.partialorder %v1429, 0.0
    %vm1606 = vcmp.ge.f32.partialorder %v1480, 0.0
    %vm1607 = vcmp.ge.f32.partialorder %v1482, 0.0
    %vm1608 = vcmp.ge.f32.partialorder %v1533, 0.0
    %vm1609 = vcmp.ge.f32.partialorder %v1535, 0.0
    %vm1610 = vcmp.ge.f32.partialorder %v1584, 0.0
    %vm1611 = vcmp.ge.f32.partialorder %v1431, 0.0
    %vm1612 = vcmp.ge.f32.partialorder %v1433, 0.0
    %vm1613 = vcmp.ge.f32.partialorder %v1484, 0.0
    %vm1614 = vcmp.ge.f32.partialorder %v1486, 0.0
    %vm1615 = vcmp.ge.f32.partialorder %v1537, 0.0
    %vm1616 = vcmp.ge.f32.partialorder %v1539, 0.0
    %vm1617 = vcmp.ge.f32.partialorder %v1587, 0.0
    %v1618 = vstv %s54
    %v1619 = vmul.f32 %v1618, %v1417
    %v1620 = vmul.f32 %v1618, %v1419
    %v1621 = vmul.f32 %v1618, %v1470
    %v1622 = vmul.f32 %v1618, %v1472
    %v1623 = vmul.f32 %v1618, %v1523
    %v1624 = vmul.f32 %v1618, %v1525
    %v1625 = vmul.f32 %v1618, %v1576
    %v1626 = vmul.f32 %v1618, %v1421
    %v1627 = vmul.f32 %v1618, %v1423
    %v1628 = vmul.f32 %v1618, %v1474
    %v1629 = vmul.f32 %v1618, %v1476
    %v1630 = vmul.f32 %v1618, %v1527
    %v1631 = vmul.f32 %v1618, %v1529
    %v1632 = vmul.f32 %v1618, %v1579
    %v1633 = vmul.f32 %v1618, %v1427
    %v1634 = vmul.f32 %v1618, %v1429
    %v1635 = vmul.f32 %v1618, %v1480
    %v1636 = vmul.f32 %v1618, %v1482
    %v1637 = vmul.f32 %v1618, %v1533
    %v1638 = vmul.f32 %v1618, %v1535
    %v1639 = vmul.f32 %v1618, %v1584
    %v1640 = vmul.f32 %v1618, %v1431
    %v1641 = vmul.f32 %v1618, %v1433
    %v1642 = vmul.f32 %v1618, %v1484
    %v1643 = vmul.f32 %v1618, %v1486
    %v1644 = vmul.f32 %v1618, %v1537
    %v1645 = vmul.f32 %v1618, %v1539
    %v1646 = vmul.f32 %v1618, %v1587
    %v1647 = vsel %vm1590, %v1417, %v1619
    %v1648 = vsel %vm1591, %v1419, %v1620
    %v1649 = vsel %vm1592, %v1470, %v1621
    %v1650 = vsel %vm1593, %v1472, %v1622
    %v1651 = vsel %vm1594, %v1523, %v1623
    %v1652 = vsel %vm1595, %v1525, %v1624
    %v1653 = vsel %vm1596, %v1576, %v1625
    %v1654 = vsel %vm1597, %v1421, %v1626
    %v1655 = vsel %vm1598, %v1423, %v1627
    %v1656 = vsel %vm1599, %v1474, %v1628
    %v1657 = vsel %vm1600, %v1476, %v1629
    %v1658 = vsel %vm1601, %v1527, %v1630
    %v1659 = vsel %vm1602, %v1529, %v1631
    %v1660 = vsel %vm1603, %v1579, %v1632
    %v1661 = vsel %vm1604, %v1427, %v1633
    %v1662 = vsel %vm1605, %v1429, %v1634
    %v1663 = vsel %vm1606, %v1480, %v1635
    %v1664 = vsel %vm1607, %v1482, %v1636
    %v1665 = vsel %vm1608, %v1533, %v1637
    %v1666 = vsel %vm1609, %v1535, %v1638
    %v1667 = vsel %vm1610, %v1584, %v1639
    %v1668 = vsel %vm1611, %v1431, %v1640
    %v1669 = vsel %vm1612, %v1433, %v1641
    %v1670 = vsel %vm1613, %v1484, %v1642
    %v1671 = vsel %vm1614, %v1486, %v1643
    %v1672 = vsel %vm1615, %v1537, %v1644
    %v1673 = vsel %vm1616, %v1539, %v1645
    %v1674 = vsel %vm1617, %v1587, %v1646
    %v1676 = vlaneseq
    %v1677 = vshrl.u32 %v1676, 7
    %v1678 = vsub.s32 0, %v1677
    %v1679 = vrot.slane %v56, %v1678
    %v1680 = vlaneseq
    %v1681 = vshrl.u32 %v1680, 7
    %v1682 = vsub.s32 1, %v1681
    %v1683 = vrot.slane %v56, %v1682
    %v1684 = vlaneseq
    %v1685 = vshrl.u32 %v1684, 7
    %v1686 = vsub.s32 2, %v1685
    %v1687 = vrot.slane %v56, %v1686
    %v1688 = vlaneseq
    %v1689 = vshrl.u32 %v1688, 7
    %v1690 = vsub.s32 3, %v1689
    %v1691 = vrot.slane %v56, %v1690
    %v1692 = vlaneseq
    %v1693 = vshrl.u32 %v1692, 7
    %v1694 = vsub.s32 4, %v1693
    %v1695 = vrot.slane %v56, %v1694
    %v1696 = vlaneseq
    %v1697 = vshrl.u32 %v1696, 7
    %v1698 = vsub.s32 5, %v1697
    %v1699 = vrot.slane %v56, %v1698
    %v1700 = vlaneseq
    %v1701 = vshrl.u32 %v1700, 7
    %v1702 = vsub.s32 6, %v1701
    %v1703 = vrot.slane %v56, %v1702
    %v1711 = vmul.f32 %v1647, %v1679
    %v1712 = vmul.f32 %v1648, %v1683
    %v1713 = vmul.f32 %v1649, %v1687
    %v1714 = vmul.f32 %v1650, %v1691
    %v1715 = vmul.f32 %v1651, %v1695
    %v1716 = vmul.f32 %v1652, %v1699
    %v1717 = vmul.f32 %v1653, %v1703
    %v1718 = vmul.f32 %v1654, %v1679
    %v1719 = vmul.f32 %v1655, %v1683
    %v1720 = vmul.f32 %v1656, %v1687
    %v1721 = vmul.f32 %v1657, %v1691
    %v1722 = vmul.f32 %v1658, %v1695
    %v1723 = vmul.f32 %v1659, %v1699
    %v1724 = vmul.f32 %v1660, %v1703
    %v1725 = vmul.f32 %v1661, %v1679
    %v1726 = vmul.f32 %v1662, %v1683
    %v1727 = vmul.f32 %v1663, %v1687
    %v1728 = vmul.f32 %v1664, %v1691
    %v1729 = vmul.f32 %v1665, %v1695
    %v1730 = vmul.f32 %v1666, %v1699
    %v1731 = vmul.f32 %v1667, %v1703
    %v1732 = vmul.f32 %v1668, %v1679
    %v1733 = vmul.f32 %v1669, %v1683
    %v1734 = vmul.f32 %v1670, %v1687
    %v1735 = vmul.f32 %v1671, %v1691
    %v1736 = vmul.f32 %v1672, %v1695
    %v1737 = vmul.f32 %v1673, %v1699
    %v1738 = vmul.f32 %v1674, %v1703
    %vm1739 = vcmask 261120
    %v1740 = vsel %vm1739, %v1717, 0.0
    %v1741 = vsel %vm1739, %v1724, 0.0
    %v1742 = vsel %vm1739, %v1731, 0.0
    %v1743 = vsel %vm1739, %v1738, 0.0
    %1773 = vrot.lane.b32.xlu0 0.0, 127
    %v1774 = vpop.permute.xlu0 %1773
    %1775 = vrot.lane.b32.xlu0 %v1711, 127
    %v1776 = vpop.permute.xlu0 %1775
    %1777 = vrot.lane.b32.xlu0 %v1712, 127
    %v1778 = vpop.permute.xlu0 %1777
    %1779 = vrot.lane.b32.xlu0 %v1713, 127
    %v1780 = vpop.permute.xlu0 %1779
    %1781 = vrot.lane.b32.xlu0 %v1714, 127
    %v1782 = vpop.permute.xlu0 %1781
    %1783 = vrot.lane.b32.xlu0 %v1715, 127
    %v1784 = vpop.permute.xlu0 %1783
    %1785 = vrot.lane.b32.xlu0 %v1716, 127
    %v1786 = vpop.permute.xlu0 %1785
    %1787 = vrot.lane.b32.xlu0 %v1740, 127
    %v1788 = vpop.permute.xlu0 %1787
    %1789 = vrot.lane.b32.xlu0 %v1718, 127
    %v1790 = vpop.permute.xlu0 %1789
    %1791 = vrot.lane.b32.xlu0 %v1719, 127
    %v1792 = vpop.permute.xlu0 %1791
    %1793 = vrot.lane.b32.xlu0 %v1720, 127
    %v1794 = vpop.permute.xlu0 %1793
    %1795 = vrot.lane.b32.xlu0 %v1721, 127
    %v1796 = vpop.permute.xlu0 %1795
    %1797 = vrot.lane.b32.xlu0 %v1722, 127
    %v1798 = vpop.permute.xlu0 %1797
    %1799 = vrot.lane.b32.xlu0 %v1723, 127
    %v1800 = vpop.permute.xlu0 %1799
    %1801 = vrot.lane.b32.xlu0 %v1741, 127
    %v1802 = vpop.permute.xlu0 %1801
    %1803 = vrot.lane.b32.xlu0 %v1725, 127
    %v1804 = vpop.permute.xlu0 %1803
    %1805 = vrot.lane.b32.xlu0 %v1726, 127
    %v1806 = vpop.permute.xlu0 %1805
    %1807 = vrot.lane.b32.xlu0 %v1727, 127
    %v1808 = vpop.permute.xlu0 %1807
    %1809 = vrot.lane.b32.xlu0 %v1728, 127
    %v1810 = vpop.permute.xlu0 %1809
    %1811 = vrot.lane.b32.xlu0 %v1729, 127
    %v1812 = vpop.permute.xlu0 %1811
    %1813 = vrot.lane.b32.xlu0 %v1730, 127
    %v1814 = vpop.permute.xlu0 %1813
    %1815 = vrot.lane.b32.xlu0 %v1742, 127
    %v1816 = vpop.permute.xlu0 %1815
    %1817 = vrot.lane.b32.xlu0 %v1732, 127
    %v1818 = vpop.permute.xlu0 %1817
    %1819 = vrot.lane.b32.xlu0 %v1733, 127
    %v1820 = vpop.permute.xlu0 %1819
    %1821 = vrot.lane.b32.xlu0 %v1734, 127
    %v1822 = vpop.permute.xlu0 %1821
    %1823 = vrot.lane.b32.xlu0 %v1735, 127
    %v1824 = vpop.permute.xlu0 %1823
    %1825 = vrot.lane.b32.xlu0 %v1736, 127
    %v1826 = vpop.permute.xlu0 %1825
    %1827 = vrot.lane.b32.xlu0 %v1737, 127
    %v1828 = vpop.permute.xlu0 %1827
    %1829 = vrot.lane.b32.xlu0 %v1743, 127
    %v1830 = vpop.permute.xlu0 %1829
    %v1831 = vsel %vm78, %v1774, %v1776
    %v1832 = vsel %vm78, %v1776, %v1778
    %v1833 = vsel %vm78, %v1778, %v1780
    %v1834 = vsel %vm78, %v1780, %v1782
    %v1835 = vsel %vm78, %v1782, %v1784
    %v1836 = vsel %vm78, %v1784, %v1786
    %v1837 = vsel %vm78, %v1786, %v1788
    %v1838 = vsel %vm78, %v1774, %v1790
    %v1839 = vsel %vm78, %v1790, %v1792
    %v1840 = vsel %vm78, %v1792, %v1794
    %v1841 = vsel %vm78, %v1794, %v1796
    %v1842 = vsel %vm78, %v1796, %v1798
    %v1843 = vsel %vm78, %v1798, %v1800
    %v1844 = vsel %vm78, %v1800, %v1802
    %v1845 = vsel %vm78, %v1774, %v1804
    %v1846 = vsel %vm78, %v1804, %v1806
    %v1847 = vsel %vm78, %v1806, %v1808
    %v1848 = vsel %vm78, %v1808, %v1810
    %v1849 = vsel %vm78, %v1810, %v1812
    %v1850 = vsel %vm78, %v1812, %v1814
    %v1851 = vsel %vm78, %v1814, %v1816
    %v1852 = vsel %vm78, %v1774, %v1818
    %v1853 = vsel %vm78, %v1818, %v1820
    %v1854 = vsel %vm78, %v1820, %v1822
    %v1855 = vsel %vm78, %v1822, %v1824
    %v1856 = vsel %vm78, %v1824, %v1826
    %v1857 = vsel %vm78, %v1826, %v1828
    %v1858 = vsel %vm78, %v1828, %v1830
    %1891 = vrot.lane.b32.xlu0 0.0, 126
    %v1892 = vpop.permute.xlu0 %1891
    %1893 = vrot.lane.b32.xlu0 %v1711, 126
    %v1894 = vpop.permute.xlu0 %1893
    %1895 = vrot.lane.b32.xlu0 %v1712, 126
    %v1896 = vpop.permute.xlu0 %1895
    %1897 = vrot.lane.b32.xlu0 %v1713, 126
    %v1898 = vpop.permute.xlu0 %1897
    %1899 = vrot.lane.b32.xlu0 %v1714, 126
    %v1900 = vpop.permute.xlu0 %1899
    %1901 = vrot.lane.b32.xlu0 %v1715, 126
    %v1902 = vpop.permute.xlu0 %1901
    %1903 = vrot.lane.b32.xlu0 %v1716, 126
    %v1904 = vpop.permute.xlu0 %1903
    %1905 = vrot.lane.b32.xlu0 %v1740, 126
    %v1906 = vpop.permute.xlu0 %1905
    %1907 = vrot.lane.b32.xlu0 %v1718, 126
    %v1908 = vpop.permute.xlu0 %1907
    %1909 = vrot.lane.b32.xlu0 %v1719, 126
    %v1910 = vpop.permute.xlu0 %1909
    %1911 = vrot.lane.b32.xlu0 %v1720, 126
    %v1912 = vpop.permute.xlu0 %1911
    %1913 = vrot.lane.b32.xlu0 %v1721, 126
    %v1914 = vpop.permute.xlu0 %1913
    %1915 = vrot.lane.b32.xlu0 %v1722, 126
    %v1916 = vpop.permute.xlu0 %1915
    %1917 = vrot.lane.b32.xlu0 %v1723, 126
    %v1918 = vpop.permute.xlu0 %1917
    %1919 = vrot.lane.b32.xlu0 %v1741, 126
    %v1920 = vpop.permute.xlu0 %1919
    %1921 = vrot.lane.b32.xlu0 %v1725, 126
    %v1922 = vpop.permute.xlu0 %1921
    %1923 = vrot.lane.b32.xlu0 %v1726, 126
    %v1924 = vpop.permute.xlu0 %1923
    %1925 = vrot.lane.b32.xlu0 %v1727, 126
    %v1926 = vpop.permute.xlu0 %1925
    %1927 = vrot.lane.b32.xlu0 %v1728, 126
    %v1928 = vpop.permute.xlu0 %1927
    %1929 = vrot.lane.b32.xlu0 %v1729, 126
    %v1930 = vpop.permute.xlu0 %1929
    %1931 = vrot.lane.b32.xlu0 %v1730, 126
    %v1932 = vpop.permute.xlu0 %1931
    %1933 = vrot.lane.b32.xlu0 %v1742, 126
    %v1934 = vpop.permute.xlu0 %1933
    %1935 = vrot.lane.b32.xlu0 %v1732, 126
    %v1936 = vpop.permute.xlu0 %1935
    %1937 = vrot.lane.b32.xlu0 %v1733, 126
    %v1938 = vpop.permute.xlu0 %1937
    %1939 = vrot.lane.b32.xlu0 %v1734, 126
    %v1940 = vpop.permute.xlu0 %1939
    %1941 = vrot.lane.b32.xlu0 %v1735, 126
    %v1942 = vpop.permute.xlu0 %1941
    %1943 = vrot.lane.b32.xlu0 %v1736, 126
    %v1944 = vpop.permute.xlu0 %1943
    %1945 = vrot.lane.b32.xlu0 %v1737, 126
    %v1946 = vpop.permute.xlu0 %1945
    %1947 = vrot.lane.b32.xlu0 %v1743, 126
    %v1948 = vpop.permute.xlu0 %1947
    %v1949 = vsel %vm106, %v1892, %v1894
    %v1950 = vsel %vm106, %v1894, %v1896
    %v1951 = vsel %vm106, %v1896, %v1898
    %v1952 = vsel %vm106, %v1898, %v1900
    %v1953 = vsel %vm106, %v1900, %v1902
    %v1954 = vsel %vm106, %v1902, %v1904
    %v1955 = vsel %vm106, %v1904, %v1906
    %v1956 = vsel %vm106, %v1892, %v1908
    %v1957 = vsel %vm106, %v1908, %v1910
    %v1958 = vsel %vm106, %v1910, %v1912
    %v1959 = vsel %vm106, %v1912, %v1914
    %v1960 = vsel %vm106, %v1914, %v1916
    %v1961 = vsel %vm106, %v1916, %v1918
    %v1962 = vsel %vm106, %v1918, %v1920
    %v1963 = vsel %vm106, %v1892, %v1922
    %v1964 = vsel %vm106, %v1922, %v1924
    %v1965 = vsel %vm106, %v1924, %v1926
    %v1966 = vsel %vm106, %v1926, %v1928
    %v1967 = vsel %vm106, %v1928, %v1930
    %v1968 = vsel %vm106, %v1930, %v1932
    %v1969 = vsel %vm106, %v1932, %v1934
    %v1970 = vsel %vm106, %v1892, %v1936
    %v1971 = vsel %vm106, %v1936, %v1938
    %v1972 = vsel %vm106, %v1938, %v1940
    %v1973 = vsel %vm106, %v1940, %v1942
    %v1974 = vsel %vm106, %v1942, %v1944
    %v1975 = vsel %vm106, %v1944, %v1946
    %v1976 = vsel %vm106, %v1946, %v1948
    %2009 = vrot.lane.b32.xlu0 0.0, 108
    %v2010 = vpop.permute.xlu0 %2009
    %2011 = vrot.lane.b32.xlu0 %v1711, 108
    %v2012 = vpop.permute.xlu0 %2011
    %2013 = vrot.lane.b32.xlu0 %v1712, 108
    %v2014 = vpop.permute.xlu0 %2013
    %2015 = vrot.lane.b32.xlu0 %v1713, 108
    %v2016 = vpop.permute.xlu0 %2015
    %2017 = vrot.lane.b32.xlu0 %v1714, 108
    %v2018 = vpop.permute.xlu0 %2017
    %2019 = vrot.lane.b32.xlu0 %v1715, 108
    %v2020 = vpop.permute.xlu0 %2019
    %2021 = vrot.lane.b32.xlu0 %v1716, 108
    %v2022 = vpop.permute.xlu0 %2021
    %2023 = vrot.lane.b32.xlu0 %v1740, 108
    %v2024 = vpop.permute.xlu0 %2023
    %2025 = vrot.lane.b32.xlu0 %v1718, 108
    %v2026 = vpop.permute.xlu0 %2025
    %2027 = vrot.lane.b32.xlu0 %v1719, 108
    %v2028 = vpop.permute.xlu0 %2027
    %2029 = vrot.lane.b32.xlu0 %v1720, 108
    %v2030 = vpop.permute.xlu0 %2029
    %2031 = vrot.lane.b32.xlu0 %v1721, 108
    %v2032 = vpop.permute.xlu0 %2031
    %2033 = vrot.lane.b32.xlu0 %v1722, 108
    %v2034 = vpop.permute.xlu0 %2033
    %2035 = vrot.lane.b32.xlu0 %v1723, 108
    %v2036 = vpop.permute.xlu0 %2035
    %2037 = vrot.lane.b32.xlu0 %v1741, 108
    %v2038 = vpop.permute.xlu0 %2037
    %2039 = vrot.lane.b32.xlu0 %v1725, 108
    %v2040 = vpop.permute.xlu0 %2039
    %2041 = vrot.lane.b32.xlu0 %v1726, 108
    %v2042 = vpop.permute.xlu0 %2041
    %2043 = vrot.lane.b32.xlu0 %v1727, 108
    %v2044 = vpop.permute.xlu0 %2043
    %2045 = vrot.lane.b32.xlu0 %v1728, 108
    %v2046 = vpop.permute.xlu0 %2045
    %2047 = vrot.lane.b32.xlu0 %v1729, 108
    %v2048 = vpop.permute.xlu0 %2047
    %2049 = vrot.lane.b32.xlu0 %v1730, 108
    %v2050 = vpop.permute.xlu0 %2049
    %2051 = vrot.lane.b32.xlu0 %v1742, 108
    %v2052 = vpop.permute.xlu0 %2051
    %2053 = vrot.lane.b32.xlu0 %v1732, 108
    %v2054 = vpop.permute.xlu0 %2053
    %2055 = vrot.lane.b32.xlu0 %v1733, 108
    %v2056 = vpop.permute.xlu0 %2055
    %2057 = vrot.lane.b32.xlu0 %v1734, 108
    %v2058 = vpop.permute.xlu0 %2057
    %2059 = vrot.lane.b32.xlu0 %v1735, 108
    %v2060 = vpop.permute.xlu0 %2059
    %2061 = vrot.lane.b32.xlu0 %v1736, 108
    %v2062 = vpop.permute.xlu0 %2061
    %2063 = vrot.lane.b32.xlu0 %v1737, 108
    %v2064 = vpop.permute.xlu0 %2063
    %2065 = vrot.lane.b32.xlu0 %v1743, 108
    %v2066 = vpop.permute.xlu0 %2065
    %v2067 = vsel %vm193, %v2010, %v2012
    %v2068 = vsel %vm193, %v2012, %v2014
    %v2069 = vsel %vm193, %v2014, %v2016
    %v2070 = vsel %vm193, %v2016, %v2018
    %v2071 = vsel %vm193, %v2018, %v2020
    %v2072 = vsel %vm193, %v2020, %v2022
    %v2073 = vsel %vm193, %v2022, %v2024
    %v2074 = vsel %vm193, %v2010, %v2026
    %v2075 = vsel %vm193, %v2026, %v2028
    %v2076 = vsel %vm193, %v2028, %v2030
    %v2077 = vsel %vm193, %v2030, %v2032
    %v2078 = vsel %vm193, %v2032, %v2034
    %v2079 = vsel %vm193, %v2034, %v2036
    %v2080 = vsel %vm193, %v2036, %v2038
    %v2081 = vsel %vm193, %v2010, %v2040
    %v2082 = vsel %vm193, %v2040, %v2042
    %v2083 = vsel %vm193, %v2042, %v2044
    %v2084 = vsel %vm193, %v2044, %v2046
    %v2085 = vsel %vm193, %v2046, %v2048
    %v2086 = vsel %vm193, %v2048, %v2050
    %v2087 = vsel %vm193, %v2050, %v2052
    %v2088 = vsel %vm193, %v2010, %v2054
    %v2089 = vsel %vm193, %v2054, %v2056
    %v2090 = vsel %vm193, %v2056, %v2058
    %v2091 = vsel %vm193, %v2058, %v2060
    %v2092 = vsel %vm193, %v2060, %v2062
    %v2093 = vsel %vm193, %v2062, %v2064
    %v2094 = vsel %vm193, %v2064, %v2066
    %2127 = vrot.lane.b32.xlu0 %v1711, 107
    %v2128 = vpop.permute.xlu0 %2127
    %2129 = vrot.lane.b32.xlu0 %v1712, 107
    %v2130 = vpop.permute.xlu0 %2129
    %2131 = vrot.lane.b32.xlu0 %v1713, 107
    %v2132 = vpop.permute.xlu0 %2131
    %2133 = vrot.lane.b32.xlu0 %v1714, 107
    %v2134 = vpop.permute.xlu0 %2133
    %2135 = vrot.lane.b32.xlu0 %v1715, 107
    %v2136 = vpop.permute.xlu0 %2135
    %2137 = vrot.lane.b32.xlu0 %v1716, 107
    %v2138 = vpop.permute.xlu0 %2137
    %2139 = vrot.lane.b32.xlu0 %v1740, 107
    %v2140 = vpop.permute.xlu0 %2139
    %2141 = vrot.lane.b32.xlu0 %v1718, 107
    %v2142 = vpop.permute.xlu0 %2141
    %2143 = vrot.lane.b32.xlu0 %v1719, 107
    %v2144 = vpop.permute.xlu0 %2143
    %2145 = vrot.lane.b32.xlu0 %v1720, 107
    %v2146 = vpop.permute.xlu0 %2145
    %2147 = vrot.lane.b32.xlu0 %v1721, 107
    %v2148 = vpop.permute.xlu0 %2147
    %2149 = vrot.lane.b32.xlu0 %v1722, 107
    %v2150 = vpop.permute.xlu0 %2149
    %2151 = vrot.lane.b32.xlu0 %v1723, 107
    %v2152 = vpop.permute.xlu0 %2151
    %2153 = vrot.lane.b32.xlu0 %v1741, 107
    %v2154 = vpop.permute.xlu0 %2153
    %2155 = vrot.lane.b32.xlu0 %v1725, 107
    %v2156 = vpop.permute.xlu0 %2155
    %2157 = vrot.lane.b32.xlu0 %v1726, 107
    %v2158 = vpop.permute.xlu0 %2157
    %2159 = vrot.lane.b32.xlu0 %v1727, 107
    %v2160 = vpop.permute.xlu0 %2159
    %2161 = vrot.lane.b32.xlu0 %v1728, 107
    %v2162 = vpop.permute.xlu0 %2161
    %2163 = vrot.lane.b32.xlu0 %v1729, 107
    %v2164 = vpop.permute.xlu0 %2163
    %2165 = vrot.lane.b32.xlu0 %v1730, 107
    %v2166 = vpop.permute.xlu0 %2165
    %2167 = vrot.lane.b32.xlu0 %v1742, 107
    %v2168 = vpop.permute.xlu0 %2167
    %2169 = vrot.lane.b32.xlu0 %v1732, 107
    %v2170 = vpop.permute.xlu0 %2169
    %2171 = vrot.lane.b32.xlu0 %v1733, 107
    %v2172 = vpop.permute.xlu0 %2171
    %2173 = vrot.lane.b32.xlu0 %v1734, 107
    %v2174 = vpop.permute.xlu0 %2173
    %2175 = vrot.lane.b32.xlu0 %v1735, 107
    %v2176 = vpop.permute.xlu0 %2175
    %2177 = vrot.lane.b32.xlu0 %v1736, 107
    %v2178 = vpop.permute.xlu0 %2177
    %2179 = vrot.lane.b32.xlu0 %v1737, 107
    %v2180 = vpop.permute.xlu0 %2179
    %2181 = vrot.lane.b32.xlu0 %v1743, 107
    %v2182 = vpop.permute.xlu0 %2181
    %v2183 = vsel %vm224, %v2128, %v2130
    %v2184 = vsel %vm224, %v2130, %v2132
    %v2185 = vsel %vm224, %v2132, %v2134
    %v2186 = vsel %vm224, %v2134, %v2136
    %v2187 = vsel %vm224, %v2136, %v2138
    %v2188 = vsel %vm224, %v2138, %v2140
    %v2189 = vsel %vm224, %v2142, %v2144
    %v2190 = vsel %vm224, %v2144, %v2146
    %v2191 = vsel %vm224, %v2146, %v2148
    %v2192 = vsel %vm224, %v2148, %v2150
    %v2193 = vsel %vm224, %v2150, %v2152
    %v2194 = vsel %vm224, %v2152, %v2154
    %v2195 = vsel %vm224, %v2156, %v2158
    %v2196 = vsel %vm224, %v2158, %v2160
    %v2197 = vsel %vm224, %v2160, %v2162
    %v2198 = vsel %vm224, %v2162, %v2164
    %v2199 = vsel %vm224, %v2164, %v2166
    %v2200 = vsel %vm224, %v2166, %v2168
    %v2201 = vsel %vm224, %v2170, %v2172
    %v2202 = vsel %vm224, %v2172, %v2174
    %v2203 = vsel %vm224, %v2174, %v2176
    %v2204 = vsel %vm224, %v2176, %v2178
    %v2205 = vsel %vm224, %v2178, %v2180
    %v2206 = vsel %vm224, %v2180, %v2182
    %2239 = vrot.lane.b32.xlu0 %v1711, 106
    %v2240 = vpop.permute.xlu0 %2239
    %2241 = vrot.lane.b32.xlu0 %v1712, 106
    %v2242 = vpop.permute.xlu0 %2241
    %2243 = vrot.lane.b32.xlu0 %v1713, 106
    %v2244 = vpop.permute.xlu0 %2243
    %2245 = vrot.lane.b32.xlu0 %v1714, 106
    %v2246 = vpop.permute.xlu0 %2245
    %2247 = vrot.lane.b32.xlu0 %v1715, 106
    %v2248 = vpop.permute.xlu0 %2247
    %2249 = vrot.lane.b32.xlu0 %v1716, 106
    %v2250 = vpop.permute.xlu0 %2249
    %2251 = vrot.lane.b32.xlu0 %v1740, 106
    %v2252 = vpop.permute.xlu0 %2251
    %2253 = vrot.lane.b32.xlu0 %v1718, 106
    %v2254 = vpop.permute.xlu0 %2253
    %2255 = vrot.lane.b32.xlu0 %v1719, 106
    %v2256 = vpop.permute.xlu0 %2255
    %2257 = vrot.lane.b32.xlu0 %v1720, 106
    %v2258 = vpop.permute.xlu0 %2257
    %2259 = vrot.lane.b32.xlu0 %v1721, 106
    %v2260 = vpop.permute.xlu0 %2259
    %2261 = vrot.lane.b32.xlu0 %v1722, 106
    %v2262 = vpop.permute.xlu0 %2261
    %2263 = vrot.lane.b32.xlu0 %v1723, 106
    %v2264 = vpop.permute.xlu0 %2263
    %2265 = vrot.lane.b32.xlu0 %v1741, 106
    %v2266 = vpop.permute.xlu0 %2265
    %2267 = vrot.lane.b32.xlu0 %v1725, 106
    %v2268 = vpop.permute.xlu0 %2267
    %2269 = vrot.lane.b32.xlu0 %v1726, 106
    %v2270 = vpop.permute.xlu0 %2269
    %2271 = vrot.lane.b32.xlu0 %v1727, 106
    %v2272 = vpop.permute.xlu0 %2271
    %2273 = vrot.lane.b32.xlu0 %v1728, 106
    %v2274 = vpop.permute.xlu0 %2273
    %2275 = vrot.lane.b32.xlu0 %v1729, 106
    %v2276 = vpop.permute.xlu0 %2275
    %2277 = vrot.lane.b32.xlu0 %v1730, 106
    %v2278 = vpop.permute.xlu0 %2277
    %2279 = vrot.lane.b32.xlu0 %v1742, 106
    %v2280 = vpop.permute.xlu0 %2279
    %2281 = vrot.lane.b32.xlu0 %v1732, 106
    %v2282 = vpop.permute.xlu0 %2281
    %2283 = vrot.lane.b32.xlu0 %v1733, 106
    %v2284 = vpop.permute.xlu0 %2283
    %2285 = vrot.lane.b32.xlu0 %v1734, 106
    %v2286 = vpop.permute.xlu0 %2285
    %2287 = vrot.lane.b32.xlu0 %v1735, 106
    %v2288 = vpop.permute.xlu0 %2287
    %2289 = vrot.lane.b32.xlu0 %v1736, 106
    %v2290 = vpop.permute.xlu0 %2289
    %2291 = vrot.lane.b32.xlu0 %v1737, 106
    %v2292 = vpop.permute.xlu0 %2291
    %2293 = vrot.lane.b32.xlu0 %v1743, 106
    %v2294 = vpop.permute.xlu0 %2293
    %v2295 = vsel %vm255, %v2240, %v2242
    %v2296 = vsel %vm255, %v2242, %v2244
    %v2297 = vsel %vm255, %v2244, %v2246
    %v2298 = vsel %vm255, %v2246, %v2248
    %v2299 = vsel %vm255, %v2248, %v2250
    %v2300 = vsel %vm255, %v2250, %v2252
    %v2301 = vsel %vm255, %v2254, %v2256
    %v2302 = vsel %vm255, %v2256, %v2258
    %v2303 = vsel %vm255, %v2258, %v2260
    %v2304 = vsel %vm255, %v2260, %v2262
    %v2305 = vsel %vm255, %v2262, %v2264
    %v2306 = vsel %vm255, %v2264, %v2266
    %v2307 = vsel %vm255, %v2268, %v2270
    %v2308 = vsel %vm255, %v2270, %v2272
    %v2309 = vsel %vm255, %v2272, %v2274
    %v2310 = vsel %vm255, %v2274, %v2276
    %v2311 = vsel %vm255, %v2276, %v2278
    %v2312 = vsel %vm255, %v2278, %v2280
    %v2313 = vsel %vm255, %v2282, %v2284
    %v2314 = vsel %vm255, %v2284, %v2286
    %v2315 = vsel %vm255, %v2286, %v2288
    %v2316 = vsel %vm255, %v2288, %v2290
    %v2317 = vsel %vm255, %v2290, %v2292
    %v2318 = vsel %vm255, %v2292, %v2294
    %2351 = vrot.lane.b32.xlu0 %v1711, 88
    %v2352 = vpop.permute.xlu0 %2351
    %2353 = vrot.lane.b32.xlu0 %v1712, 88
    %v2354 = vpop.permute.xlu0 %2353
    %2355 = vrot.lane.b32.xlu0 %v1713, 88
    %v2356 = vpop.permute.xlu0 %2355
    %2357 = vrot.lane.b32.xlu0 %v1714, 88
    %v2358 = vpop.permute.xlu0 %2357
    %2359 = vrot.lane.b32.xlu0 %v1715, 88
    %v2360 = vpop.permute.xlu0 %2359
    %2361 = vrot.lane.b32.xlu0 %v1716, 88
    %v2362 = vpop.permute.xlu0 %2361
    %2363 = vrot.lane.b32.xlu0 %v1740, 88
    %v2364 = vpop.permute.xlu0 %2363
    %2365 = vrot.lane.b32.xlu0 %v1718, 88
    %v2366 = vpop.permute.xlu0 %2365
    %2367 = vrot.lane.b32.xlu0 %v1719, 88
    %v2368 = vpop.permute.xlu0 %2367
    %2369 = vrot.lane.b32.xlu0 %v1720, 88
    %v2370 = vpop.permute.xlu0 %2369
    %2371 = vrot.lane.b32.xlu0 %v1721, 88
    %v2372 = vpop.permute.xlu0 %2371
    %2373 = vrot.lane.b32.xlu0 %v1722, 88
    %v2374 = vpop.permute.xlu0 %2373
    %2375 = vrot.lane.b32.xlu0 %v1723, 88
    %v2376 = vpop.permute.xlu0 %2375
    %2377 = vrot.lane.b32.xlu0 %v1741, 88
    %v2378 = vpop.permute.xlu0 %2377
    %2379 = vrot.lane.b32.xlu0 %v1725, 88
    %v2380 = vpop.permute.xlu0 %2379
    %2381 = vrot.lane.b32.xlu0 %v1726, 88
    %v2382 = vpop.permute.xlu0 %2381
    %2383 = vrot.lane.b32.xlu0 %v1727, 88
    %v2384 = vpop.permute.xlu0 %2383
    %2385 = vrot.lane.b32.xlu0 %v1728, 88
    %v2386 = vpop.permute.xlu0 %2385
    %2387 = vrot.lane.b32.xlu0 %v1729, 88
    %v2388 = vpop.permute.xlu0 %2387
    %2389 = vrot.lane.b32.xlu0 %v1730, 88
    %v2390 = vpop.permute.xlu0 %2389
    %2391 = vrot.lane.b32.xlu0 %v1742, 88
    %v2392 = vpop.permute.xlu0 %2391
    %2393 = vrot.lane.b32.xlu0 %v1732, 88
    %v2394 = vpop.permute.xlu0 %2393
    %2395 = vrot.lane.b32.xlu0 %v1733, 88
    %v2396 = vpop.permute.xlu0 %2395
    %2397 = vrot.lane.b32.xlu0 %v1734, 88
    %v2398 = vpop.permute.xlu0 %2397
    %2399 = vrot.lane.b32.xlu0 %v1735, 88
    %v2400 = vpop.permute.xlu0 %2399
    %2401 = vrot.lane.b32.xlu0 %v1736, 88
    %v2402 = vpop.permute.xlu0 %2401
    %2403 = vrot.lane.b32.xlu0 %v1737, 88
    %v2404 = vpop.permute.xlu0 %2403
    %2405 = vrot.lane.b32.xlu0 %v1743, 88
    %v2406 = vpop.permute.xlu0 %2405
    %v2407 = vsel %vm348, %v2352, %v2354
    %v2408 = vsel %vm348, %v2354, %v2356
    %v2409 = vsel %vm348, %v2356, %v2358
    %v2410 = vsel %vm348, %v2358, %v2360
    %v2411 = vsel %vm348, %v2360, %v2362
    %v2412 = vsel %vm348, %v2362, %v2364
    %v2413 = vsel %vm348, %v2366, %v2368
    %v2414 = vsel %vm348, %v2368, %v2370
    %v2415 = vsel %vm348, %v2370, %v2372
    %v2416 = vsel %vm348, %v2372, %v2374
    %v2417 = vsel %vm348, %v2374, %v2376
    %v2418 = vsel %vm348, %v2376, %v2378
    %v2419 = vsel %vm348, %v2380, %v2382
    %v2420 = vsel %vm348, %v2382, %v2384
    %v2421 = vsel %vm348, %v2384, %v2386
    %v2422 = vsel %vm348, %v2386, %v2388
    %v2423 = vsel %vm348, %v2388, %v2390
    %v2424 = vsel %vm348, %v2390, %v2392
    %v2425 = vsel %vm348, %v2394, %v2396
    %v2426 = vsel %vm348, %v2396, %v2398
    %v2427 = vsel %vm348, %v2398, %v2400
    %v2428 = vsel %vm348, %v2400, %v2402
    %v2429 = vsel %vm348, %v2402, %v2404
    %v2430 = vsel %vm348, %v2404, %v2406
    %2463 = vrot.lane.b32.xlu0 %v1711, 87
    %v2464 = vpop.permute.xlu0 %2463
    %2465 = vrot.lane.b32.xlu0 %v1712, 87
    %v2466 = vpop.permute.xlu0 %2465
    %2467 = vrot.lane.b32.xlu0 %v1713, 87
    %v2468 = vpop.permute.xlu0 %2467
    %2469 = vrot.lane.b32.xlu0 %v1714, 87
    %v2470 = vpop.permute.xlu0 %2469
    %2471 = vrot.lane.b32.xlu0 %v1715, 87
    %v2472 = vpop.permute.xlu0 %2471
    %2473 = vrot.lane.b32.xlu0 %v1716, 87
    %v2474 = vpop.permute.xlu0 %2473
    %2475 = vrot.lane.b32.xlu0 %v1740, 87
    %v2476 = vpop.permute.xlu0 %2475
    %2477 = vrot.lane.b32.xlu0 %v1718, 87
    %v2478 = vpop.permute.xlu0 %2477
    %2479 = vrot.lane.b32.xlu0 %v1719, 87
    %v2480 = vpop.permute.xlu0 %2479
    %2481 = vrot.lane.b32.xlu0 %v1720, 87
    %v2482 = vpop.permute.xlu0 %2481
    %2483 = vrot.lane.b32.xlu0 %v1721, 87
    %v2484 = vpop.permute.xlu0 %2483
    %2485 = vrot.lane.b32.xlu0 %v1722, 87
    %v2486 = vpop.permute.xlu0 %2485
    %2487 = vrot.lane.b32.xlu0 %v1723, 87
    %v2488 = vpop.permute.xlu0 %2487
    %2489 = vrot.lane.b32.xlu0 %v1741, 87
    %v2490 = vpop.permute.xlu0 %2489
    %2491 = vrot.lane.b32.xlu0 %v1725, 87
    %v2492 = vpop.permute.xlu0 %2491
    %2493 = vrot.lane.b32.xlu0 %v1726, 87
    %v2494 = vpop.permute.xlu0 %2493
    %2495 = vrot.lane.b32.xlu0 %v1727, 87
    %v2496 = vpop.permute.xlu0 %2495
    %2497 = vrot.lane.b32.xlu0 %v1728, 87
    %v2498 = vpop.permute.xlu0 %2497
    %2499 = vrot.lane.b32.xlu0 %v1729, 87
    %v2500 = vpop.permute.xlu0 %2499
    %2501 = vrot.lane.b32.xlu0 %v1730, 87
    %v2502 = vpop.permute.xlu0 %2501
    %2503 = vrot.lane.b32.xlu0 %v1742, 87
    %v2504 = vpop.permute.xlu0 %2503
    %2505 = vrot.lane.b32.xlu0 %v1732, 87
    %v2506 = vpop.permute.xlu0 %2505
    %2507 = vrot.lane.b32.xlu0 %v1733, 87
    %v2508 = vpop.permute.xlu0 %2507
    %2509 = vrot.lane.b32.xlu0 %v1734, 87
    %v2510 = vpop.permute.xlu0 %2509
    %2511 = vrot.lane.b32.xlu0 %v1735, 87
    %v2512 = vpop.permute.xlu0 %2511
    %2513 = vrot.lane.b32.xlu0 %v1736, 87
    %v2514 = vpop.permute.xlu0 %2513
    %2515 = vrot.lane.b32.xlu0 %v1737, 87
    %v2516 = vpop.permute.xlu0 %2515
    %2517 = vrot.lane.b32.xlu0 %v1743, 87
    %v2518 = vpop.permute.xlu0 %2517
    %v2519 = vsel %vm379, %v2464, %v2466
    %v2520 = vsel %vm379, %v2466, %v2468
    %v2521 = vsel %vm379, %v2468, %v2470
    %v2522 = vsel %vm379, %v2470, %v2472
    %v2523 = vsel %vm379, %v2472, %v2474
    %v2524 = vsel %vm379, %v2474, %v2476
    %v2525 = vsel %vm379, %v2478, %v2480
    %v2526 = vsel %vm379, %v2480, %v2482
    %v2527 = vsel %vm379, %v2482, %v2484
    %v2528 = vsel %vm379, %v2484, %v2486
    %v2529 = vsel %vm379, %v2486, %v2488
    %v2530 = vsel %vm379, %v2488, %v2490
    %v2531 = vsel %vm379, %v2492, %v2494
    %v2532 = vsel %vm379, %v2494, %v2496
    %v2533 = vsel %vm379, %v2496, %v2498
    %v2534 = vsel %vm379, %v2498, %v2500
    %v2535 = vsel %vm379, %v2500, %v2502
    %v2536 = vsel %vm379, %v2502, %v2504
    %v2537 = vsel %vm379, %v2506, %v2508
    %v2538 = vsel %vm379, %v2508, %v2510
    %v2539 = vsel %vm379, %v2510, %v2512
    %v2540 = vsel %vm379, %v2512, %v2514
    %v2541 = vsel %vm379, %v2514, %v2516
    %v2542 = vsel %vm379, %v2516, %v2518
    %2575 = vrot.lane.b32.xlu0 %v1711, 86
    %v2576 = vpop.permute.xlu0 %2575
    %2577 = vrot.lane.b32.xlu0 %v1712, 86
    %v2578 = vpop.permute.xlu0 %2577
    %2579 = vrot.lane.b32.xlu0 %v1713, 86
    %v2580 = vpop.permute.xlu0 %2579
    %2581 = vrot.lane.b32.xlu0 %v1714, 86
    %v2582 = vpop.permute.xlu0 %2581
    %2583 = vrot.lane.b32.xlu0 %v1715, 86
    %v2584 = vpop.permute.xlu0 %2583
    %2585 = vrot.lane.b32.xlu0 %v1716, 86
    %v2586 = vpop.permute.xlu0 %2585
    %2587 = vrot.lane.b32.xlu0 %v1740, 86
    %v2588 = vpop.permute.xlu0 %2587
    %2589 = vrot.lane.b32.xlu0 %v1718, 86
    %v2590 = vpop.permute.xlu0 %2589
    %2591 = vrot.lane.b32.xlu0 %v1719, 86
    %v2592 = vpop.permute.xlu0 %2591
    %2593 = vrot.lane.b32.xlu0 %v1720, 86
    %v2594 = vpop.permute.xlu0 %2593
    %2595 = vrot.lane.b32.xlu0 %v1721, 86
    %v2596 = vpop.permute.xlu0 %2595
    %2597 = vrot.lane.b32.xlu0 %v1722, 86
    %v2598 = vpop.permute.xlu0 %2597
    %2599 = vrot.lane.b32.xlu0 %v1723, 86
    %v2600 = vpop.permute.xlu0 %2599
    %2601 = vrot.lane.b32.xlu0 %v1741, 86
    %v2602 = vpop.permute.xlu0 %2601
    %2603 = vrot.lane.b32.xlu0 %v1725, 86
    %v2604 = vpop.permute.xlu0 %2603
    %2605 = vrot.lane.b32.xlu0 %v1726, 86
    %v2606 = vpop.permute.xlu0 %2605
    %2607 = vrot.lane.b32.xlu0 %v1727, 86
    %v2608 = vpop.permute.xlu0 %2607
    %2609 = vrot.lane.b32.xlu0 %v1728, 86
    %v2610 = vpop.permute.xlu0 %2609
    %2611 = vrot.lane.b32.xlu0 %v1729, 86
    %v2612 = vpop.permute.xlu0 %2611
    %2613 = vrot.lane.b32.xlu0 %v1730, 86
    %v2614 = vpop.permute.xlu0 %2613
    %2615 = vrot.lane.b32.xlu0 %v1742, 86
    %v2616 = vpop.permute.xlu0 %2615
    %2617 = vrot.lane.b32.xlu0 %v1732, 86
    %v2618 = vpop.permute.xlu0 %2617
    %2619 = vrot.lane.b32.xlu0 %v1733, 86
    %v2620 = vpop.permute.xlu0 %2619
    %2621 = vrot.lane.b32.xlu0 %v1734, 86
    %v2622 = vpop.permute.xlu0 %2621
    %2623 = vrot.lane.b32.xlu0 %v1735, 86
    %v2624 = vpop.permute.xlu0 %2623
    %2625 = vrot.lane.b32.xlu0 %v1736, 86
    %v2626 = vpop.permute.xlu0 %2625
    %2627 = vrot.lane.b32.xlu0 %v1737, 86
    %v2628 = vpop.permute.xlu0 %2627
    %2629 = vrot.lane.b32.xlu0 %v1743, 86
    %v2630 = vpop.permute.xlu0 %2629
    %v2631 = vsel %vm408, %v2576, %v2578
    %v2632 = vsel %vm408, %v2578, %v2580
    %v2633 = vsel %vm408, %v2580, %v2582
    %v2634 = vsel %vm408, %v2582, %v2584
    %v2635 = vsel %vm408, %v2584, %v2586
    %v2636 = vsel %vm408, %v2586, %v2588
    %v2637 = vsel %vm408, %v2590, %v2592
    %v2638 = vsel %vm408, %v2592, %v2594
    %v2639 = vsel %vm408, %v2594, %v2596
    %v2640 = vsel %vm408, %v2596, %v2598
    %v2641 = vsel %vm408, %v2598, %v2600
    %v2642 = vsel %vm408, %v2600, %v2602
    %v2643 = vsel %vm408, %v2604, %v2606
    %v2644 = vsel %vm408, %v2606, %v2608
    %v2645 = vsel %vm408, %v2608, %v2610
    %v2646 = vsel %vm408, %v2610, %v2612
    %v2647 = vsel %vm408, %v2612, %v2614
    %v2648 = vsel %vm408, %v2614, %v2616
    %v2649 = vsel %vm408, %v2618, %v2620
    %v2650 = vsel %vm408, %v2620, %v2622
    %v2651 = vsel %vm408, %v2622, %v2624
    %v2652 = vsel %vm408, %v2624, %v2626
    %v2653 = vsel %vm408, %v2626, %v2628
    %v2654 = vsel %vm408, %v2628, %v2630
    %v2687 = vpack.c.bf16 0.0, 0.0
    %v2688 = vpack.c.bf16 %v1718, %v1711
    %v2689 = vpack.c.bf16 %v1719, %v1712
    %v2690 = vpack.c.bf16 %v1720, %v1713
    %v2691 = vpack.c.bf16 %v1721, %v1714
    %v2692 = vpack.c.bf16 %v1722, %v1715
    %v2693 = vpack.c.bf16 %v1723, %v1716
    %v2694 = vpack.c.bf16 %v1741, %v1740
    %v2695 = vpack.c.bf16 %v1732, %v1725
    %v2696 = vpack.c.bf16 %v1733, %v1726
    %v2697 = vpack.c.bf16 %v1734, %v1727
    %v2698 = vpack.c.bf16 %v1735, %v1728
    %v2699 = vpack.c.bf16 %v1736, %v1729
    %v2700 = vpack.c.bf16 %v1737, %v1730
    %v2701 = vpack.c.bf16 %v1743, %v1742
    %v2702 = vpack.c.bf16 %v1838, %v1831
    %v2703 = vpack.c.bf16 %v1839, %v1832
    %v2704 = vpack.c.bf16 %v1840, %v1833
    %v2705 = vpack.c.bf16 %v1841, %v1834
    %v2706 = vpack.c.bf16 %v1842, %v1835
    %v2707 = vpack.c.bf16 %v1843, %v1836
    %v2708 = vpack.c.bf16 %v1844, %v1837
    %v2709 = vpack.c.bf16 %v1802, %v1788
    %v2710 = vpack.c.bf16 %v1852, %v1845
    %v2711 = vpack.c.bf16 %v1853, %v1846
    %v2712 = vpack.c.bf16 %v1854, %v1847
    %v2713 = vpack.c.bf16 %v1855, %v1848
    %v2714 = vpack.c.bf16 %v1856, %v1849
    %v2715 = vpack.c.bf16 %v1857, %v1850
    %v2716 = vpack.c.bf16 %v1858, %v1851
    %v2717 = vpack.c.bf16 %v1830, %v1816
    %v2718 = vpack.c.bf16 %v1956, %v1949
    %v2719 = vpack.c.bf16 %v1957, %v1950
    %v2720 = vpack.c.bf16 %v1958, %v1951
    %v2721 = vpack.c.bf16 %v1959, %v1952
    %v2722 = vpack.c.bf16 %v1960, %v1953
    %v2723 = vpack.c.bf16 %v1961, %v1954
    %v2724 = vpack.c.bf16 %v1962, %v1955
    %v2725 = vpack.c.bf16 %v1920, %v1906
    %v2726 = vpack.c.bf16 %v1970, %v1963
    %v2727 = vpack.c.bf16 %v1971, %v1964
    %v2728 = vpack.c.bf16 %v1972, %v1965
    %v2729 = vpack.c.bf16 %v1973, %v1966
    %v2730 = vpack.c.bf16 %v1974, %v1967
    %v2731 = vpack.c.bf16 %v1975, %v1968
    %v2732 = vpack.c.bf16 %v1976, %v1969
    %v2733 = vpack.c.bf16 %v1948, %v1934
    %v2734 = vpack.c.bf16 %v2074, %v2067
    %v2735 = vpack.c.bf16 %v2075, %v2068
    %v2736 = vpack.c.bf16 %v2076, %v2069
    %v2737 = vpack.c.bf16 %v2077, %v2070
    %v2738 = vpack.c.bf16 %v2078, %v2071
    %v2739 = vpack.c.bf16 %v2079, %v2072
    %v2740 = vpack.c.bf16 %v2080, %v2073
    %v2741 = vpack.c.bf16 %v2038, %v2024
    %v2742 = vpack.c.bf16 %v2088, %v2081
    %v2743 = vpack.c.bf16 %v2089, %v2082
    %v2744 = vpack.c.bf16 %v2090, %v2083
    %v2745 = vpack.c.bf16 %v2091, %v2084
    %v2746 = vpack.c.bf16 %v2092, %v2085
    %v2747 = vpack.c.bf16 %v2093, %v2086
    %v2748 = vpack.c.bf16 %v2094, %v2087
    %v2749 = vpack.c.bf16 %v2066, %v2052
    %v2750 = vpack.c.bf16 %v2142, %v2128
    %v2751 = vpack.c.bf16 %v2189, %v2183
    %v2752 = vpack.c.bf16 %v2190, %v2184
    %v2753 = vpack.c.bf16 %v2191, %v2185
    %v2754 = vpack.c.bf16 %v2192, %v2186
    %v2755 = vpack.c.bf16 %v2193, %v2187
    %v2756 = vpack.c.bf16 %v2194, %v2188
    %v2757 = vpack.c.bf16 %v2154, %v2140
    %v2758 = vpack.c.bf16 %v2170, %v2156
    %v2759 = vpack.c.bf16 %v2201, %v2195
    %v2760 = vpack.c.bf16 %v2202, %v2196
    %v2761 = vpack.c.bf16 %v2203, %v2197
    %v2762 = vpack.c.bf16 %v2204, %v2198
    %v2763 = vpack.c.bf16 %v2205, %v2199
    %v2764 = vpack.c.bf16 %v2206, %v2200
    %v2765 = vpack.c.bf16 %v2182, %v2168
    %v2766 = vpack.c.bf16 %v2254, %v2240
    %v2767 = vpack.c.bf16 %v2301, %v2295
    %v2768 = vpack.c.bf16 %v2302, %v2296
    %v2769 = vpack.c.bf16 %v2303, %v2297
    %v2770 = vpack.c.bf16 %v2304, %v2298
    %v2771 = vpack.c.bf16 %v2305, %v2299
    %v2772 = vpack.c.bf16 %v2306, %v2300
    %v2773 = vpack.c.bf16 %v2266, %v2252
    %v2774 = vpack.c.bf16 %v2282, %v2268
    %v2775 = vpack.c.bf16 %v2313, %v2307
    %v2776 = vpack.c.bf16 %v2314, %v2308
    %v2777 = vpack.c.bf16 %v2315, %v2309
    %v2778 = vpack.c.bf16 %v2316, %v2310
    %v2779 = vpack.c.bf16 %v2317, %v2311
    %v2780 = vpack.c.bf16 %v2318, %v2312
    %v2781 = vpack.c.bf16 %v2294, %v2280
    %v2782 = vpack.c.bf16 %v2366, %v2352
    %v2783 = vpack.c.bf16 %v2413, %v2407
    %v2784 = vpack.c.bf16 %v2414, %v2408
    %v2785 = vpack.c.bf16 %v2415, %v2409
    %v2786 = vpack.c.bf16 %v2416, %v2410
    %v2787 = vpack.c.bf16 %v2417, %v2411
    %v2788 = vpack.c.bf16 %v2418, %v2412
    %v2789 = vpack.c.bf16 %v2378, %v2364
    %v2790 = vpack.c.bf16 %v2394, %v2380
    %v2791 = vpack.c.bf16 %v2425, %v2419
    %v2792 = vpack.c.bf16 %v2426, %v2420
    %v2793 = vpack.c.bf16 %v2427, %v2421
    %v2794 = vpack.c.bf16 %v2428, %v2422
    %v2795 = vpack.c.bf16 %v2429, %v2423
    %v2796 = vpack.c.bf16 %v2430, %v2424
    %v2797 = vpack.c.bf16 %v2406, %v2392
    %v2798 = vpack.c.bf16 %v2478, %v2464
    %v2799 = vpack.c.bf16 %v2525, %v2519
    %v2800 = vpack.c.bf16 %v2526, %v2520
    %v2801 = vpack.c.bf16 %v2527, %v2521
    %v2802 = vpack.c.bf16 %v2528, %v2522
    %v2803 = vpack.c.bf16 %v2529, %v2523
    %v2804 = vpack.c.bf16 %v2530, %v2524
    %v2805 = vpack.c.bf16 %v2490, %v2476
    %v2806 = vpack.c.bf16 %v2506, %v2492
    %v2807 = vpack.c.bf16 %v2537, %v2531
    %v2808 = vpack.c.bf16 %v2538, %v2532
    %v2809 = vpack.c.bf16 %v2539, %v2533
    %v2810 = vpack.c.bf16 %v2540, %v2534
    %v2811 = vpack.c.bf16 %v2541, %v2535
    %v2812 = vpack.c.bf16 %v2542, %v2536
    %v2813 = vpack.c.bf16 %v2518, %v2504
    %v2814 = vpack.c.bf16 %v2590, %v2576
    %v2815 = vpack.c.bf16 %v2637, %v2631
    %v2816 = vpack.c.bf16 %v2638, %v2632
    %v2817 = vpack.c.bf16 %v2639, %v2633
    %v2818 = vpack.c.bf16 %v2640, %v2634
    %v2819 = vpack.c.bf16 %v2641, %v2635
    %v2820 = vpack.c.bf16 %v2642, %v2636
    %v2821 = vpack.c.bf16 %v2602, %v2588
    %v2822 = vpack.c.bf16 %v2618, %v2604
    %v2823 = vpack.c.bf16 %v2649, %v2643
    %v2824 = vpack.c.bf16 %v2650, %v2644
    %v2825 = vpack.c.bf16 %v2651, %v2645
    %v2826 = vpack.c.bf16 %v2652, %v2646
    %v2827 = vpack.c.bf16 %v2653, %v2647
    %v2828 = vpack.c.bf16 %v2654, %v2648
    %v2829 = vpack.c.bf16 %v2630, %v2616
    %v2830 = vld [vmem:[%s3] sm:$0xff]
    %v2831 = vld [vmem:[%s3 + $0x8] sm:$0xf]
    %v2832 = vld [vmem:[%s3 + $0xc] sm:$0xff]
    %v2833 = vld [vmem:[%s3 + $0x14] sm:$0xf]
    %v2834 = vld [vmem:[%s3 + $0x18] sm:$0xff]
    %v2835 = vld [vmem:[%s3 + $0x20] sm:$0xf]
    %v2836 = vld [vmem:[%s3 + $0x24] sm:$0xff]
    %v2837 = vld [vmem:[%s3 + $0x2c] sm:$0xf]
    %v2838 = vld [vmem:[%s4] sm:$0xff]
    %v2839 = vld [vmem:[%s4 + $0x8] sm:$0xff]
    %v2840 = vld [vmem:[%s4 + $0x10] sm:$0xff]
    %v2841 = vld [vmem:[%s4 + $0x18] sm:$0xff]
    %2843 = vset.pattern.permute.xlu0 0
    %2844 = vperm.xlu0 %2843, %v2838
    %v2845 = vpop.permute.xlu0 %2844
    %2848 = vset.pattern.permute.xlu0 0
    %2849 = vperm.xlu0 %2848, %v2839
    %v2850 = vpop.permute.xlu0 %2849
    %2853 = vset.pattern.permute.xlu0 0
    %2854 = vperm.xlu0 %2853, %v2840
    %v2855 = vpop.permute.xlu0 %2854
    %2858 = vset.pattern.permute.xlu0 0
    %2859 = vperm.xlu0 %2858, %v2841
    %v2860 = vpop.permute.xlu0 %2859
    %v2870 = vunpack.c.l.b16 %v2830
    %v2871 = vunpack.c.h.b16 %v2830
    %v2872 = vunpack.c.l.b16 %v2831
    %v2873 = vunpack.c.l.b16 %v2832
    %v2874 = vunpack.c.h.b16 %v2832
    %v2875 = vunpack.c.l.b16 %v2833
    %v2876 = vunpack.c.l.b16 %v2834
    %v2877 = vunpack.c.h.b16 %v2834
    %v2878 = vunpack.c.l.b16 %v2835
    %v2879 = vunpack.c.l.b16 %v2836
    %v2880 = vunpack.c.h.b16 %v2836
    %v2881 = vunpack.c.l.b16 %v2837
    %v2882 = vpack.c.b16 %v2873, %v2870
    %v2883 = vpack.c.b16 %v2874, %v2871
    %v2884 = vpack.c.b16 %v2875, %v2872
    %v2885 = vpack.c.b16 %v2879, %v2876
    %v2886 = vpack.c.b16 %v2880, %v2877
    %v2887 = vpack.c.b16 %v2881, %v2878
    %3035 = vrot.lane.b32.xlu0 %v2687, 21
    %v3036 = vpop.permute.xlu0 %3035
    %3037 = vrot.lane.b32.xlu0 %v2688, 21
    %v3038 = vpop.permute.xlu0 %3037
    %3039 = vrot.lane.b32.xlu0 %v2689, 21
    %v3040 = vpop.permute.xlu0 %3039
    %3041 = vrot.lane.b32.xlu0 %v2690, 21
    %v3042 = vpop.permute.xlu0 %3041
    %3043 = vrot.lane.b32.xlu0 %v2691, 21
    %v3044 = vpop.permute.xlu0 %3043
    %3045 = vrot.lane.b32.xlu0 %v2692, 21
    %v3046 = vpop.permute.xlu0 %3045
    %3047 = vrot.lane.b32.xlu0 %v2693, 21
    %v3048 = vpop.permute.xlu0 %3047
    %3049 = vrot.lane.b32.xlu0 %v2694, 21
    %v3050 = vpop.permute.xlu0 %3049
    %3051 = vrot.lane.b32.xlu0 %v2695, 21
    %v3052 = vpop.permute.xlu0 %3051
    %3053 = vrot.lane.b32.xlu0 %v2696, 21
    %v3054 = vpop.permute.xlu0 %3053
    %3055 = vrot.lane.b32.xlu0 %v2697, 21
    %v3056 = vpop.permute.xlu0 %3055
    %3057 = vrot.lane.b32.xlu0 %v2698, 21
    %v3058 = vpop.permute.xlu0 %3057
    %3059 = vrot.lane.b32.xlu0 %v2699, 21
    %v3060 = vpop.permute.xlu0 %3059
    %3061 = vrot.lane.b32.xlu0 %v2700, 21
    %v3062 = vpop.permute.xlu0 %3061
    %3063 = vrot.lane.b32.xlu0 %v2701, 21
    %v3064 = vpop.permute.xlu0 %3063
    %3065 = vrot.lane.b32.xlu0 %v2702, 21
    %v3066 = vpop.permute.xlu0 %3065
    %3067 = vrot.lane.b32.xlu0 %v2703, 21
    %v3068 = vpop.permute.xlu0 %3067
    %3069 = vrot.lane.b32.xlu0 %v2704, 21
    %v3070 = vpop.permute.xlu0 %3069
    %3071 = vrot.lane.b32.xlu0 %v2705, 21
    %v3072 = vpop.permute.xlu0 %3071
    %3073 = vrot.lane.b32.xlu0 %v2706, 21
    %v3074 = vpop.permute.xlu0 %3073
    %3075 = vrot.lane.b32.xlu0 %v2707, 21
    %v3076 = vpop.permute.xlu0 %3075
    %3077 = vrot.lane.b32.xlu0 %v2708, 21
    %v3078 = vpop.permute.xlu0 %3077
    %3079 = vrot.lane.b32.xlu0 %v2709, 21
    %v3080 = vpop.permute.xlu0 %3079
    %3081 = vrot.lane.b32.xlu0 %v2710, 21
    %v3082 = vpop.permute.xlu0 %3081
    %3083 = vrot.lane.b32.xlu0 %v2711, 21
    %v3084 = vpop.permute.xlu0 %3083
    %3085 = vrot.lane.b32.xlu0 %v2712, 21
    %v3086 = vpop.permute.xlu0 %3085
    %3087 = vrot.lane.b32.xlu0 %v2713, 21
    %v3088 = vpop.permute.xlu0 %3087
    %3089 = vrot.lane.b32.xlu0 %v2714, 21
    %v3090 = vpop.permute.xlu0 %3089
    %3091 = vrot.lane.b32.xlu0 %v2715, 21
    %v3092 = vpop.permute.xlu0 %3091
    %3093 = vrot.lane.b32.xlu0 %v2716, 21
    %v3094 = vpop.permute.xlu0 %3093
    %3095 = vrot.lane.b32.xlu0 %v2717, 21
    %v3096 = vpop.permute.xlu0 %3095
    %3097 = vrot.lane.b32.xlu0 %v2718, 21
    %v3098 = vpop.permute.xlu0 %3097
    %3099 = vrot.lane.b32.xlu0 %v2719, 21
    %v3100 = vpop.permute.xlu0 %3099
    %3101 = vrot.lane.b32.xlu0 %v2720, 21
    %v3102 = vpop.permute.xlu0 %3101
    %3103 = vrot.lane.b32.xlu0 %v2721, 21
    %v3104 = vpop.permute.xlu0 %3103
    %3105 = vrot.lane.b32.xlu0 %v2722, 21
    %v3106 = vpop.permute.xlu0 %3105
    %3107 = vrot.lane.b32.xlu0 %v2723, 21
    %v3108 = vpop.permute.xlu0 %3107
    %3109 = vrot.lane.b32.xlu0 %v2724, 21
    %v3110 = vpop.permute.xlu0 %3109
    %3111 = vrot.lane.b32.xlu0 %v2725, 21
    %v3112 = vpop.permute.xlu0 %3111
    %3113 = vrot.lane.b32.xlu0 %v2726, 21
    %v3114 = vpop.permute.xlu0 %3113
    %3115 = vrot.lane.b32.xlu0 %v2727, 21
    %v3116 = vpop.permute.xlu0 %3115
    %3117 = vrot.lane.b32.xlu0 %v2728, 21
    %v3118 = vpop.permute.xlu0 %3117
    %3119 = vrot.lane.b32.xlu0 %v2729, 21
    %v3120 = vpop.permute.xlu0 %3119
    %3121 = vrot.lane.b32.xlu0 %v2730, 21
    %v3122 = vpop.permute.xlu0 %3121
    %3123 = vrot.lane.b32.xlu0 %v2731, 21
    %v3124 = vpop.permute.xlu0 %3123
    %3125 = vrot.lane.b32.xlu0 %v2732, 21
    %v3126 = vpop.permute.xlu0 %3125
    %3127 = vrot.lane.b32.xlu0 %v2733, 21
    %v3128 = vpop.permute.xlu0 %3127
    %3129 = vrot.lane.b32.xlu0 %v2734, 21
    %v3130 = vpop.permute.xlu0 %3129
    %3131 = vrot.lane.b32.xlu0 %v2735, 21
    %v3132 = vpop.permute.xlu0 %3131
    %3133 = vrot.lane.b32.xlu0 %v2736, 21
    %v3134 = vpop.permute.xlu0 %3133
    %3135 = vrot.lane.b32.xlu0 %v2737, 21
    %v3136 = vpop.permute.xlu0 %3135
    %3137 = vrot.lane.b32.xlu0 %v2738, 21
    %v3138 = vpop.permute.xlu0 %3137
    %3139 = vrot.lane.b32.xlu0 %v2739, 21
    %v3140 = vpop.permute.xlu0 %3139
    %3141 = vrot.lane.b32.xlu0 %v2740, 21
    %v3142 = vpop.permute.xlu0 %3141
    %3143 = vrot.lane.b32.xlu0 %v2741, 21
    %v3144 = vpop.permute.xlu0 %3143
    %3145 = vrot.lane.b32.xlu0 %v2742, 21
    %v3146 = vpop.permute.xlu0 %3145
    %3147 = vrot.lane.b32.xlu0 %v2743, 21
    %v3148 = vpop.permute.xlu0 %3147
    %3149 = vrot.lane.b32.xlu0 %v2744, 21
    %v3150 = vpop.permute.xlu0 %3149
    %3151 = vrot.lane.b32.xlu0 %v2745, 21
    %v3152 = vpop.permute.xlu0 %3151
    %3153 = vrot.lane.b32.xlu0 %v2746, 21
    %v3154 = vpop.permute.xlu0 %3153
    %3155 = vrot.lane.b32.xlu0 %v2747, 21
    %v3156 = vpop.permute.xlu0 %3155
    %3157 = vrot.lane.b32.xlu0 %v2748, 21
    %v3158 = vpop.permute.xlu0 %3157
    %3159 = vrot.lane.b32.xlu0 %v2749, 21
    %v3160 = vpop.permute.xlu0 %3159
    %3161 = vrot.lane.b32.xlu0 %v2750, 21
    %v3162 = vpop.permute.xlu0 %3161
    %3163 = vrot.lane.b32.xlu0 %v2751, 21
    %v3164 = vpop.permute.xlu0 %3163
    %3165 = vrot.lane.b32.xlu0 %v2752, 21
    %v3166 = vpop.permute.xlu0 %3165
    %3167 = vrot.lane.b32.xlu0 %v2753, 21
    %v3168 = vpop.permute.xlu0 %3167
    %3169 = vrot.lane.b32.xlu0 %v2754, 21
    %v3170 = vpop.permute.xlu0 %3169
    %3171 = vrot.lane.b32.xlu0 %v2755, 21
    %v3172 = vpop.permute.xlu0 %3171
    %3173 = vrot.lane.b32.xlu0 %v2756, 21
    %v3174 = vpop.permute.xlu0 %3173
    %3175 = vrot.lane.b32.xlu0 %v2757, 21
    %v3176 = vpop.permute.xlu0 %3175
    %3177 = vrot.lane.b32.xlu0 %v2758, 21
    %v3178 = vpop.permute.xlu0 %3177
    %3179 = vrot.lane.b32.xlu0 %v2759, 21
    %v3180 = vpop.permute.xlu0 %3179
    %3181 = vrot.lane.b32.xlu0 %v2760, 21
    %v3182 = vpop.permute.xlu0 %3181
    %3183 = vrot.lane.b32.xlu0 %v2761, 21
    %v3184 = vpop.permute.xlu0 %3183
    %3185 = vrot.lane.b32.xlu0 %v2762, 21
    %v3186 = vpop.permute.xlu0 %3185
    %3187 = vrot.lane.b32.xlu0 %v2763, 21
    %v3188 = vpop.permute.xlu0 %3187
    %3189 = vrot.lane.b32.xlu0 %v2764, 21
    %v3190 = vpop.permute.xlu0 %3189
    %3191 = vrot.lane.b32.xlu0 %v2765, 21
    %v3192 = vpop.permute.xlu0 %3191
    %3193 = vrot.lane.b32.xlu0 %v2766, 21
    %v3194 = vpop.permute.xlu0 %3193
    %3195 = vrot.lane.b32.xlu0 %v2767, 21
    %v3196 = vpop.permute.xlu0 %3195
    %3197 = vrot.lane.b32.xlu0 %v2768, 21
    %v3198 = vpop.permute.xlu0 %3197
    %3199 = vrot.lane.b32.xlu0 %v2769, 21
    %v3200 = vpop.permute.xlu0 %3199
    %3201 = vrot.lane.b32.xlu0 %v2770, 21
    %v3202 = vpop.permute.xlu0 %3201
    %3203 = vrot.lane.b32.xlu0 %v2771, 21
    %v3204 = vpop.permute.xlu0 %3203
    %3205 = vrot.lane.b32.xlu0 %v2772, 21
    %v3206 = vpop.permute.xlu0 %3205
    %3207 = vrot.lane.b32.xlu0 %v2773, 21
    %v3208 = vpop.permute.xlu0 %3207
    %3209 = vrot.lane.b32.xlu0 %v2774, 21
    %v3210 = vpop.permute.xlu0 %3209
    %3211 = vrot.lane.b32.xlu0 %v2775, 21
    %v3212 = vpop.permute.xlu0 %3211
    %3213 = vrot.lane.b32.xlu0 %v2776, 21
    %v3214 = vpop.permute.xlu0 %3213
    %3215 = vrot.lane.b32.xlu0 %v2777, 21
    %v3216 = vpop.permute.xlu0 %3215
    %3217 = vrot.lane.b32.xlu0 %v2778, 21
    %v3218 = vpop.permute.xlu0 %3217
    %3219 = vrot.lane.b32.xlu0 %v2779, 21
    %v3220 = vpop.permute.xlu0 %3219
    %3221 = vrot.lane.b32.xlu0 %v2780, 21
    %v3222 = vpop.permute.xlu0 %3221
    %3223 = vrot.lane.b32.xlu0 %v2781, 21
    %v3224 = vpop.permute.xlu0 %3223
    %3225 = vrot.lane.b32.xlu0 %v2782, 21
    %v3226 = vpop.permute.xlu0 %3225
    %3227 = vrot.lane.b32.xlu0 %v2783, 21
    %v3228 = vpop.permute.xlu0 %3227
    %3229 = vrot.lane.b32.xlu0 %v2784, 21
    %v3230 = vpop.permute.xlu0 %3229
    %3231 = vrot.lane.b32.xlu0 %v2785, 21
    %v3232 = vpop.permute.xlu0 %3231
    %3233 = vrot.lane.b32.xlu0 %v2786, 21
    %v3234 = vpop.permute.xlu0 %3233
    %3235 = vrot.lane.b32.xlu0 %v2787, 21
    %v3236 = vpop.permute.xlu0 %3235
    %3237 = vrot.lane.b32.xlu0 %v2788, 21
    %v3238 = vpop.permute.xlu0 %3237
    %3239 = vrot.lane.b32.xlu0 %v2789, 21
    %v3240 = vpop.permute.xlu0 %3239
    %3241 = vrot.lane.b32.xlu0 %v2790, 21
    %v3242 = vpop.permute.xlu0 %3241
    %3243 = vrot.lane.b32.xlu0 %v2791, 21
    %v3244 = vpop.permute.xlu0 %3243
    %3245 = vrot.lane.b32.xlu0 %v2792, 21
    %v3246 = vpop.permute.xlu0 %3245
    %3247 = vrot.lane.b32.xlu0 %v2793, 21
    %v3248 = vpop.permute.xlu0 %3247
    %3249 = vrot.lane.b32.xlu0 %v2794, 21
    %v3250 = vpop.permute.xlu0 %3249
    %3251 = vrot.lane.b32.xlu0 %v2795, 21
    %v3252 = vpop.permute.xlu0 %3251
    %3253 = vrot.lane.b32.xlu0 %v2796, 21
    %v3254 = vpop.permute.xlu0 %3253
    %3255 = vrot.lane.b32.xlu0 %v2797, 21
    %v3256 = vpop.permute.xlu0 %3255
    %3257 = vrot.lane.b32.xlu0 %v2798, 21
    %v3258 = vpop.permute.xlu0 %3257
    %3259 = vrot.lane.b32.xlu0 %v2799, 21
    %v3260 = vpop.permute.xlu0 %3259
    %3261 = vrot.lane.b32.xlu0 %v2800, 21
    %v3262 = vpop.permute.xlu0 %3261
    %3263 = vrot.lane.b32.xlu0 %v2801, 21
    %v3264 = vpop.permute.xlu0 %3263
    %3265 = vrot.lane.b32.xlu0 %v2802, 21
    %v3266 = vpop.permute.xlu0 %3265
    %3267 = vrot.lane.b32.xlu0 %v2803, 21
    %v3268 = vpop.permute.xlu0 %3267
    %3269 = vrot.lane.b32.xlu0 %v2804, 21
    %v3270 = vpop.permute.xlu0 %3269
    %3271 = vrot.lane.b32.xlu0 %v2805, 21
    %v3272 = vpop.permute.xlu0 %3271
    %3273 = vrot.lane.b32.xlu0 %v2806, 21
    %v3274 = vpop.permute.xlu0 %3273
    %3275 = vrot.lane.b32.xlu0 %v2807, 21
    %v3276 = vpop.permute.xlu0 %3275
    %3277 = vrot.lane.b32.xlu0 %v2808, 21
    %v3278 = vpop.permute.xlu0 %3277
    %3279 = vrot.lane.b32.xlu0 %v2809, 21
    %v3280 = vpop.permute.xlu0 %3279
    %3281 = vrot.lane.b32.xlu0 %v2810, 21
    %v3282 = vpop.permute.xlu0 %3281
    %3283 = vrot.lane.b32.xlu0 %v2811, 21
    %v3284 = vpop.permute.xlu0 %3283
    %3285 = vrot.lane.b32.xlu0 %v2812, 21
    %v3286 = vpop.permute.xlu0 %3285
    %3287 = vrot.lane.b32.xlu0 %v2813, 21
    %v3288 = vpop.permute.xlu0 %3287
    %3289 = vrot.lane.b32.xlu0 %v2814, 21
    %v3290 = vpop.permute.xlu0 %3289
    %3291 = vrot.lane.b32.xlu0 %v2815, 21
    %v3292 = vpop.permute.xlu0 %3291
    %3293 = vrot.lane.b32.xlu0 %v2816, 21
    %v3294 = vpop.permute.xlu0 %3293
    %3295 = vrot.lane.b32.xlu0 %v2817, 21
    %v3296 = vpop.permute.xlu0 %3295
    %3297 = vrot.lane.b32.xlu0 %v2818, 21
    %v3298 = vpop.permute.xlu0 %3297
    %3299 = vrot.lane.b32.xlu0 %v2819, 21
    %v3300 = vpop.permute.xlu0 %3299
    %3301 = vrot.lane.b32.xlu0 %v2820, 21
    %v3302 = vpop.permute.xlu0 %3301
    %3303 = vrot.lane.b32.xlu0 %v2821, 21
    %v3304 = vpop.permute.xlu0 %3303
    %3305 = vrot.lane.b32.xlu0 %v2822, 21
    %v3306 = vpop.permute.xlu0 %3305
    %3307 = vrot.lane.b32.xlu0 %v2823, 21
    %v3308 = vpop.permute.xlu0 %3307
    %3309 = vrot.lane.b32.xlu0 %v2824, 21
    %v3310 = vpop.permute.xlu0 %3309
    %3311 = vrot.lane.b32.xlu0 %v2825, 21
    %v3312 = vpop.permute.xlu0 %3311
    %3313 = vrot.lane.b32.xlu0 %v2826, 21
    %v3314 = vpop.permute.xlu0 %3313
    %3315 = vrot.lane.b32.xlu0 %v2827, 21
    %v3316 = vpop.permute.xlu0 %3315
    %3317 = vrot.lane.b32.xlu0 %v2828, 21
    %v3318 = vpop.permute.xlu0 %3317
    %3319 = vrot.lane.b32.xlu0 %v2829, 21
    %v3320 = vpop.permute.xlu0 %3319
    %vm3321 = vcmask 171008
    %v3322 = vsel %vm3321, %v3036, %v3038
    %v3323 = vsel %vm3321, %v3038, %v3040
    %v3324 = vsel %vm3321, %v3040, %v3042
    %v3325 = vsel %vm3321, %v3042, %v3044
    %v3326 = vsel %vm3321, %v3044, %v3046
    %v3327 = vsel %vm3321, %v3046, %v3048
    %v3328 = vsel %vm3321, %v3048, %v3050
    %v3329 = vsel %vm3321, %v3036, %v3052
    %v3330 = vsel %vm3321, %v3052, %v3054
    %v3331 = vsel %vm3321, %v3054, %v3056
    %v3332 = vsel %vm3321, %v3056, %v3058
    %v3333 = vsel %vm3321, %v3058, %v3060
    %v3334 = vsel %vm3321, %v3060, %v3062
    %v3335 = vsel %vm3321, %v3062, %v3064
    %v3336 = vsel %vm3321, %v3066, %v3068
    %v3337 = vsel %vm3321, %v3068, %v3070
    %v3338 = vsel %vm3321, %v3070, %v3072
    %v3339 = vsel %vm3321, %v3072, %v3074
    %v3340 = vsel %vm3321, %v3074, %v3076
    %v3341 = vsel %vm3321, %v3076, %v3078
    %v3342 = vsel %vm3321, %v3078, %v3080
    %v3343 = vsel %vm3321, %v3082, %v3084
    %v3344 = vsel %vm3321, %v3084, %v3086
    %v3345 = vsel %vm3321, %v3086, %v3088
    %v3346 = vsel %vm3321, %v3088, %v3090
    %v3347 = vsel %vm3321, %v3090, %v3092
    %v3348 = vsel %vm3321, %v3092, %v3094
    %v3349 = vsel %vm3321, %v3094, %v3096
    %v3350 = vsel %vm3321, %v3098, %v3100
    %v3351 = vsel %vm3321, %v3100, %v3102
    %v3352 = vsel %vm3321, %v3102, %v3104
    %v3353 = vsel %vm3321, %v3104, %v3106
    %v3354 = vsel %vm3321, %v3106, %v3108
    %v3355 = vsel %vm3321, %v3108, %v3110
    %v3356 = vsel %vm3321, %v3110, %v3112
    %v3357 = vsel %vm3321, %v3114, %v3116
    %v3358 = vsel %vm3321, %v3116, %v3118
    %v3359 = vsel %vm3321, %v3118, %v3120
    %v3360 = vsel %vm3321, %v3120, %v3122
    %v3361 = vsel %vm3321, %v3122, %v3124
    %v3362 = vsel %vm3321, %v3124, %v3126
    %v3363 = vsel %vm3321, %v3126, %v3128
    %v3364 = vsel %vm3321, %v3130, %v3132
    %v3365 = vsel %vm3321, %v3132, %v3134
    %v3366 = vsel %vm3321, %v3134, %v3136
    %v3367 = vsel %vm3321, %v3136, %v3138
    %v3368 = vsel %vm3321, %v3138, %v3140
    %v3369 = vsel %vm3321, %v3140, %v3142
    %v3370 = vsel %vm3321, %v3142, %v3144
    %v3371 = vsel %vm3321, %v3146, %v3148
    %v3372 = vsel %vm3321, %v3148, %v3150
    %v3373 = vsel %vm3321, %v3150, %v3152
    %v3374 = vsel %vm3321, %v3152, %v3154
    %v3375 = vsel %vm3321, %v3154, %v3156
    %v3376 = vsel %vm3321, %v3156, %v3158
    %v3377 = vsel %vm3321, %v3158, %v3160
    %v3378 = vsel %vm3321, %v3162, %v3164
    %v3379 = vsel %vm3321, %v3164, %v3166
    %v3380 = vsel %vm3321, %v3166, %v3168
    %v3381 = vsel %vm3321, %v3168, %v3170
    %v3382 = vsel %vm3321, %v3170, %v3172
    %v3383 = vsel %vm3321, %v3172, %v3174
    %v3384 = vsel %vm3321, %v3174, %v3176
    %v3385 = vsel %vm3321, %v3178, %v3180
    %v3386 = vsel %vm3321, %v3180, %v3182
    %v3387 = vsel %vm3321, %v3182, %v3184
    %v3388 = vsel %vm3321, %v3184, %v3186
    %v3389 = vsel %vm3321, %v3186, %v3188
    %v3390 = vsel %vm3321, %v3188, %v3190
    %v3391 = vsel %vm3321, %v3190, %v3192
    %v3392 = vsel %vm3321, %v3194, %v3196
    %v3393 = vsel %vm3321, %v3196, %v3198
    %v3394 = vsel %vm3321, %v3198, %v3200
    %v3395 = vsel %vm3321, %v3200, %v3202
    %v3396 = vsel %vm3321, %v3202, %v3204
    %v3397 = vsel %vm3321, %v3204, %v3206
    %v3398 = vsel %vm3321, %v3206, %v3208
    %v3399 = vsel %vm3321, %v3210, %v3212
    %v3400 = vsel %vm3321, %v3212, %v3214
    %v3401 = vsel %vm3321, %v3214, %v3216
    %v3402 = vsel %vm3321, %v3216, %v3218
    %v3403 = vsel %vm3321, %v3218, %v3220
    %v3404 = vsel %vm3321, %v3220, %v3222
    %v3405 = vsel %vm3321, %v3222, %v3224
    %v3406 = vsel %vm3321, %v3226, %v3228
    %v3407 = vsel %vm3321, %v3228, %v3230
    %v3408 = vsel %vm3321, %v3230, %v3232
    %v3409 = vsel %vm3321, %v3232, %v3234
    %v3410 = vsel %vm3321, %v3234, %v3236
    %v3411 = vsel %vm3321, %v3236, %v3238
    %v3412 = vsel %vm3321, %v3238, %v3240
    %v3413 = vsel %vm3321, %v3242, %v3244
    %v3414 = vsel %vm3321, %v3244, %v3246
    %v3415 = vsel %vm3321, %v3246, %v3248
    %v3416 = vsel %vm3321, %v3248, %v3250
    %v3417 = vsel %vm3321, %v3250, %v3252
    %v3418 = vsel %vm3321, %v3252, %v3254
    %v3419 = vsel %vm3321, %v3254, %v3256
    %v3420 = vsel %vm3321, %v3258, %v3260
    %v3421 = vsel %vm3321, %v3260, %v3262
    %v3422 = vsel %vm3321, %v3262, %v3264
    %v3423 = vsel %vm3321, %v3264, %v3266
    %v3424 = vsel %vm3321, %v3266, %v3268
    %v3425 = vsel %vm3321, %v3268, %v3270
    %v3426 = vsel %vm3321, %v3270, %v3272
    %v3427 = vsel %vm3321, %v3274, %v3276
    %v3428 = vsel %vm3321, %v3276, %v3278
    %v3429 = vsel %vm3321, %v3278, %v3280
    %v3430 = vsel %vm3321, %v3280, %v3282
    %v3431 = vsel %vm3321, %v3282, %v3284
    %v3432 = vsel %vm3321, %v3284, %v3286
    %v3433 = vsel %vm3321, %v3286, %v3288
    %v3434 = vsel %vm3321, %v3290, %v3292
    %v3435 = vsel %vm3321, %v3292, %v3294
    %v3436 = vsel %vm3321, %v3294, %v3296
    %v3437 = vsel %vm3321, %v3296, %v3298
    %v3438 = vsel %vm3321, %v3298, %v3300
    %v3439 = vsel %vm3321, %v3300, %v3302
    %v3440 = vsel %vm3321, %v3302, %v3304
    %v3441 = vsel %vm3321, %v3306, %v3308
    %v3442 = vsel %vm3321, %v3308, %v3310
    %v3443 = vsel %vm3321, %v3310, %v3312
    %v3444 = vsel %vm3321, %v3312, %v3314
    %v3445 = vsel %vm3321, %v3314, %v3316
    %v3446 = vsel %vm3321, %v3316, %v3318
    %v3447 = vsel %vm3321, %v3318, %v3320
    %v3575 = vsel %vm1739, %v2884, 0
    %v3578 = vsel %vm1739, %v2887, 0
    %3580 = vmatprep.subr.bf16.mxu0 %v3372
    %3581 = vmatpush1.bf16.msra.mxu0 %v3371
    %3582 = vmatprep.subr.bf16.mxu0 %v3365
    %3583 = vmatpush1.bf16.msra.mxu0 %v3364
    %3584 = vmatprep.subr.bf16.mxu0 %v3358
    %3585 = vmatpush1.bf16.msra.mxu0 %v3357
    %3586 = vmatprep.subr.bf16.mxu0 %v3351
    %3587 = vmatpush1.bf16.msra.mxu0 %v3350
    %3588 = vmatprep.subr.bf16.mxu0 %v3344
    %3589 = vmatpush1.bf16.msra.mxu0 %v3343
    %3590 = vmatprep.subr.bf16.mxu0 %v3337
    %3591 = vmatpush1.bf16.msra.mxu0 %v3336
    %3592 = vmatprep.subr.bf16.mxu0 %v3330
    %3593 = vmatpush1.bf16.msra.mxu0 %v3329
    %3594 = vmatprep.subr.bf16.mxu0 %v3323
    %3595 = vmatpush1.bf16.msra.mxu0 %v3322
    %3596 = vmatprep.subr.bf16.mxu0 %v3428
    %3597 = vmatpush2.bf16.msra.mxu0 %v3427
    %3598 = vmatprep.subr.bf16.mxu0 %v3421
    %3599 = vmatpush2.bf16.msra.mxu0 %v3420
    %3600 = vmatprep.subr.bf16.mxu0 %v3414
    %3601 = vmatpush2.bf16.msra.mxu0 %v3413
    %3602 = vmatprep.subr.bf16.mxu0 %v3407
    %3603 = vmatpush2.bf16.msra.mxu0 %v3406
    %3604 = vmatprep.subr.bf16.mxu0 %v3400
    %3605 = vmatpush2.bf16.msra.mxu0 %v3399
    %3606 = vmatprep.subr.bf16.mxu0 %v3393
    %3607 = vmatpush2.bf16.msra.mxu0 %v3392
    %3608 = vmatprep.subr.bf16.mxu0 %v3386
    %3609 = vmatpush2.bf16.msra.mxu0 %v3385
    %3610 = vmatprep.subr.bf16.mxu0 %v3379
    %3611 = vmatpush2.bf16.msra.mxu0 %v3378
    %3612 = vmatprep.mubr.bf16.mxu0 %v2883
    %3613 = vmatmul.mubr.bf16.gmra.mxu0 %v2882
    %v3614 = vpop.f32.mrf.mxu0
    %v3615 = vadd.f32 %v2845, %v3614
    %v3616 = vpop.f32.mrf.mxu0
    %v3617 = vadd.f32 %v2845, %v3616
    %v3618 = vpop.f32.mrf.mxu0
    %v3619 = vadd.f32 %v2850, %v3618
    %v3620 = vpop.f32.mrf.mxu0
    %v3621 = vadd.f32 %v2850, %v3620
    %3622 = vmatprep.mubr.bf16.mxu0 %v2886
    %3623 = vmatmul.mubr.bf16.gmra.mxu0 %v2885
    %v3624 = vpop.f32.mrf.mxu0
    %v3625 = vadd.f32 %v2855, %v3624
    %v3626 = vpop.f32.mrf.mxu0
    %v3627 = vadd.f32 %v2855, %v3626
    %v3628 = vpop.f32.mrf.mxu0
    %v3629 = vadd.f32 %v2860, %v3628
    %v3630 = vpop.f32.mrf.mxu0
    %v3631 = vadd.f32 %v2860, %v3630
    %3632 = vdwg.mxu0
    %3633 = vmatprep.subr.bf16.mxu0 0
    %3634 = vmatpush1.bf16.msra.mxu0 0
    %3635 = vmatprep.subr.bf16.mxu0 0
    %3636 = vmatpush1.bf16.msra.mxu0 0
    %3637 = vmatprep.subr.bf16.mxu0 0
    %3638 = vmatpush1.bf16.msra.mxu0 0
    %3639 = vmatprep.subr.bf16.mxu0 0
    %3640 = vmatpush1.bf16.msra.mxu0 0
    %3641 = vmatprep.subr.bf16.mxu0 0
    %3642 = vmatpush1.bf16.msra.mxu0 0
    %3643 = vmatprep.subr.bf16.mxu0 0
    %3644 = vmatpush1.bf16.msra.mxu0 0
    %3645 = vmatprep.subr.bf16.mxu0 %v3442
    %3646 = vmatpush1.bf16.msra.mxu0 %v3441
    %3647 = vmatprep.subr.bf16.mxu0 %v3435
    %3648 = vmatpush1.bf16.msra.mxu0 %v3434
    %3649 = vmatprep.subr.bf16.mxu0 0
    %3650 = vmatpush2.bf16.msra.mxu0 0
    %3651 = vmatprep.subr.bf16.mxu0 0
    %3652 = vmatpush2.bf16.msra.mxu0 0
    %3653 = vmatprep.subr.bf16.mxu0 0
    %3654 = vmatpush2.bf16.msra.mxu0 0
    %3655 = vmatprep.subr.bf16.mxu0 0
    %3656 = vmatpush2.bf16.msra.mxu0 0
    %3657 = vmatprep.subr.bf16.mxu0 0
    %3658 = vmatpush2.bf16.msra.mxu0 0
    %3659 = vmatprep.subr.bf16.mxu0 0
    %3660 = vmatpush2.bf16.msra.mxu0 0
    %3661 = vmatprep.subr.bf16.mxu0 0
    %3662 = vmatpush2.bf16.msra.mxu0 0
    %3663 = vmatprep.subr.bf16.mxu0 0
    %3664 = vmatpush2.bf16.msra.mxu0 0
    %3665 = vmatprep.mubr.bf16.mxu0 0
    %3666 = vmatmul.mubr.bf16.gmra.mxu0 %v3575
    %v3667 = vpop.f32.mrf.mxu0
    %v3668 = vadd.f32 %v3615, %v3667
    %v3669 = vpop.f32.mrf.mxu0
    %v3670 = vadd.f32 %v3617, %v3669
    %v3671 = vpop.f32.mrf.mxu0
    %v3672 = vadd.f32 %v3619, %v3671
    %v3673 = vpop.f32.mrf.mxu0
    %v3674 = vadd.f32 %v3621, %v3673
    %3675 = vmatprep.mubr.bf16.mxu0 0
    %3676 = vmatmul.mubr.bf16.gmra.mxu0 %v3578
    %v3677 = vpop.f32.mrf.mxu0
    %v3678 = vadd.f32 %v3625, %v3677
    %v3679 = vpop.f32.mrf.mxu0
    %v3680 = vadd.f32 %v3627, %v3679
    %v3681 = vpop.f32.mrf.mxu0
    %v3682 = vadd.f32 %v3629, %v3681
    %v3683 = vpop.f32.mrf.mxu0
    %v3684 = vadd.f32 %v3631, %v3683
    %3685 = vdwg.mxu0
    %3686 = vmatprep.subr.bf16.mxu0 %v3374
    %3687 = vmatpush1.bf16.msra.mxu0 %v3373
    %3688 = vmatprep.subr.bf16.mxu0 %v3367
    %3689 = vmatpush1.bf16.msra.mxu0 %v3366
    %3690 = vmatprep.subr.bf16.mxu0 %v3360
    %3691 = vmatpush1.bf16.msra.mxu0 %v3359
    %3692 = vmatprep.subr.bf16.mxu0 %v3353
    %3693 = vmatpush1.bf16.msra.mxu0 %v3352
    %3694 = vmatprep.subr.bf16.mxu0 %v3346
    %3695 = vmatpush1.bf16.msra.mxu0 %v3345
    %3696 = vmatprep.subr.bf16.mxu0 %v3339
    %3697 = vmatpush1.bf16.msra.mxu0 %v3338
    %3698 = vmatprep.subr.bf16.mxu0 %v3332
    %3699 = vmatpush1.bf16.msra.mxu0 %v3331
    %3700 = vmatprep.subr.bf16.mxu0 %v3325
    %3701 = vmatpush1.bf16.msra.mxu0 %v3324
    %3702 = vmatprep.subr.bf16.mxu0 %v3430
    %3703 = vmatpush2.bf16.msra.mxu0 %v3429
    %3704 = vmatprep.subr.bf16.mxu0 %v3423
    %3705 = vmatpush2.bf16.msra.mxu0 %v3422
    %3706 = vmatprep.subr.bf16.mxu0 %v3416
    %3707 = vmatpush2.bf16.msra.mxu0 %v3415
    %3708 = vmatprep.subr.bf16.mxu0 %v3409
    %3709 = vmatpush2.bf16.msra.mxu0 %v3408
    %3710 = vmatprep.subr.bf16.mxu0 %v3402
    %3711 = vmatpush2.bf16.msra.mxu0 %v3401
    %3712 = vmatprep.subr.bf16.mxu0 %v3395
    %3713 = vmatpush2.bf16.msra.mxu0 %v3394
    %3714 = vmatprep.subr.bf16.mxu0 %v3388
    %3715 = vmatpush2.bf16.msra.mxu0 %v3387
    %3716 = vmatprep.subr.bf16.mxu0 %v3381
    %3717 = vmatpush2.bf16.msra.mxu0 %v3380
    %3718 = vmatprep.mubr.bf16.mxu0 %v2883
    %3719 = vmatmul.mubr.bf16.gmra.mxu0 %v2882
    %v3720 = vpop.f32.mrf.mxu0
    %v3721 = vadd.f32 %v2845, %v3720
    %v3722 = vpop.f32.mrf.mxu0
    %v3723 = vadd.f32 %v2845, %v3722
    %v3724 = vpop.f32.mrf.mxu0
    %v3725 = vadd.f32 %v2850, %v3724
    %v3726 = vpop.f32.mrf.mxu0
    %v3727 = vadd.f32 %v2850, %v3726
    %3728 = vmatprep.mubr.bf16.mxu0 %v2886
    %3729 = vmatmul.mubr.bf16.gmra.mxu0 %v2885
    %v3730 = vpop.f32.mrf.mxu0
    %v3731 = vadd.f32 %v2855, %v3730
    %v3732 = vpop.f32.mrf.mxu0
    %v3733 = vadd.f32 %v2855, %v3732
    %v3734 = vpop.f32.mrf.mxu0
    %v3735 = vadd.f32 %v2860, %v3734
    %v3736 = vpop.f32.mrf.mxu0
    %v3737 = vadd.f32 %v2860, %v3736
    %3738 = vdwg.mxu0
    %3739 = vmatprep.subr.bf16.mxu0 0
    %3740 = vmatpush1.bf16.msra.mxu0 0
    %3741 = vmatprep.subr.bf16.mxu0 0
    %3742 = vmatpush1.bf16.msra.mxu0 0
    %3743 = vmatprep.subr.bf16.mxu0 0
    %3744 = vmatpush1.bf16.msra.mxu0 0
    %3745 = vmatprep.subr.bf16.mxu0 0
    %3746 = vmatpush1.bf16.msra.mxu0 0
    %3747 = vmatprep.subr.bf16.mxu0 0
    %3748 = vmatpush1.bf16.msra.mxu0 0
    %3749 = vmatprep.subr.bf16.mxu0 0
    %3750 = vmatpush1.bf16.msra.mxu0 0
    %3751 = vmatprep.subr.bf16.mxu0 %v3444
    %3752 = vmatpush1.bf16.msra.mxu0 %v3443
    %3753 = vmatprep.subr.bf16.mxu0 %v3437
    %3754 = vmatpush1.bf16.msra.mxu0 %v3436
    %3755 = vmatprep.subr.bf16.mxu0 0
    %3756 = vmatpush2.bf16.msra.mxu0 0
    %3757 = vmatprep.subr.bf16.mxu0 0
    %3758 = vmatpush2.bf16.msra.mxu0 0
    %3759 = vmatprep.subr.bf16.mxu0 0
    %3760 = vmatpush2.bf16.msra.mxu0 0
    %3761 = vmatprep.subr.bf16.mxu0 0
    %3762 = vmatpush2.bf16.msra.mxu0 0
    %3763 = vmatprep.subr.bf16.mxu0 0
    %3764 = vmatpush2.bf16.msra.mxu0 0
    %3765 = vmatprep.subr.bf16.mxu0 0
    %3766 = vmatpush2.bf16.msra.mxu0 0
    %3767 = vmatprep.subr.bf16.mxu0 0
    %3768 = vmatpush2.bf16.msra.mxu0 0
    %3769 = vmatprep.subr.bf16.mxu0 0
    %3770 = vmatpush2.bf16.msra.mxu0 0
    %3771 = vmatprep.mubr.bf16.mxu0 0
    %3772 = vmatmul.mubr.bf16.gmra.mxu0 %v3575
    %v3773 = vpop.f32.mrf.mxu0
    %v3774 = vadd.f32 %v3721, %v3773
    %v3775 = vpop.f32.mrf.mxu0
    %v3776 = vadd.f32 %v3723, %v3775
    %v3777 = vpop.f32.mrf.mxu0
    %v3778 = vadd.f32 %v3725, %v3777
    %v3779 = vpop.f32.mrf.mxu0
    %v3780 = vadd.f32 %v3727, %v3779
    %3781 = vmatprep.mubr.bf16.mxu0 0
    %3782 = vmatmul.mubr.bf16.gmra.mxu0 %v3578
    %v3783 = vpop.f32.mrf.mxu0
    %v3784 = vadd.f32 %v3731, %v3783
    %v3785 = vpop.f32.mrf.mxu0
    %v3786 = vadd.f32 %v3733, %v3785
    %v3787 = vpop.f32.mrf.mxu0
    %v3788 = vadd.f32 %v3735, %v3787
    %v3789 = vpop.f32.mrf.mxu0
    %v3790 = vadd.f32 %v3737, %v3789
    %3791 = vdwg.mxu0
    %3792 = vmatprep.subr.bf16.mxu0 %v3376
    %3793 = vmatpush1.bf16.msra.mxu0 %v3375
    %3794 = vmatprep.subr.bf16.mxu0 %v3369
    %3795 = vmatpush1.bf16.msra.mxu0 %v3368
    %3796 = vmatprep.subr.bf16.mxu0 %v3362
    %3797 = vmatpush1.bf16.msra.mxu0 %v3361
    %3798 = vmatprep.subr.bf16.mxu0 %v3355
    %3799 = vmatpush1.bf16.msra.mxu0 %v3354
    %3800 = vmatprep.subr.bf16.mxu0 %v3348
    %3801 = vmatpush1.bf16.msra.mxu0 %v3347
    %3802 = vmatprep.subr.bf16.mxu0 %v3341
    %3803 = vmatpush1.bf16.msra.mxu0 %v3340
    %3804 = vmatprep.subr.bf16.mxu0 %v3334
    %3805 = vmatpush1.bf16.msra.mxu0 %v3333
    %3806 = vmatprep.subr.bf16.mxu0 %v3327
    %3807 = vmatpush1.bf16.msra.mxu0 %v3326
    %3808 = vmatprep.subr.bf16.mxu0 %v3432
    %3809 = vmatpush2.bf16.msra.mxu0 %v3431
    %3810 = vmatprep.subr.bf16.mxu0 %v3425
    %3811 = vmatpush2.bf16.msra.mxu0 %v3424
    %3812 = vmatprep.subr.bf16.mxu0 %v3418
    %3813 = vmatpush2.bf16.msra.mxu0 %v3417
    %3814 = vmatprep.subr.bf16.mxu0 %v3411
    %3815 = vmatpush2.bf16.msra.mxu0 %v3410
    %3816 = vmatprep.subr.bf16.mxu0 %v3404
    %3817 = vmatpush2.bf16.msra.mxu0 %v3403
    %3818 = vmatprep.subr.bf16.mxu0 %v3397
    %3819 = vmatpush2.bf16.msra.mxu0 %v3396
    %3820 = vmatprep.subr.bf16.mxu0 %v3390
    %3821 = vmatpush2.bf16.msra.mxu0 %v3389
    %3822 = vmatprep.subr.bf16.mxu0 %v3383
    %3823 = vmatpush2.bf16.msra.mxu0 %v3382
    %3824 = vmatprep.mubr.bf16.mxu0 %v2883
    %3825 = vmatmul.mubr.bf16.gmra.mxu0 %v2882
    %v3826 = vpop.f32.mrf.mxu0
    %v3827 = vadd.f32 %v2845, %v3826
    %v3828 = vpop.f32.mrf.mxu0
    %v3829 = vadd.f32 %v2845, %v3828
    %v3830 = vpop.f32.mrf.mxu0
    %v3831 = vadd.f32 %v2850, %v3830
    %v3832 = vpop.f32.mrf.mxu0
    %v3833 = vadd.f32 %v2850, %v3832
    %3834 = vmatprep.mubr.bf16.mxu0 %v2886
    %3835 = vmatmul.mubr.bf16.gmra.mxu0 %v2885
    %v3836 = vpop.f32.mrf.mxu0
    %v3837 = vadd.f32 %v2855, %v3836
    %v3838 = vpop.f32.mrf.mxu0
    %v3839 = vadd.f32 %v2855, %v3838
    %v3840 = vpop.f32.mrf.mxu0
    %v3841 = vadd.f32 %v2860, %v3840
    %v3842 = vpop.f32.mrf.mxu0
    %v3843 = vadd.f32 %v2860, %v3842
    %3844 = vdwg.mxu0
    %3845 = vmatprep.subr.bf16.mxu0 0
    %3846 = vmatpush1.bf16.msra.mxu0 0
    %3847 = vmatprep.subr.bf16.mxu0 0
    %3848 = vmatpush1.bf16.msra.mxu0 0
    %3849 = vmatprep.subr.bf16.mxu0 0
    %3850 = vmatpush1.bf16.msra.mxu0 0
    %3851 = vmatprep.subr.bf16.mxu0 0
    %3852 = vmatpush1.bf16.msra.mxu0 0
    %3853 = vmatprep.subr.bf16.mxu0 0
    %3854 = vmatpush1.bf16.msra.mxu0 0
    %3855 = vmatprep.subr.bf16.mxu0 0
    %3856 = vmatpush1.bf16.msra.mxu0 0
    %3857 = vmatprep.subr.bf16.mxu0 %v3446
    %3858 = vmatpush1.bf16.msra.mxu0 %v3445
    %3859 = vmatprep.subr.bf16.mxu0 %v3439
    %3860 = vmatpush1.bf16.msra.mxu0 %v3438
    %3861 = vmatprep.subr.bf16.mxu0 0
    %3862 = vmatpush2.bf16.msra.mxu0 0
    %3863 = vmatprep.subr.bf16.mxu0 0
    %3864 = vmatpush2.bf16.msra.mxu0 0
    %3865 = vmatprep.subr.bf16.mxu0 0
    %3866 = vmatpush2.bf16.msra.mxu0 0
    %3867 = vmatprep.subr.bf16.mxu0 0
    %3868 = vmatpush2.bf16.msra.mxu0 0
    %3869 = vmatprep.subr.bf16.mxu0 0
    %3870 = vmatpush2.bf16.msra.mxu0 0
    %3871 = vmatprep.subr.bf16.mxu0 0
    %3872 = vmatpush2.bf16.msra.mxu0 0
    %3873 = vmatprep.subr.bf16.mxu0 0
    %3874 = vmatpush2.bf16.msra.mxu0 0
    %3875 = vmatprep.subr.bf16.mxu0 0
    %3876 = vmatpush2.bf16.msra.mxu0 0
    %3877 = vmatprep.mubr.bf16.mxu0 0
    %3878 = vmatmul.mubr.bf16.gmra.mxu0 %v3575
    %v3879 = vpop.f32.mrf.mxu0
    %v3880 = vadd.f32 %v3827, %v3879
    %v3881 = vpop.f32.mrf.mxu0
    %v3882 = vadd.f32 %v3829, %v3881
    %v3883 = vpop.f32.mrf.mxu0
    %v3884 = vadd.f32 %v3831, %v3883
    %v3885 = vpop.f32.mrf.mxu0
    %v3886 = vadd.f32 %v3833, %v3885
    %3887 = vmatprep.mubr.bf16.mxu0 0
    %3888 = vmatmul.mubr.bf16.gmra.mxu0 %v3578
    %v3889 = vpop.f32.mrf.mxu0
    %v3890 = vadd.f32 %v3837, %v3889
    %v3891 = vpop.f32.mrf.mxu0
    %v3892 = vadd.f32 %v3839, %v3891
    %v3893 = vpop.f32.mrf.mxu0
    %v3894 = vadd.f32 %v3841, %v3893
    %v3895 = vpop.f32.mrf.mxu0
    %v3896 = vadd.f32 %v3843, %v3895
    %3897 = vdwg.mxu0
    %3898 = vmatprep.subr.bf16.mxu0 0
    %3899 = vmatpush1.bf16.msra.mxu0 %v3377
    %3900 = vmatprep.subr.bf16.mxu0 0
    %3901 = vmatpush1.bf16.msra.mxu0 %v3370
    %3902 = vmatprep.subr.bf16.mxu0 0
    %3903 = vmatpush1.bf16.msra.mxu0 %v3363
    %3904 = vmatprep.subr.bf16.mxu0 0
    %3905 = vmatpush1.bf16.msra.mxu0 %v3356
    %3906 = vmatprep.subr.bf16.mxu0 0
    %3907 = vmatpush1.bf16.msra.mxu0 %v3349
    %3908 = vmatprep.subr.bf16.mxu0 0
    %3909 = vmatpush1.bf16.msra.mxu0 %v3342
    %3910 = vmatprep.subr.bf16.mxu0 0
    %3911 = vmatpush1.bf16.msra.mxu0 %v3335
    %3912 = vmatprep.subr.bf16.mxu0 0
    %3913 = vmatpush1.bf16.msra.mxu0 %v3328
    %3914 = vmatprep.subr.bf16.mxu0 0
    %3915 = vmatpush2.bf16.msra.mxu0 %v3433
    %3916 = vmatprep.subr.bf16.mxu0 0
    %3917 = vmatpush2.bf16.msra.mxu0 %v3426
    %3918 = vmatprep.subr.bf16.mxu0 0
    %3919 = vmatpush2.bf16.msra.mxu0 %v3419
    %3920 = vmatprep.subr.bf16.mxu0 0
    %3921 = vmatpush2.bf16.msra.mxu0 %v3412
    %3922 = vmatprep.subr.bf16.mxu0 0
    %3923 = vmatpush2.bf16.msra.mxu0 %v3405
    %3924 = vmatprep.subr.bf16.mxu0 0
    %3925 = vmatpush2.bf16.msra.mxu0 %v3398
    %3926 = vmatprep.subr.bf16.mxu0 0
    %3927 = vmatpush2.bf16.msra.mxu0 %v3391
    %3928 = vmatprep.subr.bf16.mxu0 0
    %3929 = vmatpush2.bf16.msra.mxu0 %v3384
    %3930 = vmatprep.mubr.bf16.mxu0 %v2883
    %3931 = vmatmul.mubr.bf16.gmra.mxu0 %v2882
    %v3932 = vpop.f32.mrf.mxu0
    %v3933 = vadd.f32 %v2845, %v3932
    %v3934 = vpop.f32.mrf.mxu0
    %v3935 = vpop.f32.mrf.mxu0
    %v3936 = vadd.f32 %v2850, %v3935
    %v3937 = vpop.f32.mrf.mxu0
    %3938 = vmatprep.mubr.bf16.mxu0 %v2886
    %3939 = vmatmul.mubr.bf16.gmra.mxu0 %v2885
    %v3940 = vpop.f32.mrf.mxu0
    %v3941 = vadd.f32 %v2855, %v3940
    %v3942 = vpop.f32.mrf.mxu0
    %v3943 = vpop.f32.mrf.mxu0
    %v3944 = vadd.f32 %v2860, %v3943
    %v3945 = vpop.f32.mrf.mxu0
    %3946 = vdwg.mxu0
    %3947 = vmatprep.subr.bf16.mxu0 0
    %3948 = vmatpush1.bf16.msra.mxu0 0
    %3949 = vmatprep.subr.bf16.mxu0 0
    %3950 = vmatpush1.bf16.msra.mxu0 0
    %3951 = vmatprep.subr.bf16.mxu0 0
    %3952 = vmatpush1.bf16.msra.mxu0 0
    %3953 = vmatprep.subr.bf16.mxu0 0
    %3954 = vmatpush1.bf16.msra.mxu0 0
    %3955 = vmatprep.subr.bf16.mxu0 0
    %3956 = vmatpush1.bf16.msra.mxu0 0
    %3957 = vmatprep.subr.bf16.mxu0 0
    %3958 = vmatpush1.bf16.msra.mxu0 0
    %3959 = vmatprep.subr.bf16.mxu0 0
    %3960 = vmatpush1.bf16.msra.mxu0 %v3447
    %3961 = vmatprep.subr.bf16.mxu0 0
    %3962 = vmatpush1.bf16.msra.mxu0 %v3440
    %3963 = vmatprep.subr.bf16.mxu0 0
    %3964 = vmatpush2.bf16.msra.mxu0 0
    %3965 = vmatprep.subr.bf16.mxu0 0
    %3966 = vmatpush2.bf16.msra.mxu0 0
    %3967 = vmatprep.subr.bf16.mxu0 0
    %3968 = vmatpush2.bf16.msra.mxu0 0
    %3969 = vmatprep.subr.bf16.mxu0 0
    %3970 = vmatpush2.bf16.msra.mxu0 0
    %3971 = vmatprep.subr.bf16.mxu0 0
    %3972 = vmatpush2.bf16.msra.mxu0 0
    %3973 = vmatprep.subr.bf16.mxu0 0
    %3974 = vmatpush2.bf16.msra.mxu0 0
    %3975 = vmatprep.subr.bf16.mxu0 0
    %3976 = vmatpush2.bf16.msra.mxu0 0
    %3977 = vmatprep.subr.bf16.mxu0 0
    %3978 = vmatpush2.bf16.msra.mxu0 0
    %3979 = vmatprep.mubr.bf16.mxu0 0
    %3980 = vmatmul.mubr.bf16.gmra.mxu0 %v3575
    %v3981 = vpop.f32.mrf.mxu0
    %v3982 = vadd.f32 %v3933, %v3981
    %v3983 = vpop.f32.mrf.mxu0
    %v3984 = vpop.f32.mrf.mxu0
    %v3985 = vadd.f32 %v3936, %v3984
    %v3986 = vpop.f32.mrf.mxu0
    %3987 = vmatprep.mubr.bf16.mxu0 0
    %3988 = vmatmul.mubr.bf16.gmra.mxu0 %v3578
    %v3989 = vpop.f32.mrf.mxu0
    %v3990 = vadd.f32 %v3941, %v3989
    %v3991 = vpop.f32.mrf.mxu0
    %v3992 = vpop.f32.mrf.mxu0
    %v3993 = vadd.f32 %v3944, %v3992
    %v3994 = vpop.f32.mrf.mxu0
    %3995 = vdwg.mxu0
    %vm3996 = vcmp.ge.f32.partialorder %v3668, 0.0
    %vm3997 = vcmp.ge.f32.partialorder %v3670, 0.0
    %vm3998 = vcmp.ge.f32.partialorder %v3774, 0.0
    %vm3999 = vcmp.ge.f32.partialorder %v3776, 0.0
    %vm4000 = vcmp.ge.f32.partialorder %v3880, 0.0
    %vm4001 = vcmp.ge.f32.partialorder %v3882, 0.0
    %vm4002 = vcmp.ge.f32.partialorder %v3982, 0.0
    %vm4003 = vcmp.ge.f32.partialorder %v3672, 0.0
    %vm4004 = vcmp.ge.f32.partialorder %v3674, 0.0
    %vm4005 = vcmp.ge.f32.partialorder %v3778, 0.0
    %vm4006 = vcmp.ge.f32.partialorder %v3780, 0.0
    %vm4007 = vcmp.ge.f32.partialorder %v3884, 0.0
    %vm4008 = vcmp.ge.f32.partialorder %v3886, 0.0
    %vm4009 = vcmp.ge.f32.partialorder %v3985, 0.0
    %vm4010 = vcmp.ge.f32.partialorder %v3678, 0.0
    %vm4011 = vcmp.ge.f32.partialorder %v3680, 0.0
    %vm4012 = vcmp.ge.f32.partialorder %v3784, 0.0
    %vm4013 = vcmp.ge.f32.partialorder %v3786, 0.0
    %vm4014 = vcmp.ge.f32.partialorder %v3890, 0.0
    %vm4015 = vcmp.ge.f32.partialorder %v3892, 0.0
    %vm4016 = vcmp.ge.f32.partialorder %v3990, 0.0
    %vm4017 = vcmp.ge.f32.partialorder %v3682, 0.0
    %vm4018 = vcmp.ge.f32.partialorder %v3684, 0.0
    %vm4019 = vcmp.ge.f32.partialorder %v3788, 0.0
    %vm4020 = vcmp.ge.f32.partialorder %v3790, 0.0
    %vm4021 = vcmp.ge.f32.partialorder %v3894, 0.0
    %vm4022 = vcmp.ge.f32.partialorder %v3896, 0.0
    %vm4023 = vcmp.ge.f32.partialorder %v3993, 0.0
    %vm4024 = vcmp.ge.f32.partialorder %v47, 0.0
    %vm4025 = vcmp.ge.f32.partialorder %v48, 0.0
    %vm4026 = vcmp.ge.f32.partialorder %v49, 0.0
    %vm4027 = vcmp.ge.f32.partialorder %v50, 0.0
    %vm4028 = vcmp.ge.f32.partialorder %v51, 0.0
    %vm4029 = vcmp.ge.f32.partialorder %v52, 0.0
    %vm4030 = vcmp.ge.f32.partialorder %v53, 0.0
    %v4031 = vstv %s55
    %v4032 = vmul.f32 %v4031, %v3668
    %v4033 = vmul.f32 %v4031, %v3670
    %v4034 = vmul.f32 %v4031, %v3774
    %v4035 = vmul.f32 %v4031, %v3776
    %v4036 = vmul.f32 %v4031, %v3880
    %v4037 = vmul.f32 %v4031, %v3882
    %v4038 = vmul.f32 %v4031, %v3982
    %v4039 = vmul.f32 %v4031, %v3672
    %v4040 = vmul.f32 %v4031, %v3674
    %v4041 = vmul.f32 %v4031, %v3778
    %v4042 = vmul.f32 %v4031, %v3780
    %v4043 = vmul.f32 %v4031, %v3884
    %v4044 = vmul.f32 %v4031, %v3886
    %v4045 = vmul.f32 %v4031, %v3985
    %v4046 = vmul.f32 %v4031, %v3678
    %v4047 = vmul.f32 %v4031, %v3680
    %v4048 = vmul.f32 %v4031, %v3784
    %v4049 = vmul.f32 %v4031, %v3786
    %v4050 = vmul.f32 %v4031, %v3890
    %v4051 = vmul.f32 %v4031, %v3892
    %v4052 = vmul.f32 %v4031, %v3990
    %v4053 = vmul.f32 %v4031, %v3682
    %v4054 = vmul.f32 %v4031, %v3684
    %v4055 = vmul.f32 %v4031, %v3788
    %v4056 = vmul.f32 %v4031, %v3790
    %v4057 = vmul.f32 %v4031, %v3894
    %v4058 = vmul.f32 %v4031, %v3896
    %v4059 = vmul.f32 %v4031, %v3993
    %v4060 = vmul.f32 %v4031, %v47
    %v4061 = vmul.f32 %v4031, %v48
    %v4062 = vmul.f32 %v4031, %v49
    %v4063 = vmul.f32 %v4031, %v50
    %v4064 = vmul.f32 %v4031, %v51
    %v4065 = vmul.f32 %v4031, %v52
    %v4066 = vmul.f32 %v4031, %v53
    %v4067 = vsel %vm3996, %v3668, %v4032
    %v4068 = vsel %vm3997, %v3670, %v4033
    %v4069 = vsel %vm3998, %v3774, %v4034
    %v4070 = vsel %vm3999, %v3776, %v4035
    %v4071 = vsel %vm4000, %v3880, %v4036
    %v4072 = vsel %vm4001, %v3882, %v4037
    %v4073 = vsel %vm4002, %v3982, %v4038
    %v4074 = vsel %vm4003, %v3672, %v4039
    %v4075 = vsel %vm4004, %v3674, %v4040
    %v4076 = vsel %vm4005, %v3778, %v4041
    %v4077 = vsel %vm4006, %v3780, %v4042
    %v4078 = vsel %vm4007, %v3884, %v4043
    %v4079 = vsel %vm4008, %v3886, %v4044
    %v4080 = vsel %vm4009, %v3985, %v4045
    %v4081 = vsel %vm4010, %v3678, %v4046
    %v4082 = vsel %vm4011, %v3680, %v4047
    %v4083 = vsel %vm4012, %v3784, %v4048
    %v4084 = vsel %vm4013, %v3786, %v4049
    %v4085 = vsel %vm4014, %v3890, %v4050
    %v4086 = vsel %vm4015, %v3892, %v4051
    %v4087 = vsel %vm4016, %v3990, %v4052
    %v4088 = vsel %vm4017, %v3682, %v4053
    %v4089 = vsel %vm4018, %v3684, %v4054
    %v4090 = vsel %vm4019, %v3788, %v4055
    %v4091 = vsel %vm4020, %v3790, %v4056
    %v4092 = vsel %vm4021, %v3894, %v4057
    %v4093 = vsel %vm4022, %v3896, %v4058
    %v4094 = vsel %vm4023, %v3993, %v4059
    %v4095 = vsel %vm4024, %v47, %v4060
    %v4096 = vsel %vm4025, %v48, %v4061
    %v4097 = vsel %vm4026, %v49, %v4062
    %v4098 = vsel %vm4027, %v50, %v4063
    %v4099 = vsel %vm4028, %v51, %v4064
    %v4100 = vsel %vm4029, %v52, %v4065
    %v4101 = vsel %vm4030, %v53, %v4066
    %v4102 = vmul.f32 %v4067, %v1679
    %v4103 = vmul.f32 %v4068, %v1683
    %v4104 = vmul.f32 %v4069, %v1687
    %v4105 = vmul.f32 %v4070, %v1691
    %v4106 = vmul.f32 %v4071, %v1695
    %v4107 = vmul.f32 %v4072, %v1699
    %v4108 = vmul.f32 %v4073, %v1703
    %v4109 = vmul.f32 %v4074, %v1679
    %v4110 = vmul.f32 %v4075, %v1683
    %v4111 = vmul.f32 %v4076, %v1687
    %v4112 = vmul.f32 %v4077, %v1691
    %v4113 = vmul.f32 %v4078, %v1695
    %v4114 = vmul.f32 %v4079, %v1699
    %v4115 = vmul.f32 %v4080, %v1703
    %v4116 = vmul.f32 %v4081, %v1679
    %v4117 = vmul.f32 %v4082, %v1683
    %v4118 = vmul.f32 %v4083, %v1687
    %v4119 = vmul.f32 %v4084, %v1691
    %v4120 = vmul.f32 %v4085, %v1695
    %v4121 = vmul.f32 %v4086, %v1699
    %v4122 = vmul.f32 %v4087, %v1703
    %v4123 = vmul.f32 %v4088, %v1679
    %v4124 = vmul.f32 %v4089, %v1683
    %v4125 = vmul.f32 %v4090, %v1687
    %v4126 = vmul.f32 %v4091, %v1691
    %v4127 = vmul.f32 %v4092, %v1695
    %v4128 = vmul.f32 %v4093, %v1699
    %v4129 = vmul.f32 %v4094, %v1703
    %v4130 = vmul.f32 %v4095, %v1679
    %v4131 = vmul.f32 %v4096, %v1683
    %v4132 = vmul.f32 %v4097, %v1687
    %v4133 = vmul.f32 %v4098, %v1691
    %v4134 = vmul.f32 %v4099, %v1695
    %v4135 = vmul.f32 %v4100, %v1699
    %v4136 = vmul.f32 %v4101, %v1703
    %v4137 = vsel %vm1739, %v4108, 0.0
    %v4138 = vsel %vm1739, %v4115, 0.0
    %v4139 = vsel %vm1739, %v4122, 0.0
    %v4140 = vsel %vm1739, %v4129, 0.0
    %v4141 = vsel %vm1739, %v4136, 0.0
    %4177 = vrot.lane.b32.xlu0 %v4102, 127
    %v4178 = vpop.permute.xlu0 %4177
    %4179 = vrot.lane.b32.xlu0 %v4103, 127
    %v4180 = vpop.permute.xlu0 %4179
    %4181 = vrot.lane.b32.xlu0 %v4104, 127
    %v4182 = vpop.permute.xlu0 %4181
    %4183 = vrot.lane.b32.xlu0 %v4105, 127
    %v4184 = vpop.permute.xlu0 %4183
    %4185 = vrot.lane.b32.xlu0 %v4106, 127
    %v4186 = vpop.permute.xlu0 %4185
    %4187 = vrot.lane.b32.xlu0 %v4107, 127
    %v4188 = vpop.permute.xlu0 %4187
    %4189 = vrot.lane.b32.xlu0 %v4137, 127
    %v4190 = vpop.permute.xlu0 %4189
    %4191 = vrot.lane.b32.xlu0 %v4109, 127
    %v4192 = vpop.permute.xlu0 %4191
    %4193 = vrot.lane.b32.xlu0 %v4110, 127
    %v4194 = vpop.permute.xlu0 %4193
    %4195 = vrot.lane.b32.xlu0 %v4111, 127
    %v4196 = vpop.permute.xlu0 %4195
    %4197 = vrot.lane.b32.xlu0 %v4112, 127
    %v4198 = vpop.permute.xlu0 %4197
    %4199 = vrot.lane.b32.xlu0 %v4113, 127
    %v4200 = vpop.permute.xlu0 %4199
    %4201 = vrot.lane.b32.xlu0 %v4114, 127
    %v4202 = vpop.permute.xlu0 %4201
    %4203 = vrot.lane.b32.xlu0 %v4138, 127
    %v4204 = vpop.permute.xlu0 %4203
    %4205 = vrot.lane.b32.xlu0 %v4116, 127
    %v4206 = vpop.permute.xlu0 %4205
    %4207 = vrot.lane.b32.xlu0 %v4117, 127
    %v4208 = vpop.permute.xlu0 %4207
    %4209 = vrot.lane.b32.xlu0 %v4118, 127
    %v4210 = vpop.permute.xlu0 %4209
    %4211 = vrot.lane.b32.xlu0 %v4119, 127
    %v4212 = vpop.permute.xlu0 %4211
    %4213 = vrot.lane.b32.xlu0 %v4120, 127
    %v4214 = vpop.permute.xlu0 %4213
    %4215 = vrot.lane.b32.xlu0 %v4121, 127
    %v4216 = vpop.permute.xlu0 %4215
    %4217 = vrot.lane.b32.xlu0 %v4139, 127
    %v4218 = vpop.permute.xlu0 %4217
    %4219 = vrot.lane.b32.xlu0 %v4123, 127
    %v4220 = vpop.permute.xlu0 %4219
    %4221 = vrot.lane.b32.xlu0 %v4124, 127
    %v4222 = vpop.permute.xlu0 %4221
    %4223 = vrot.lane.b32.xlu0 %v4125, 127
    %v4224 = vpop.permute.xlu0 %4223
    %4225 = vrot.lane.b32.xlu0 %v4126, 127
    %v4226 = vpop.permute.xlu0 %4225
    %4227 = vrot.lane.b32.xlu0 %v4127, 127
    %v4228 = vpop.permute.xlu0 %4227
    %4229 = vrot.lane.b32.xlu0 %v4128, 127
    %v4230 = vpop.permute.xlu0 %4229
    %4231 = vrot.lane.b32.xlu0 %v4140, 127
    %v4232 = vpop.permute.xlu0 %4231
    %4233 = vrot.lane.b32.xlu0 %v4130, 127
    %v4234 = vpop.permute.xlu0 %4233
    %4235 = vrot.lane.b32.xlu0 %v4131, 127
    %v4236 = vpop.permute.xlu0 %4235
    %4237 = vrot.lane.b32.xlu0 %v4132, 127
    %v4238 = vpop.permute.xlu0 %4237
    %4239 = vrot.lane.b32.xlu0 %v4133, 127
    %v4240 = vpop.permute.xlu0 %4239
    %4241 = vrot.lane.b32.xlu0 %v4134, 127
    %v4242 = vpop.permute.xlu0 %4241
    %4243 = vrot.lane.b32.xlu0 %v4135, 127
    %v4244 = vpop.permute.xlu0 %4243
    %4245 = vrot.lane.b32.xlu0 %v4141, 127
    %v4246 = vpop.permute.xlu0 %4245
    %v4247 = vsel %vm78, %v1774, %v4178
    %v4248 = vsel %vm78, %v4178, %v4180
    %v4249 = vsel %vm78, %v4180, %v4182
    %v4250 = vsel %vm78, %v4182, %v4184
    %v4251 = vsel %vm78, %v4184, %v4186
    %v4252 = vsel %vm78, %v4186, %v4188
    %v4253 = vsel %vm78, %v4188, %v4190
    %v4254 = vsel %vm78, %v1774, %v4192
    %v4255 = vsel %vm78, %v4192, %v4194
    %v4256 = vsel %vm78, %v4194, %v4196
    %v4257 = vsel %vm78, %v4196, %v4198
    %v4258 = vsel %vm78, %v4198, %v4200
    %v4259 = vsel %vm78, %v4200, %v4202
    %v4260 = vsel %vm78, %v4202, %v4204
    %v4261 = vsel %vm78, %v1774, %v4206
    %v4262 = vsel %vm78, %v4206, %v4208
    %v4263 = vsel %vm78, %v4208, %v4210
    %v4264 = vsel %vm78, %v4210, %v4212
    %v4265 = vsel %vm78, %v4212, %v4214
    %v4266 = vsel %vm78, %v4214, %v4216
    %v4267 = vsel %vm78, %v4216, %v4218
    %v4268 = vsel %vm78, %v1774, %v4220
    %v4269 = vsel %vm78, %v4220, %v4222
    %v4270 = vsel %vm78, %v4222, %v4224
    %v4271 = vsel %vm78, %v4224, %v4226
    %v4272 = vsel %vm78, %v4226, %v4228
    %v4273 = vsel %vm78, %v4228, %v4230
    %v4274 = vsel %vm78, %v4230, %v4232
    %v4275 = vsel %vm78, %v1774, %v4234
    %v4276 = vsel %vm78, %v4234, %v4236
    %v4277 = vsel %vm78, %v4236, %v4238
    %v4278 = vsel %vm78, %v4238, %v4240
    %v4279 = vsel %vm78, %v4240, %v4242
    %v4280 = vsel %vm78, %v4242, %v4244
    %v4281 = vsel %vm78, %v4244, %v4246
    %4322 = vrot.lane.b32.xlu0 %v4102, 126
    %v4323 = vpop.permute.xlu0 %4322
    %4324 = vrot.lane.b32.xlu0 %v4103, 126
    %v4325 = vpop.permute.xlu0 %4324
    %4326 = vrot.lane.b32.xlu0 %v4104, 126
    %v4327 = vpop.permute.xlu0 %4326
    %4328 = vrot.lane.b32.xlu0 %v4105, 126
    %v4329 = vpop.permute.xlu0 %4328
    %4330 = vrot.lane.b32.xlu0 %v4106, 126
    %v4331 = vpop.permute.xlu0 %4330
    %4332 = vrot.lane.b32.xlu0 %v4107, 126
    %v4333 = vpop.permute.xlu0 %4332
    %4334 = vrot.lane.b32.xlu0 %v4137, 126
    %v4335 = vpop.permute.xlu0 %4334
    %4336 = vrot.lane.b32.xlu0 %v4109, 126
    %v4337 = vpop.permute.xlu0 %4336
    %4338 = vrot.lane.b32.xlu0 %v4110, 126
    %v4339 = vpop.permute.xlu0 %4338
    %4340 = vrot.lane.b32.xlu0 %v4111, 126
    %v4341 = vpop.permute.xlu0 %4340
    %4342 = vrot.lane.b32.xlu0 %v4112, 126
    %v4343 = vpop.permute.xlu0 %4342
    %4344 = vrot.lane.b32.xlu0 %v4113, 126
    %v4345 = vpop.permute.xlu0 %4344
    %4346 = vrot.lane.b32.xlu0 %v4114, 126
    %v4347 = vpop.permute.xlu0 %4346
    %4348 = vrot.lane.b32.xlu0 %v4138, 126
    %v4349 = vpop.permute.xlu0 %4348
    %4350 = vrot.lane.b32.xlu0 %v4116, 126
    %v4351 = vpop.permute.xlu0 %4350
    %4352 = vrot.lane.b32.xlu0 %v4117, 126
    %v4353 = vpop.permute.xlu0 %4352
    %4354 = vrot.lane.b32.xlu0 %v4118, 126
    %v4355 = vpop.permute.xlu0 %4354
    %4356 = vrot.lane.b32.xlu0 %v4119, 126
    %v4357 = vpop.permute.xlu0 %4356
    %4358 = vrot.lane.b32.xlu0 %v4120, 126
    %v4359 = vpop.permute.xlu0 %4358
    %4360 = vrot.lane.b32.xlu0 %v4121, 126
    %v4361 = vpop.permute.xlu0 %4360
    %4362 = vrot.lane.b32.xlu0 %v4139, 126
    %v4363 = vpop.permute.xlu0 %4362
    %4364 = vrot.lane.b32.xlu0 %v4123, 126
    %v4365 = vpop.permute.xlu0 %4364
    %4366 = vrot.lane.b32.xlu0 %v4124, 126
    %v4367 = vpop.permute.xlu0 %4366
    %4368 = vrot.lane.b32.xlu0 %v4125, 126
    %v4369 = vpop.permute.xlu0 %4368
    %4370 = vrot.lane.b32.xlu0 %v4126, 126
    %v4371 = vpop.permute.xlu0 %4370
    %4372 = vrot.lane.b32.xlu0 %v4127, 126
    %v4373 = vpop.permute.xlu0 %4372
    %4374 = vrot.lane.b32.xlu0 %v4128, 126
    %v4375 = vpop.permute.xlu0 %4374
    %4376 = vrot.lane.b32.xlu0 %v4140, 126
    %v4377 = vpop.permute.xlu0 %4376
    %4378 = vrot.lane.b32.xlu0 %v4130, 126
    %v4379 = vpop.permute.xlu0 %4378
    %4380 = vrot.lane.b32.xlu0 %v4131, 126
    %v4381 = vpop.permute.xlu0 %4380
    %4382 = vrot.lane.b32.xlu0 %v4132, 126
    %v4383 = vpop.permute.xlu0 %4382
    %4384 = vrot.lane.b32.xlu0 %v4133, 126
    %v4385 = vpop.permute.xlu0 %4384
    %4386 = vrot.lane.b32.xlu0 %v4134, 126
    %v4387 = vpop.permute.xlu0 %4386
    %4388 = vrot.lane.b32.xlu0 %v4135, 126
    %v4389 = vpop.permute.xlu0 %4388
    %4390 = vrot.lane.b32.xlu0 %v4141, 126
    %v4391 = vpop.permute.xlu0 %4390
    %v4392 = vsel %vm106, %v1892, %v4323
    %v4393 = vsel %vm106, %v4323, %v4325
    %v4394 = vsel %vm106, %v4325, %v4327
    %v4395 = vsel %vm106, %v4327, %v4329
    %v4396 = vsel %vm106, %v4329, %v4331
    %v4397 = vsel %vm106, %v4331, %v4333
    %v4398 = vsel %vm106, %v4333, %v4335
    %v4399 = vsel %vm106, %v1892, %v4337
    %v4400 = vsel %vm106, %v4337, %v4339
    %v4401 = vsel %vm106, %v4339, %v4341
    %v4402 = vsel %vm106, %v4341, %v4343
    %v4403 = vsel %vm106, %v4343, %v4345
    %v4404 = vsel %vm106, %v4345, %v4347
    %v4405 = vsel %vm106, %v4347, %v4349
    %v4406 = vsel %vm106, %v1892, %v4351
    %v4407 = vsel %vm106, %v4351, %v4353
    %v4408 = vsel %vm106, %v4353, %v4355
    %v4409 = vsel %vm106, %v4355, %v4357
    %v4410 = vsel %vm106, %v4357, %v4359
    %v4411 = vsel %vm106, %v4359, %v4361
    %v4412 = vsel %vm106, %v4361, %v4363
    %v4413 = vsel %vm106, %v1892, %v4365
    %v4414 = vsel %vm106, %v4365, %v4367
    %v4415 = vsel %vm106, %v4367, %v4369
    %v4416 = vsel %vm106, %v4369, %v4371
    %v4417 = vsel %vm106, %v4371, %v4373
    %v4418 = vsel %vm106, %v4373, %v4375
    %v4419 = vsel %vm106, %v4375, %v4377
    %v4420 = vsel %vm106, %v1892, %v4379
    %v4421 = vsel %vm106, %v4379, %v4381
    %v4422 = vsel %vm106, %v4381, %v4383
    %v4423 = vsel %vm106, %v4383, %v4385
    %v4424 = vsel %vm106, %v4385, %v4387
    %v4425 = vsel %vm106, %v4387, %v4389
    %v4426 = vsel %vm106, %v4389, %v4391
    %4467 = vrot.lane.b32.xlu0 %v4102, 108
    %v4468 = vpop.permute.xlu0 %4467
    %4469 = vrot.lane.b32.xlu0 %v4103, 108
    %v4470 = vpop.permute.xlu0 %4469
    %4471 = vrot.lane.b32.xlu0 %v4104, 108
    %v4472 = vpop.permute.xlu0 %4471
    %4473 = vrot.lane.b32.xlu0 %v4105, 108
    %v4474 = vpop.permute.xlu0 %4473
    %4475 = vrot.lane.b32.xlu0 %v4106, 108
    %v4476 = vpop.permute.xlu0 %4475
    %4477 = vrot.lane.b32.xlu0 %v4107, 108
    %v4478 = vpop.permute.xlu0 %4477
    %4479 = vrot.lane.b32.xlu0 %v4137, 108
    %v4480 = vpop.permute.xlu0 %4479
    %4481 = vrot.lane.b32.xlu0 %v4109, 108
    %v4482 = vpop.permute.xlu0 %4481
    %4483 = vrot.lane.b32.xlu0 %v4110, 108
    %v4484 = vpop.permute.xlu0 %4483
    %4485 = vrot.lane.b32.xlu0 %v4111, 108
    %v4486 = vpop.permute.xlu0 %4485
    %4487 = vrot.lane.b32.xlu0 %v4112, 108
    %v4488 = vpop.permute.xlu0 %4487
    %4489 = vrot.lane.b32.xlu0 %v4113, 108
    %v4490 = vpop.permute.xlu0 %4489
    %4491 = vrot.lane.b32.xlu0 %v4114, 108
    %v4492 = vpop.permute.xlu0 %4491
    %4493 = vrot.lane.b32.xlu0 %v4138, 108
    %v4494 = vpop.permute.xlu0 %4493
    %4495 = vrot.lane.b32.xlu0 %v4116, 108
    %v4496 = vpop.permute.xlu0 %4495
    %4497 = vrot.lane.b32.xlu0 %v4117, 108
    %v4498 = vpop.permute.xlu0 %4497
    %4499 = vrot.lane.b32.xlu0 %v4118, 108
    %v4500 = vpop.permute.xlu0 %4499
    %4501 = vrot.lane.b32.xlu0 %v4119, 108
    %v4502 = vpop.permute.xlu0 %4501
    %4503 = vrot.lane.b32.xlu0 %v4120, 108
    %v4504 = vpop.permute.xlu0 %4503
    %4505 = vrot.lane.b32.xlu0 %v4121, 108
    %v4506 = vpop.permute.xlu0 %4505
    %4507 = vrot.lane.b32.xlu0 %v4139, 108
    %v4508 = vpop.permute.xlu0 %4507
    %4509 = vrot.lane.b32.xlu0 %v4123, 108
    %v4510 = vpop.permute.xlu0 %4509
    %4511 = vrot.lane.b32.xlu0 %v4124, 108
    %v4512 = vpop.permute.xlu0 %4511
    %4513 = vrot.lane.b32.xlu0 %v4125, 108
    %v4514 = vpop.permute.xlu0 %4513
    %4515 = vrot.lane.b32.xlu0 %v4126, 108
    %v4516 = vpop.permute.xlu0 %4515
    %4517 = vrot.lane.b32.xlu0 %v4127, 108
    %v4518 = vpop.permute.xlu0 %4517
    %4519 = vrot.lane.b32.xlu0 %v4128, 108
    %v4520 = vpop.permute.xlu0 %4519
    %4521 = vrot.lane.b32.xlu0 %v4140, 108
    %v4522 = vpop.permute.xlu0 %4521
    %4523 = vrot.lane.b32.xlu0 %v4130, 108
    %v4524 = vpop.permute.xlu0 %4523
    %4525 = vrot.lane.b32.xlu0 %v4131, 108
    %v4526 = vpop.permute.xlu0 %4525
    %4527 = vrot.lane.b32.xlu0 %v4132, 108
    %v4528 = vpop.permute.xlu0 %4527
    %4529 = vrot.lane.b32.xlu0 %v4133, 108
    %v4530 = vpop.permute.xlu0 %4529
    %4531 = vrot.lane.b32.xlu0 %v4134, 108
    %v4532 = vpop.permute.xlu0 %4531
    %4533 = vrot.lane.b32.xlu0 %v4135, 108
    %v4534 = vpop.permute.xlu0 %4533
    %4535 = vrot.lane.b32.xlu0 %v4141, 108
    %v4536 = vpop.permute.xlu0 %4535
    %v4537 = vsel %vm193, %v2010, %v4468
    %v4538 = vsel %vm193, %v4468, %v4470
    %v4539 = vsel %vm193, %v4470, %v4472
    %v4540 = vsel %vm193, %v4472, %v4474
    %v4541 = vsel %vm193, %v4474, %v4476
    %v4542 = vsel %vm193, %v4476, %v4478
    %v4543 = vsel %vm193, %v4478, %v4480
    %v4544 = vsel %vm193, %v2010, %v4482
    %v4545 = vsel %vm193, %v4482, %v4484
    %v4546 = vsel %vm193, %v4484, %v4486
    %v4547 = vsel %vm193, %v4486, %v4488
    %v4548 = vsel %vm193, %v4488, %v4490
    %v4549 = vsel %vm193, %v4490, %v4492
    %v4550 = vsel %vm193, %v4492, %v4494
    %v4551 = vsel %vm193, %v2010, %v4496
    %v4552 = vsel %vm193, %v4496, %v4498
    %v4553 = vsel %vm193, %v4498, %v4500
    %v4554 = vsel %vm193, %v4500, %v4502
    %v4555 = vsel %vm193, %v4502, %v4504
    %v4556 = vsel %vm193, %v4504, %v4506
    %v4557 = vsel %vm193, %v4506, %v4508
    %v4558 = vsel %vm193, %v2010, %v4510
    %v4559 = vsel %vm193, %v4510, %v4512
    %v4560 = vsel %vm193, %v4512, %v4514
    %v4561 = vsel %vm193, %v4514, %v4516
    %v4562 = vsel %vm193, %v4516, %v4518
    %v4563 = vsel %vm193, %v4518, %v4520
    %v4564 = vsel %vm193, %v4520, %v4522
    %v4565 = vsel %vm193, %v2010, %v4524
    %v4566 = vsel %vm193, %v4524, %v4526
    %v4567 = vsel %vm193, %v4526, %v4528
    %v4568 = vsel %vm193, %v4528, %v4530
    %v4569 = vsel %vm193, %v4530, %v4532
    %v4570 = vsel %vm193, %v4532, %v4534
    %v4571 = vsel %vm193, %v4534, %v4536
    %4612 = vrot.lane.b32.xlu0 %v4102, 107
    %v4613 = vpop.permute.xlu0 %4612
    %4614 = vrot.lane.b32.xlu0 %v4103, 107
    %v4615 = vpop.permute.xlu0 %4614
    %4616 = vrot.lane.b32.xlu0 %v4104, 107
    %v4617 = vpop.permute.xlu0 %4616
    %4618 = vrot.lane.b32.xlu0 %v4105, 107
    %v4619 = vpop.permute.xlu0 %4618
    %4620 = vrot.lane.b32.xlu0 %v4106, 107
    %v4621 = vpop.permute.xlu0 %4620
    %4622 = vrot.lane.b32.xlu0 %v4107, 107
    %v4623 = vpop.permute.xlu0 %4622
    %4624 = vrot.lane.b32.xlu0 %v4137, 107
    %v4625 = vpop.permute.xlu0 %4624
    %4626 = vrot.lane.b32.xlu0 %v4109, 107
    %v4627 = vpop.permute.xlu0 %4626
    %4628 = vrot.lane.b32.xlu0 %v4110, 107
    %v4629 = vpop.permute.xlu0 %4628
    %4630 = vrot.lane.b32.xlu0 %v4111, 107
    %v4631 = vpop.permute.xlu0 %4630
    %4632 = vrot.lane.b32.xlu0 %v4112, 107
    %v4633 = vpop.permute.xlu0 %4632
    %4634 = vrot.lane.b32.xlu0 %v4113, 107
    %v4635 = vpop.permute.xlu0 %4634
    %4636 = vrot.lane.b32.xlu0 %v4114, 107
    %v4637 = vpop.permute.xlu0 %4636
    %4638 = vrot.lane.b32.xlu0 %v4138, 107
    %v4639 = vpop.permute.xlu0 %4638
    %4640 = vrot.lane.b32.xlu0 %v4116, 107
    %v4641 = vpop.permute.xlu0 %4640
    %4642 = vrot.lane.b32.xlu0 %v4117, 107
    %v4643 = vpop.permute.xlu0 %4642
    %4644 = vrot.lane.b32.xlu0 %v4118, 107
    %v4645 = vpop.permute.xlu0 %4644
    %4646 = vrot.lane.b32.xlu0 %v4119, 107
    %v4647 = vpop.permute.xlu0 %4646
    %4648 = vrot.lane.b32.xlu0 %v4120, 107
    %v4649 = vpop.permute.xlu0 %4648
    %4650 = vrot.lane.b32.xlu0 %v4121, 107
    %v4651 = vpop.permute.xlu0 %4650
    %4652 = vrot.lane.b32.xlu0 %v4139, 107
    %v4653 = vpop.permute.xlu0 %4652
    %4654 = vrot.lane.b32.xlu0 %v4123, 107
    %v4655 = vpop.permute.xlu0 %4654
    %4656 = vrot.lane.b32.xlu0 %v4124, 107
    %v4657 = vpop.permute.xlu0 %4656
    %4658 = vrot.lane.b32.xlu0 %v4125, 107
    %v4659 = vpop.permute.xlu0 %4658
    %4660 = vrot.lane.b32.xlu0 %v4126, 107
    %v4661 = vpop.permute.xlu0 %4660
    %4662 = vrot.lane.b32.xlu0 %v4127, 107
    %v4663 = vpop.permute.xlu0 %4662
    %4664 = vrot.lane.b32.xlu0 %v4128, 107
    %v4665 = vpop.permute.xlu0 %4664
    %4666 = vrot.lane.b32.xlu0 %v4140, 107
    %v4667 = vpop.permute.xlu0 %4666
    %4668 = vrot.lane.b32.xlu0 %v4130, 107
    %v4669 = vpop.permute.xlu0 %4668
    %4670 = vrot.lane.b32.xlu0 %v4131, 107
    %v4671 = vpop.permute.xlu0 %4670
    %4672 = vrot.lane.b32.xlu0 %v4132, 107
    %v4673 = vpop.permute.xlu0 %4672
    %4674 = vrot.lane.b32.xlu0 %v4133, 107
    %v4675 = vpop.permute.xlu0 %4674
    %4676 = vrot.lane.b32.xlu0 %v4134, 107
    %v4677 = vpop.permute.xlu0 %4676
    %4678 = vrot.lane.b32.xlu0 %v4135, 107
    %v4679 = vpop.permute.xlu0 %4678
    %4680 = vrot.lane.b32.xlu0 %v4141, 107
    %v4681 = vpop.permute.xlu0 %4680
    %v4682 = vsel %vm224, %v4613, %v4615
    %v4683 = vsel %vm224, %v4615, %v4617
    %v4684 = vsel %vm224, %v4617, %v4619
    %v4685 = vsel %vm224, %v4619, %v4621
    %v4686 = vsel %vm224, %v4621, %v4623
    %v4687 = vsel %vm224, %v4623, %v4625
    %v4688 = vsel %vm224, %v4627, %v4629
    %v4689 = vsel %vm224, %v4629, %v4631
    %v4690 = vsel %vm224, %v4631, %v4633
    %v4691 = vsel %vm224, %v4633, %v4635
    %v4692 = vsel %vm224, %v4635, %v4637
    %v4693 = vsel %vm224, %v4637, %v4639
    %v4694 = vsel %vm224, %v4641, %v4643
    %v4695 = vsel %vm224, %v4643, %v4645
    %v4696 = vsel %vm224, %v4645, %v4647
    %v4697 = vsel %vm224, %v4647, %v4649
    %v4698 = vsel %vm224, %v4649, %v4651
    %v4699 = vsel %vm224, %v4651, %v4653
    %v4700 = vsel %vm224, %v4655, %v4657
    %v4701 = vsel %vm224, %v4657, %v4659
    %v4702 = vsel %vm224, %v4659, %v4661
    %v4703 = vsel %vm224, %v4661, %v4663
    %v4704 = vsel %vm224, %v4663, %v4665
    %v4705 = vsel %vm224, %v4665, %v4667
    %v4706 = vsel %vm224, %v4669, %v4671
    %v4707 = vsel %vm224, %v4671, %v4673
    %v4708 = vsel %vm224, %v4673, %v4675
    %v4709 = vsel %vm224, %v4675, %v4677
    %v4710 = vsel %vm224, %v4677, %v4679
    %v4711 = vsel %vm224, %v4679, %v4681
    %4752 = vrot.lane.b32.xlu0 %v4102, 106
    %v4753 = vpop.permute.xlu0 %4752
    %4754 = vrot.lane.b32.xlu0 %v4103, 106
    %v4755 = vpop.permute.xlu0 %4754
    %4756 = vrot.lane.b32.xlu0 %v4104, 106
    %v4757 = vpop.permute.xlu0 %4756
    %4758 = vrot.lane.b32.xlu0 %v4105, 106
    %v4759 = vpop.permute.xlu0 %4758
    %4760 = vrot.lane.b32.xlu0 %v4106, 106
    %v4761 = vpop.permute.xlu0 %4760
    %4762 = vrot.lane.b32.xlu0 %v4107, 106
    %v4763 = vpop.permute.xlu0 %4762
    %4764 = vrot.lane.b32.xlu0 %v4137, 106
    %v4765 = vpop.permute.xlu0 %4764
    %4766 = vrot.lane.b32.xlu0 %v4109, 106
    %v4767 = vpop.permute.xlu0 %4766
    %4768 = vrot.lane.b32.xlu0 %v4110, 106
    %v4769 = vpop.permute.xlu0 %4768
    %4770 = vrot.lane.b32.xlu0 %v4111, 106
    %v4771 = vpop.permute.xlu0 %4770
    %4772 = vrot.lane.b32.xlu0 %v4112, 106
    %v4773 = vpop.permute.xlu0 %4772
    %4774 = vrot.lane.b32.xlu0 %v4113, 106
    %v4775 = vpop.permute.xlu0 %4774
    %4776 = vrot.lane.b32.xlu0 %v4114, 106
    %v4777 = vpop.permute.xlu0 %4776
    %4778 = vrot.lane.b32.xlu0 %v4138, 106
    %v4779 = vpop.permute.xlu0 %4778
    %4780 = vrot.lane.b32.xlu0 %v4116, 106
    %v4781 = vpop.permute.xlu0 %4780
    %4782 = vrot.lane.b32.xlu0 %v4117, 106
    %v4783 = vpop.permute.xlu0 %4782
    %4784 = vrot.lane.b32.xlu0 %v4118, 106
    %v4785 = vpop.permute.xlu0 %4784
    %4786 = vrot.lane.b32.xlu0 %v4119, 106
    %v4787 = vpop.permute.xlu0 %4786
    %4788 = vrot.lane.b32.xlu0 %v4120, 106
    %v4789 = vpop.permute.xlu0 %4788
    %4790 = vrot.lane.b32.xlu0 %v4121, 106
    %v4791 = vpop.permute.xlu0 %4790
    %4792 = vrot.lane.b32.xlu0 %v4139, 106
    %v4793 = vpop.permute.xlu0 %4792
    %4794 = vrot.lane.b32.xlu0 %v4123, 106
    %v4795 = vpop.permute.xlu0 %4794
    %4796 = vrot.lane.b32.xlu0 %v4124, 106
    %v4797 = vpop.permute.xlu0 %4796
    %4798 = vrot.lane.b32.xlu0 %v4125, 106
    %v4799 = vpop.permute.xlu0 %4798
    %4800 = vrot.lane.b32.xlu0 %v4126, 106
    %v4801 = vpop.permute.xlu0 %4800
    %4802 = vrot.lane.b32.xlu0 %v4127, 106
    %v4803 = vpop.permute.xlu0 %4802
    %4804 = vrot.lane.b32.xlu0 %v4128, 106
    %v4805 = vpop.permute.xlu0 %4804
    %4806 = vrot.lane.b32.xlu0 %v4140, 106
    %v4807 = vpop.permute.xlu0 %4806
    %4808 = vrot.lane.b32.xlu0 %v4130, 106
    %v4809 = vpop.permute.xlu0 %4808
    %4810 = vrot.lane.b32.xlu0 %v4131, 106
    %v4811 = vpop.permute.xlu0 %4810
    %4812 = vrot.lane.b32.xlu0 %v4132, 106
    %v4813 = vpop.permute.xlu0 %4812
    %4814 = vrot.lane.b32.xlu0 %v4133, 106
    %v4815 = vpop.permute.xlu0 %4814
    %4816 = vrot.lane.b32.xlu0 %v4134, 106
    %v4817 = vpop.permute.xlu0 %4816
    %4818 = vrot.lane.b32.xlu0 %v4135, 106
    %v4819 = vpop.permute.xlu0 %4818
    %4820 = vrot.lane.b32.xlu0 %v4141, 106
    %v4821 = vpop.permute.xlu0 %4820
    %v4822 = vsel %vm255, %v4753, %v4755
    %v4823 = vsel %vm255, %v4755, %v4757
    %v4824 = vsel %vm255, %v4757, %v4759
    %v4825 = vsel %vm255, %v4759, %v4761
    %v4826 = vsel %vm255, %v4761, %v4763
    %v4827 = vsel %vm255, %v4763, %v4765
    %v4828 = vsel %vm255, %v4767, %v4769
    %v4829 = vsel %vm255, %v4769, %v4771
    %v4830 = vsel %vm255, %v4771, %v4773
    %v4831 = vsel %vm255, %v4773, %v4775
    %v4832 = vsel %vm255, %v4775, %v4777
    %v4833 = vsel %vm255, %v4777, %v4779
    %v4834 = vsel %vm255, %v4781, %v4783
    %v4835 = vsel %vm255, %v4783, %v4785
    %v4836 = vsel %vm255, %v4785, %v4787
    %v4837 = vsel %vm255, %v4787, %v4789
    %v4838 = vsel %vm255, %v4789, %v4791
    %v4839 = vsel %vm255, %v4791, %v4793
    %v4840 = vsel %vm255, %v4795, %v4797
    %v4841 = vsel %vm255, %v4797, %v4799
    %v4842 = vsel %vm255, %v4799, %v4801
    %v4843 = vsel %vm255, %v4801, %v4803
    %v4844 = vsel %vm255, %v4803, %v4805
    %v4845 = vsel %vm255, %v4805, %v4807
    %v4846 = vsel %vm255, %v4809, %v4811
    %v4847 = vsel %vm255, %v4811, %v4813
    %v4848 = vsel %vm255, %v4813, %v4815
    %v4849 = vsel %vm255, %v4815, %v4817
    %v4850 = vsel %vm255, %v4817, %v4819
    %v4851 = vsel %vm255, %v4819, %v4821
    %4892 = vrot.lane.b32.xlu0 %v4102, 88
    %v4893 = vpop.permute.xlu0 %4892
    %4894 = vrot.lane.b32.xlu0 %v4103, 88
    %v4895 = vpop.permute.xlu0 %4894
    %4896 = vrot.lane.b32.xlu0 %v4104, 88
    %v4897 = vpop.permute.xlu0 %4896
    %4898 = vrot.lane.b32.xlu0 %v4105, 88
    %v4899 = vpop.permute.xlu0 %4898
    %4900 = vrot.lane.b32.xlu0 %v4106, 88
    %v4901 = vpop.permute.xlu0 %4900
    %4902 = vrot.lane.b32.xlu0 %v4107, 88
    %v4903 = vpop.permute.xlu0 %4902
    %4904 = vrot.lane.b32.xlu0 %v4137, 88
    %v4905 = vpop.permute.xlu0 %4904
    %4906 = vrot.lane.b32.xlu0 %v4109, 88
    %v4907 = vpop.permute.xlu0 %4906
    %4908 = vrot.lane.b32.xlu0 %v4110, 88
    %v4909 = vpop.permute.xlu0 %4908
    %4910 = vrot.lane.b32.xlu0 %v4111, 88
    %v4911 = vpop.permute.xlu0 %4910
    %4912 = vrot.lane.b32.xlu0 %v4112, 88
    %v4913 = vpop.permute.xlu0 %4912
    %4914 = vrot.lane.b32.xlu0 %v4113, 88
    %v4915 = vpop.permute.xlu0 %4914
    %4916 = vrot.lane.b32.xlu0 %v4114, 88
    %v4917 = vpop.permute.xlu0 %4916
    %4918 = vrot.lane.b32.xlu0 %v4138, 88
    %v4919 = vpop.permute.xlu0 %4918
    %4920 = vrot.lane.b32.xlu0 %v4116, 88
    %v4921 = vpop.permute.xlu0 %4920
    %4922 = vrot.lane.b32.xlu0 %v4117, 88
    %v4923 = vpop.permute.xlu0 %4922
    %4924 = vrot.lane.b32.xlu0 %v4118, 88
    %v4925 = vpop.permute.xlu0 %4924
    %4926 = vrot.lane.b32.xlu0 %v4119, 88
    %v4927 = vpop.permute.xlu0 %4926
    %4928 = vrot.lane.b32.xlu0 %v4120, 88
    %v4929 = vpop.permute.xlu0 %4928
    %4930 = vrot.lane.b32.xlu0 %v4121, 88
    %v4931 = vpop.permute.xlu0 %4930
    %4932 = vrot.lane.b32.xlu0 %v4139, 88
    %v4933 = vpop.permute.xlu0 %4932
    %4934 = vrot.lane.b32.xlu0 %v4123, 88
    %v4935 = vpop.permute.xlu0 %4934
    %4936 = vrot.lane.b32.xlu0 %v4124, 88
    %v4937 = vpop.permute.xlu0 %4936
    %4938 = vrot.lane.b32.xlu0 %v4125, 88
    %v4939 = vpop.permute.xlu0 %4938
    %4940 = vrot.lane.b32.xlu0 %v4126, 88
    %v4941 = vpop.permute.xlu0 %4940
    %4942 = vrot.lane.b32.xlu0 %v4127, 88
    %v4943 = vpop.permute.xlu0 %4942
    %4944 = vrot.lane.b32.xlu0 %v4128, 88
    %v4945 = vpop.permute.xlu0 %4944
    %4946 = vrot.lane.b32.xlu0 %v4140, 88
    %v4947 = vpop.permute.xlu0 %4946
    %4948 = vrot.lane.b32.xlu0 %v4130, 88
    %v4949 = vpop.permute.xlu0 %4948
    %4950 = vrot.lane.b32.xlu0 %v4131, 88
    %v4951 = vpop.permute.xlu0 %4950
    %4952 = vrot.lane.b32.xlu0 %v4132, 88
    %v4953 = vpop.permute.xlu0 %4952
    %4954 = vrot.lane.b32.xlu0 %v4133, 88
    %v4955 = vpop.permute.xlu0 %4954
    %4956 = vrot.lane.b32.xlu0 %v4134, 88
    %v4957 = vpop.permute.xlu0 %4956
    %4958 = vrot.lane.b32.xlu0 %v4135, 88
    %v4959 = vpop.permute.xlu0 %4958
    %4960 = vrot.lane.b32.xlu0 %v4141, 88
    %v4961 = vpop.permute.xlu0 %4960
    %v4962 = vsel %vm348, %v4893, %v4895
    %v4963 = vsel %vm348, %v4895, %v4897
    %v4964 = vsel %vm348, %v4897, %v4899
    %v4965 = vsel %vm348, %v4899, %v4901
    %v4966 = vsel %vm348, %v4901, %v4903
    %v4967 = vsel %vm348, %v4903, %v4905
    %v4968 = vsel %vm348, %v4907, %v4909
    %v4969 = vsel %vm348, %v4909, %v4911
    %v4970 = vsel %vm348, %v4911, %v4913
    %v4971 = vsel %vm348, %v4913, %v4915
    %v4972 = vsel %vm348, %v4915, %v4917
    %v4973 = vsel %vm348, %v4917, %v4919
    %v4974 = vsel %vm348, %v4921, %v4923
    %v4975 = vsel %vm348, %v4923, %v4925
    %v4976 = vsel %vm348, %v4925, %v4927
    %v4977 = vsel %vm348, %v4927, %v4929
    %v4978 = vsel %vm348, %v4929, %v4931
    %v4979 = vsel %vm348, %v4931, %v4933
    %v4980 = vsel %vm348, %v4935, %v4937
    %v4981 = vsel %vm348, %v4937, %v4939
    %v4982 = vsel %vm348, %v4939, %v4941
    %v4983 = vsel %vm348, %v4941, %v4943
    %v4984 = vsel %vm348, %v4943, %v4945
    %v4985 = vsel %vm348, %v4945, %v4947
    %v4986 = vsel %vm348, %v4949, %v4951
    %v4987 = vsel %vm348, %v4951, %v4953
    %v4988 = vsel %vm348, %v4953, %v4955
    %v4989 = vsel %vm348, %v4955, %v4957
    %v4990 = vsel %vm348, %v4957, %v4959
    %v4991 = vsel %vm348, %v4959, %v4961
    %5032 = vrot.lane.b32.xlu0 %v4102, 87
    %v5033 = vpop.permute.xlu0 %5032
    %5034 = vrot.lane.b32.xlu0 %v4103, 87
    %v5035 = vpop.permute.xlu0 %5034
    %5036 = vrot.lane.b32.xlu0 %v4104, 87
    %v5037 = vpop.permute.xlu0 %5036
    %5038 = vrot.lane.b32.xlu0 %v4105, 87
    %v5039 = vpop.permute.xlu0 %5038
    %5040 = vrot.lane.b32.xlu0 %v4106, 87
    %v5041 = vpop.permute.xlu0 %5040
    %5042 = vrot.lane.b32.xlu0 %v4107, 87
    %v5043 = vpop.permute.xlu0 %5042
    %5044 = vrot.lane.b32.xlu0 %v4137, 87
    %v5045 = vpop.permute.xlu0 %5044
    %5046 = vrot.lane.b32.xlu0 %v4109, 87
    %v5047 = vpop.permute.xlu0 %5046
    %5048 = vrot.lane.b32.xlu0 %v4110, 87
    %v5049 = vpop.permute.xlu0 %5048
    %5050 = vrot.lane.b32.xlu0 %v4111, 87
    %v5051 = vpop.permute.xlu0 %5050
    %5052 = vrot.lane.b32.xlu0 %v4112, 87
    %v5053 = vpop.permute.xlu0 %5052
    %5054 = vrot.lane.b32.xlu0 %v4113, 87
    %v5055 = vpop.permute.xlu0 %5054
    %5056 = vrot.lane.b32.xlu0 %v4114, 87
    %v5057 = vpop.permute.xlu0 %5056
    %5058 = vrot.lane.b32.xlu0 %v4138, 87
    %v5059 = vpop.permute.xlu0 %5058
    %5060 = vrot.lane.b32.xlu0 %v4116, 87
    %v5061 = vpop.permute.xlu0 %5060
    %5062 = vrot.lane.b32.xlu0 %v4117, 87
    %v5063 = vpop.permute.xlu0 %5062
    %5064 = vrot.lane.b32.xlu0 %v4118, 87
    %v5065 = vpop.permute.xlu0 %5064
    %5066 = vrot.lane.b32.xlu0 %v4119, 87
    %v5067 = vpop.permute.xlu0 %5066
    %5068 = vrot.lane.b32.xlu0 %v4120, 87
    %v5069 = vpop.permute.xlu0 %5068
    %5070 = vrot.lane.b32.xlu0 %v4121, 87
    %v5071 = vpop.permute.xlu0 %5070
    %5072 = vrot.lane.b32.xlu0 %v4139, 87
    %v5073 = vpop.permute.xlu0 %5072
    %5074 = vrot.lane.b32.xlu0 %v4123, 87
    %v5075 = vpop.permute.xlu0 %5074
    %5076 = vrot.lane.b32.xlu0 %v4124, 87
    %v5077 = vpop.permute.xlu0 %5076
    %5078 = vrot.lane.b32.xlu0 %v4125, 87
    %v5079 = vpop.permute.xlu0 %5078
    %5080 = vrot.lane.b32.xlu0 %v4126, 87
    %v5081 = vpop.permute.xlu0 %5080
    %5082 = vrot.lane.b32.xlu0 %v4127, 87
    %v5083 = vpop.permute.xlu0 %5082
    %5084 = vrot.lane.b32.xlu0 %v4128, 87
    %v5085 = vpop.permute.xlu0 %5084
    %5086 = vrot.lane.b32.xlu0 %v4140, 87
    %v5087 = vpop.permute.xlu0 %5086
    %5088 = vrot.lane.b32.xlu0 %v4130, 87
    %v5089 = vpop.permute.xlu0 %5088
    %5090 = vrot.lane.b32.xlu0 %v4131, 87
    %v5091 = vpop.permute.xlu0 %5090
    %5092 = vrot.lane.b32.xlu0 %v4132, 87
    %v5093 = vpop.permute.xlu0 %5092
    %5094 = vrot.lane.b32.xlu0 %v4133, 87
    %v5095 = vpop.permute.xlu0 %5094
    %5096 = vrot.lane.b32.xlu0 %v4134, 87
    %v5097 = vpop.permute.xlu0 %5096
    %5098 = vrot.lane.b32.xlu0 %v4135, 87
    %v5099 = vpop.permute.xlu0 %5098
    %5100 = vrot.lane.b32.xlu0 %v4141, 87
    %v5101 = vpop.permute.xlu0 %5100
    %v5102 = vsel %vm379, %v5033, %v5035
    %v5103 = vsel %vm379, %v5035, %v5037
    %v5104 = vsel %vm379, %v5037, %v5039
    %v5105 = vsel %vm379, %v5039, %v5041
    %v5106 = vsel %vm379, %v5041, %v5043
    %v5107 = vsel %vm379, %v5043, %v5045
    %v5108 = vsel %vm379, %v5047, %v5049
    %v5109 = vsel %vm379, %v5049, %v5051
    %v5110 = vsel %vm379, %v5051, %v5053
    %v5111 = vsel %vm379, %v5053, %v5055
    %v5112 = vsel %vm379, %v5055, %v5057
    %v5113 = vsel %vm379, %v5057, %v5059
    %v5114 = vsel %vm379, %v5061, %v5063
    %v5115 = vsel %vm379, %v5063, %v5065
    %v5116 = vsel %vm379, %v5065, %v5067
    %v5117 = vsel %vm379, %v5067, %v5069
    %v5118 = vsel %vm379, %v5069, %v5071
    %v5119 = vsel %vm379, %v5071, %v5073
    %v5120 = vsel %vm379, %v5075, %v5077
    %v5121 = vsel %vm379, %v5077, %v5079
    %v5122 = vsel %vm379, %v5079, %v5081
    %v5123 = vsel %vm379, %v5081, %v5083
    %v5124 = vsel %vm379, %v5083, %v5085
    %v5125 = vsel %vm379, %v5085, %v5087
    %v5126 = vsel %vm379, %v5089, %v5091
    %v5127 = vsel %vm379, %v5091, %v5093
    %v5128 = vsel %vm379, %v5093, %v5095
    %v5129 = vsel %vm379, %v5095, %v5097
    %v5130 = vsel %vm379, %v5097, %v5099
    %v5131 = vsel %vm379, %v5099, %v5101
    %5172 = vrot.lane.b32.xlu0 %v4102, 86
    %v5173 = vpop.permute.xlu0 %5172
    %5174 = vrot.lane.b32.xlu0 %v4103, 86
    %v5175 = vpop.permute.xlu0 %5174
    %5176 = vrot.lane.b32.xlu0 %v4104, 86
    %v5177 = vpop.permute.xlu0 %5176
    %5178 = vrot.lane.b32.xlu0 %v4105, 86
    %v5179 = vpop.permute.xlu0 %5178
    %5180 = vrot.lane.b32.xlu0 %v4106, 86
    %v5181 = vpop.permute.xlu0 %5180
    %5182 = vrot.lane.b32.xlu0 %v4107, 86
    %v5183 = vpop.permute.xlu0 %5182
    %5184 = vrot.lane.b32.xlu0 %v4137, 86
    %v5185 = vpop.permute.xlu0 %5184
    %5186 = vrot.lane.b32.xlu0 %v4109, 86
    %v5187 = vpop.permute.xlu0 %5186
    %5188 = vrot.lane.b32.xlu0 %v4110, 86
    %v5189 = vpop.permute.xlu0 %5188
    %5190 = vrot.lane.b32.xlu0 %v4111, 86
    %v5191 = vpop.permute.xlu0 %5190
    %5192 = vrot.lane.b32.xlu0 %v4112, 86
    %v5193 = vpop.permute.xlu0 %5192
    %5194 = vrot.lane.b32.xlu0 %v4113, 86
    %v5195 = vpop.permute.xlu0 %5194
    %5196 = vrot.lane.b32.xlu0 %v4114, 86
    %v5197 = vpop.permute.xlu0 %5196
    %5198 = vrot.lane.b32.xlu0 %v4138, 86
    %v5199 = vpop.permute.xlu0 %5198
    %5200 = vrot.lane.b32.xlu0 %v4116, 86
    %v5201 = vpop.permute.xlu0 %5200
    %5202 = vrot.lane.b32.xlu0 %v4117, 86
    %v5203 = vpop.permute.xlu0 %5202
    %5204 = vrot.lane.b32.xlu0 %v4118, 86
    %v5205 = vpop.permute.xlu0 %5204
    %5206 = vrot.lane.b32.xlu0 %v4119, 86
    %v5207 = vpop.permute.xlu0 %5206
    %5208 = vrot.lane.b32.xlu0 %v4120, 86
    %v5209 = vpop.permute.xlu0 %5208
    %5210 = vrot.lane.b32.xlu0 %v4121, 86
    %v5211 = vpop.permute.xlu0 %5210
    %5212 = vrot.lane.b32.xlu0 %v4139, 86
    %v5213 = vpop.permute.xlu0 %5212
    %5214 = vrot.lane.b32.xlu0 %v4123, 86
    %v5215 = vpop.permute.xlu0 %5214
    %5216 = vrot.lane.b32.xlu0 %v4124, 86
    %v5217 = vpop.permute.xlu0 %5216
    %5218 = vrot.lane.b32.xlu0 %v4125, 86
    %v5219 = vpop.permute.xlu0 %5218
    %5220 = vrot.lane.b32.xlu0 %v4126, 86
    %v5221 = vpop.permute.xlu0 %5220
    %5222 = vrot.lane.b32.xlu0 %v4127, 86
    %v5223 = vpop.permute.xlu0 %5222
    %5224 = vrot.lane.b32.xlu0 %v4128, 86
    %v5225 = vpop.permute.xlu0 %5224
    %5226 = vrot.lane.b32.xlu0 %v4140, 86
    %v5227 = vpop.permute.xlu0 %5226
    %5228 = vrot.lane.b32.xlu0 %v4130, 86
    %v5229 = vpop.permute.xlu0 %5228
    %5230 = vrot.lane.b32.xlu0 %v4131, 86
    %v5231 = vpop.permute.xlu0 %5230
    %5232 = vrot.lane.b32.xlu0 %v4132, 86
    %v5233 = vpop.permute.xlu0 %5232
    %5234 = vrot.lane.b32.xlu0 %v4133, 86
    %v5235 = vpop.permute.xlu0 %5234
    %5236 = vrot.lane.b32.xlu0 %v4134, 86
    %v5237 = vpop.permute.xlu0 %5236
    %5238 = vrot.lane.b32.xlu0 %v4135, 86
    %v5239 = vpop.permute.xlu0 %5238
    %5240 = vrot.lane.b32.xlu0 %v4141, 86
    %v5241 = vpop.permute.xlu0 %5240
    %v5242 = vsel %vm408, %v5173, %v5175
    %v5243 = vsel %vm408, %v5175, %v5177
    %v5244 = vsel %vm408, %v5177, %v5179
    %v5245 = vsel %vm408, %v5179, %v5181
    %v5246 = vsel %vm408, %v5181, %v5183
    %v5247 = vsel %vm408, %v5183, %v5185
    %v5248 = vsel %vm408, %v5187, %v5189
    %v5249 = vsel %vm408, %v5189, %v5191
    %v5250 = vsel %vm408, %v5191, %v5193
    %v5251 = vsel %vm408, %v5193, %v5195
    %v5252 = vsel %vm408, %v5195, %v5197
    %v5253 = vsel %vm408, %v5197, %v5199
    %v5254 = vsel %vm408, %v5201, %v5203
    %v5255 = vsel %vm408, %v5203, %v5205
    %v5256 = vsel %vm408, %v5205, %v5207
    %v5257 = vsel %vm408, %v5207, %v5209
    %v5258 = vsel %vm408, %v5209, %v5211
    %v5259 = vsel %vm408, %v5211, %v5213
    %v5260 = vsel %vm408, %v5215, %v5217
    %v5261 = vsel %vm408, %v5217, %v5219
    %v5262 = vsel %vm408, %v5219, %v5221
    %v5263 = vsel %vm408, %v5221, %v5223
    %v5264 = vsel %vm408, %v5223, %v5225
    %v5265 = vsel %vm408, %v5225, %v5227
    %v5266 = vsel %vm408, %v5229, %v5231
    %v5267 = vsel %vm408, %v5231, %v5233
    %v5268 = vsel %vm408, %v5233, %v5235
    %v5269 = vsel %vm408, %v5235, %v5237
    %v5270 = vsel %vm408, %v5237, %v5239
    %v5271 = vsel %vm408, %v5239, %v5241
    %v5312 = vpack.c.bf16 %v4109, %v4102
    %v5313 = vpack.c.bf16 %v4110, %v4103
    %v5314 = vpack.c.bf16 %v4111, %v4104
    %v5315 = vpack.c.bf16 %v4112, %v4105
    %v5316 = vpack.c.bf16 %v4113, %v4106
    %v5317 = vpack.c.bf16 %v4114, %v4107
    %v5318 = vpack.c.bf16 %v4138, %v4137
    %v5319 = vpack.c.bf16 %v4123, %v4116
    %v5320 = vpack.c.bf16 %v4124, %v4117
    %v5321 = vpack.c.bf16 %v4125, %v4118
    %v5322 = vpack.c.bf16 %v4126, %v4119
    %v5323 = vpack.c.bf16 %v4127, %v4120
    %v5324 = vpack.c.bf16 %v4128, %v4121
    %v5325 = vpack.c.bf16 %v4140, %v4139
    %v5326 = vpack.c.bf16 %v4247, 0.0
    %v5327 = vpack.c.bf16 %v4248, %v4130
    %v5328 = vpack.c.bf16 %v4249, %v4131
    %v5329 = vpack.c.bf16 %v4250, %v4132
    %v5330 = vpack.c.bf16 %v4251, %v4133
    %v5331 = vpack.c.bf16 %v4252, %v4134
    %v5332 = vpack.c.bf16 %v4253, %v4135
    %v5333 = vpack.c.bf16 %v4190, %v4141
    %v5334 = vpack.c.bf16 %v4261, %v4254
    %v5335 = vpack.c.bf16 %v4262, %v4255
    %v5336 = vpack.c.bf16 %v4263, %v4256
    %v5337 = vpack.c.bf16 %v4264, %v4257
    %v5338 = vpack.c.bf16 %v4265, %v4258
    %v5339 = vpack.c.bf16 %v4266, %v4259
    %v5340 = vpack.c.bf16 %v4267, %v4260
    %v5341 = vpack.c.bf16 %v4218, %v4204
    %v5342 = vpack.c.bf16 %v4275, %v4268
    %v5343 = vpack.c.bf16 %v4276, %v4269
    %v5344 = vpack.c.bf16 %v4277, %v4270
    %v5345 = vpack.c.bf16 %v4278, %v4271
    %v5346 = vpack.c.bf16 %v4279, %v4272
    %v5347 = vpack.c.bf16 %v4280, %v4273
    %v5348 = vpack.c.bf16 %v4281, %v4274
    %v5349 = vpack.c.bf16 %v4246, %v4232
    %v5350 = vpack.c.bf16 %v4399, %v4392
    %v5351 = vpack.c.bf16 %v4400, %v4393
    %v5352 = vpack.c.bf16 %v4401, %v4394
    %v5353 = vpack.c.bf16 %v4402, %v4395
    %v5354 = vpack.c.bf16 %v4403, %v4396
    %v5355 = vpack.c.bf16 %v4404, %v4397
    %v5356 = vpack.c.bf16 %v4405, %v4398
    %v5357 = vpack.c.bf16 %v4349, %v4335
    %v5358 = vpack.c.bf16 %v4413, %v4406
    %v5359 = vpack.c.bf16 %v4414, %v4407
    %v5360 = vpack.c.bf16 %v4415, %v4408
    %v5361 = vpack.c.bf16 %v4416, %v4409
    %v5362 = vpack.c.bf16 %v4417, %v4410
    %v5363 = vpack.c.bf16 %v4418, %v4411
    %v5364 = vpack.c.bf16 %v4419, %v4412
    %v5365 = vpack.c.bf16 %v4377, %v4363
    %v5366 = vpack.c.bf16 %v4537, %v4420
    %v5367 = vpack.c.bf16 %v4538, %v4421
    %v5368 = vpack.c.bf16 %v4539, %v4422
    %v5369 = vpack.c.bf16 %v4540, %v4423
    %v5370 = vpack.c.bf16 %v4541, %v4424
    %v5371 = vpack.c.bf16 %v4542, %v4425
    %v5372 = vpack.c.bf16 %v4543, %v4426
    %v5373 = vpack.c.bf16 %v4480, %v4391
    %v5374 = vpack.c.bf16 %v4551, %v4544
    %v5375 = vpack.c.bf16 %v4552, %v4545
    %v5376 = vpack.c.bf16 %v4553, %v4546
    %v5377 = vpack.c.bf16 %v4554, %v4547
    %v5378 = vpack.c.bf16 %v4555, %v4548
    %v5379 = vpack.c.bf16 %v4556, %v4549
    %v5380 = vpack.c.bf16 %v4557, %v4550
    %v5381 = vpack.c.bf16 %v4508, %v4494
    %v5382 = vpack.c.bf16 %v4565, %v4558
    %v5383 = vpack.c.bf16 %v4566, %v4559
    %v5384 = vpack.c.bf16 %v4567, %v4560
    %v5385 = vpack.c.bf16 %v4568, %v4561
    %v5386 = vpack.c.bf16 %v4569, %v4562
    %v5387 = vpack.c.bf16 %v4570, %v4563
    %v5388 = vpack.c.bf16 %v4571, %v4564
    %v5389 = vpack.c.bf16 %v4536, %v4522
    %v5390 = vpack.c.bf16 %v4627, %v4613
    %v5391 = vpack.c.bf16 %v4688, %v4682
    %v5392 = vpack.c.bf16 %v4689, %v4683
    %v5393 = vpack.c.bf16 %v4690, %v4684
    %v5394 = vpack.c.bf16 %v4691, %v4685
    %v5395 = vpack.c.bf16 %v4692, %v4686
    %v5396 = vpack.c.bf16 %v4693, %v4687
    %v5397 = vpack.c.bf16 %v4639, %v4625
    %v5398 = vpack.c.bf16 %v4655, %v4641
    %v5399 = vpack.c.bf16 %v4700, %v4694
    %v5400 = vpack.c.bf16 %v4701, %v4695
    %v5401 = vpack.c.bf16 %v4702, %v4696
    %v5402 = vpack.c.bf16 %v4703, %v4697
    %v5403 = vpack.c.bf16 %v4704, %v4698
    %v5404 = vpack.c.bf16 %v4705, %v4699
    %v5405 = vpack.c.bf16 %v4667, %v4653
    %v5406 = vpack.c.bf16 %v4753, %v4669
    %v5407 = vpack.c.bf16 %v4822, %v4706
    %v5408 = vpack.c.bf16 %v4823, %v4707
    %v5409 = vpack.c.bf16 %v4824, %v4708
    %v5410 = vpack.c.bf16 %v4825, %v4709
    %v5411 = vpack.c.bf16 %v4826, %v4710
    %v5412 = vpack.c.bf16 %v4827, %v4711
    %v5413 = vpack.c.bf16 %v4765, %v4681
    %v5414 = vpack.c.bf16 %v4781, %v4767
    %v5415 = vpack.c.bf16 %v4834, %v4828
    %v5416 = vpack.c.bf16 %v4835, %v4829
    %v5417 = vpack.c.bf16 %v4836, %v4830
    %v5418 = vpack.c.bf16 %v4837, %v4831
    %v5419 = vpack.c.bf16 %v4838, %v4832
    %v5420 = vpack.c.bf16 %v4839, %v4833
    %v5421 = vpack.c.bf16 %v4793, %v4779
    %v5422 = vpack.c.bf16 %v4809, %v4795
    %v5423 = vpack.c.bf16 %v4846, %v4840
    %v5424 = vpack.c.bf16 %v4847, %v4841
    %v5425 = vpack.c.bf16 %v4848, %v4842
    %v5426 = vpack.c.bf16 %v4849, %v4843
    %v5427 = vpack.c.bf16 %v4850, %v4844
    %v5428 = vpack.c.bf16 %v4851, %v4845
    %v5429 = vpack.c.bf16 %v4821, %v4807
    %v5430 = vpack.c.bf16 %v4907, %v4893
    %v5431 = vpack.c.bf16 %v4968, %v4962
    %v5432 = vpack.c.bf16 %v4969, %v4963
    %v5433 = vpack.c.bf16 %v4970, %v4964
    %v5434 = vpack.c.bf16 %v4971, %v4965
    %v5435 = vpack.c.bf16 %v4972, %v4966
    %v5436 = vpack.c.bf16 %v4973, %v4967
    %v5437 = vpack.c.bf16 %v4919, %v4905
    %v5438 = vpack.c.bf16 %v4935, %v4921
    %v5439 = vpack.c.bf16 %v4980, %v4974
    %v5440 = vpack.c.bf16 %v4981, %v4975
    %v5441 = vpack.c.bf16 %v4982, %v4976
    %v5442 = vpack.c.bf16 %v4983, %v4977
    %v5443 = vpack.c.bf16 %v4984, %v4978
    %v5444 = vpack.c.bf16 %v4985, %v4979
    %v5445 = vpack.c.bf16 %v4947, %v4933
    %v5446 = vpack.c.bf16 %v5033, %v4949
    %v5447 = vpack.c.bf16 %v5102, %v4986
    %v5448 = vpack.c.bf16 %v5103, %v4987
    %v5449 = vpack.c.bf16 %v5104, %v4988
    %v5450 = vpack.c.bf16 %v5105, %v4989
    %v5451 = vpack.c.bf16 %v5106, %v4990
    %v5452 = vpack.c.bf16 %v5107, %v4991
    %v5453 = vpack.c.bf16 %v5045, %v4961
    %v5454 = vpack.c.bf16 %v5061, %v5047
    %v5455 = vpack.c.bf16 %v5114, %v5108
    %v5456 = vpack.c.bf16 %v5115, %v5109
    %v5457 = vpack.c.bf16 %v5116, %v5110
    %v5458 = vpack.c.bf16 %v5117, %v5111
    %v5459 = vpack.c.bf16 %v5118, %v5112
    %v5460 = vpack.c.bf16 %v5119, %v5113
    %v5461 = vpack.c.bf16 %v5073, %v5059
    %v5462 = vpack.c.bf16 %v5089, %v5075
    %v5463 = vpack.c.bf16 %v5126, %v5120
    %v5464 = vpack.c.bf16 %v5127, %v5121
    %v5465 = vpack.c.bf16 %v5128, %v5122
    %v5466 = vpack.c.bf16 %v5129, %v5123
    %v5467 = vpack.c.bf16 %v5130, %v5124
    %v5468 = vpack.c.bf16 %v5131, %v5125
    %v5469 = vpack.c.bf16 %v5101, %v5087
    %v5470 = vpack.c.bf16 %v5187, %v5173
    %v5471 = vpack.c.bf16 %v5248, %v5242
    %v5472 = vpack.c.bf16 %v5249, %v5243
    %v5473 = vpack.c.bf16 %v5250, %v5244
    %v5474 = vpack.c.bf16 %v5251, %v5245
    %v5475 = vpack.c.bf16 %v5252, %v5246
    %v5476 = vpack.c.bf16 %v5253, %v5247
    %v5477 = vpack.c.bf16 %v5199, %v5185
    %v5478 = vpack.c.bf16 %v5215, %v5201
    %v5479 = vpack.c.bf16 %v5260, %v5254
    %v5480 = vpack.c.bf16 %v5261, %v5255
    %v5481 = vpack.c.bf16 %v5262, %v5256
    %v5482 = vpack.c.bf16 %v5263, %v5257
    %v5483 = vpack.c.bf16 %v5264, %v5258
    %v5484 = vpack.c.bf16 %v5265, %v5259
    %v5485 = vpack.c.bf16 %v5227, %v5213
    %v5486 = vpack.c.bf16 %v5229, %v5229
    %v5487 = vpack.c.bf16 %v5266, %v5266
    %v5488 = vpack.c.bf16 %v5267, %v5267
    %v5489 = vpack.c.bf16 %v5268, %v5268
    %v5490 = vpack.c.bf16 %v5269, %v5269
    %v5491 = vpack.c.bf16 %v5270, %v5270
    %v5492 = vpack.c.bf16 %v5271, %v5271
    %v5493 = vpack.c.bf16 %v5241, %v5241
    %v5494 = vld [vmem:[%s5] sm:$0xff]
    %v5495 = vld [vmem:[%s5 + $0x8] sm:$0xf]
    %v5496 = vld [vmem:[%s6] sm:$0xff]
    %5498 = vset.pattern.permute.xlu0 0
    %5499 = vperm.xlu0 %5498, %v5496
    %v5500 = vpop.permute.xlu0 %5499
    %v5504 = vunpack.c.l.b16 %v5494
    %v5505 = vunpack.c.h.b16 %v5494
    %v5506 = vunpack.c.l.b16 %v5495
    %v5507 = vpack.c.b16 %v5504, %v5504
    %v5508 = vpack.c.b16 %v5505, %v5505
    %v5509 = vpack.c.b16 %v5506, %v5506
    %5694 = vrot.lane.b32.xlu0 %v5312, 21
    %v5695 = vpop.permute.xlu0 %5694
    %5696 = vrot.lane.b32.xlu0 %v5313, 21
    %v5697 = vpop.permute.xlu0 %5696
    %5698 = vrot.lane.b32.xlu0 %v5314, 21
    %v5699 = vpop.permute.xlu0 %5698
    %5700 = vrot.lane.b32.xlu0 %v5315, 21
    %v5701 = vpop.permute.xlu0 %5700
    %5702 = vrot.lane.b32.xlu0 %v5316, 21
    %v5703 = vpop.permute.xlu0 %5702
    %5704 = vrot.lane.b32.xlu0 %v5317, 21
    %v5705 = vpop.permute.xlu0 %5704
    %5706 = vrot.lane.b32.xlu0 %v5318, 21
    %v5707 = vpop.permute.xlu0 %5706
    %5708 = vrot.lane.b32.xlu0 %v5319, 21
    %v5709 = vpop.permute.xlu0 %5708
    %5710 = vrot.lane.b32.xlu0 %v5320, 21
    %v5711 = vpop.permute.xlu0 %5710
    %5712 = vrot.lane.b32.xlu0 %v5321, 21
    %v5713 = vpop.permute.xlu0 %5712
    %5714 = vrot.lane.b32.xlu0 %v5322, 21
    %v5715 = vpop.permute.xlu0 %5714
    %5716 = vrot.lane.b32.xlu0 %v5323, 21
    %v5717 = vpop.permute.xlu0 %5716
    %5718 = vrot.lane.b32.xlu0 %v5324, 21
    %v5719 = vpop.permute.xlu0 %5718
    %5720 = vrot.lane.b32.xlu0 %v5325, 21
    %v5721 = vpop.permute.xlu0 %5720
    %5722 = vrot.lane.b32.xlu0 %v5326, 21
    %v5723 = vpop.permute.xlu0 %5722
    %5724 = vrot.lane.b32.xlu0 %v5327, 21
    %v5725 = vpop.permute.xlu0 %5724
    %5726 = vrot.lane.b32.xlu0 %v5328, 21
    %v5727 = vpop.permute.xlu0 %5726
    %5728 = vrot.lane.b32.xlu0 %v5329, 21
    %v5729 = vpop.permute.xlu0 %5728
    %5730 = vrot.lane.b32.xlu0 %v5330, 21
    %v5731 = vpop.permute.xlu0 %5730
    %5732 = vrot.lane.b32.xlu0 %v5331, 21
    %v5733 = vpop.permute.xlu0 %5732
    %5734 = vrot.lane.b32.xlu0 %v5332, 21
    %v5735 = vpop.permute.xlu0 %5734
    %5736 = vrot.lane.b32.xlu0 %v5333, 21
    %v5737 = vpop.permute.xlu0 %5736
    %5738 = vrot.lane.b32.xlu0 %v5334, 21
    %v5739 = vpop.permute.xlu0 %5738
    %5740 = vrot.lane.b32.xlu0 %v5335, 21
    %v5741 = vpop.permute.xlu0 %5740
    %5742 = vrot.lane.b32.xlu0 %v5336, 21
    %v5743 = vpop.permute.xlu0 %5742
    %5744 = vrot.lane.b32.xlu0 %v5337, 21
    %v5745 = vpop.permute.xlu0 %5744
    %5746 = vrot.lane.b32.xlu0 %v5338, 21
    %v5747 = vpop.permute.xlu0 %5746
    %5748 = vrot.lane.b32.xlu0 %v5339, 21
    %v5749 = vpop.permute.xlu0 %5748
    %5750 = vrot.lane.b32.xlu0 %v5340, 21
    %v5751 = vpop.permute.xlu0 %5750
    %5752 = vrot.lane.b32.xlu0 %v5341, 21
    %v5753 = vpop.permute.xlu0 %5752
    %5754 = vrot.lane.b32.xlu0 %v5342, 21
    %v5755 = vpop.permute.xlu0 %5754
    %5756 = vrot.lane.b32.xlu0 %v5343, 21
    %v5757 = vpop.permute.xlu0 %5756
    %5758 = vrot.lane.b32.xlu0 %v5344, 21
    %v5759 = vpop.permute.xlu0 %5758
    %5760 = vrot.lane.b32.xlu0 %v5345, 21
    %v5761 = vpop.permute.xlu0 %5760
    %5762 = vrot.lane.b32.xlu0 %v5346, 21
    %v5763 = vpop.permute.xlu0 %5762
    %5764 = vrot.lane.b32.xlu0 %v5347, 21
    %v5765 = vpop.permute.xlu0 %5764
    %5766 = vrot.lane.b32.xlu0 %v5348, 21
    %v5767 = vpop.permute.xlu0 %5766
    %5768 = vrot.lane.b32.xlu0 %v5349, 21
    %v5769 = vpop.permute.xlu0 %5768
    %5770 = vrot.lane.b32.xlu0 %v5350, 21
    %v5771 = vpop.permute.xlu0 %5770
    %5772 = vrot.lane.b32.xlu0 %v5351, 21
    %v5773 = vpop.permute.xlu0 %5772
    %5774 = vrot.lane.b32.xlu0 %v5352, 21
    %v5775 = vpop.permute.xlu0 %5774
    %5776 = vrot.lane.b32.xlu0 %v5353, 21
    %v5777 = vpop.permute.xlu0 %5776
    %5778 = vrot.lane.b32.xlu0 %v5354, 21
    %v5779 = vpop.permute.xlu0 %5778
    %5780 = vrot.lane.b32.xlu0 %v5355, 21
    %v5781 = vpop.permute.xlu0 %5780
    %5782 = vrot.lane.b32.xlu0 %v5356, 21
    %v5783 = vpop.permute.xlu0 %5782
    %5784 = vrot.lane.b32.xlu0 %v5357, 21
    %v5785 = vpop.permute.xlu0 %5784
    %5786 = vrot.lane.b32.xlu0 %v5358, 21
    %v5787 = vpop.permute.xlu0 %5786
    %5788 = vrot.lane.b32.xlu0 %v5359, 21
    %v5789 = vpop.permute.xlu0 %5788
    %5790 = vrot.lane.b32.xlu0 %v5360, 21
    %v5791 = vpop.permute.xlu0 %5790
    %5792 = vrot.lane.b32.xlu0 %v5361, 21
    %v5793 = vpop.permute.xlu0 %5792
    %5794 = vrot.lane.b32.xlu0 %v5362, 21
    %v5795 = vpop.permute.xlu0 %5794
    %5796 = vrot.lane.b32.xlu0 %v5363, 21
    %v5797 = vpop.permute.xlu0 %5796
    %5798 = vrot.lane.b32.xlu0 %v5364, 21
    %v5799 = vpop.permute.xlu0 %5798
    %5800 = vrot.lane.b32.xlu0 %v5365, 21
    %v5801 = vpop.permute.xlu0 %5800
    %5802 = vrot.lane.b32.xlu0 %v5366, 21
    %v5803 = vpop.permute.xlu0 %5802
    %5804 = vrot.lane.b32.xlu0 %v5367, 21
    %v5805 = vpop.permute.xlu0 %5804
    %5806 = vrot.lane.b32.xlu0 %v5368, 21
    %v5807 = vpop.permute.xlu0 %5806
    %5808 = vrot.lane.b32.xlu0 %v5369, 21
    %v5809 = vpop.permute.xlu0 %5808
    %5810 = vrot.lane.b32.xlu0 %v5370, 21
    %v5811 = vpop.permute.xlu0 %5810
    %5812 = vrot.lane.b32.xlu0 %v5371, 21
    %v5813 = vpop.permute.xlu0 %5812
    %5814 = vrot.lane.b32.xlu0 %v5372, 21
    %v5815 = vpop.permute.xlu0 %5814
    %5816 = vrot.lane.b32.xlu0 %v5373, 21
    %v5817 = vpop.permute.xlu0 %5816
    %5818 = vrot.lane.b32.xlu0 %v5374, 21
    %v5819 = vpop.permute.xlu0 %5818
    %5820 = vrot.lane.b32.xlu0 %v5375, 21
    %v5821 = vpop.permute.xlu0 %5820
    %5822 = vrot.lane.b32.xlu0 %v5376, 21
    %v5823 = vpop.permute.xlu0 %5822
    %5824 = vrot.lane.b32.xlu0 %v5377, 21
    %v5825 = vpop.permute.xlu0 %5824
    %5826 = vrot.lane.b32.xlu0 %v5378, 21
    %v5827 = vpop.permute.xlu0 %5826
    %5828 = vrot.lane.b32.xlu0 %v5379, 21
    %v5829 = vpop.permute.xlu0 %5828
    %5830 = vrot.lane.b32.xlu0 %v5380, 21
    %v5831 = vpop.permute.xlu0 %5830
    %5832 = vrot.lane.b32.xlu0 %v5381, 21
    %v5833 = vpop.permute.xlu0 %5832
    %5834 = vrot.lane.b32.xlu0 %v5382, 21
    %v5835 = vpop.permute.xlu0 %5834
    %5836 = vrot.lane.b32.xlu0 %v5383, 21
    %v5837 = vpop.permute.xlu0 %5836
    %5838 = vrot.lane.b32.xlu0 %v5384, 21
    %v5839 = vpop.permute.xlu0 %5838
    %5840 = vrot.lane.b32.xlu0 %v5385, 21
    %v5841 = vpop.permute.xlu0 %5840
    %5842 = vrot.lane.b32.xlu0 %v5386, 21
    %v5843 = vpop.permute.xlu0 %5842
    %5844 = vrot.lane.b32.xlu0 %v5387, 21
    %v5845 = vpop.permute.xlu0 %5844
    %5846 = vrot.lane.b32.xlu0 %v5388, 21
    %v5847 = vpop.permute.xlu0 %5846
    %5848 = vrot.lane.b32.xlu0 %v5389, 21
    %v5849 = vpop.permute.xlu0 %5848
    %5850 = vrot.lane.b32.xlu0 %v5390, 21
    %v5851 = vpop.permute.xlu0 %5850
    %5852 = vrot.lane.b32.xlu0 %v5391, 21
    %v5853 = vpop.permute.xlu0 %5852
    %5854 = vrot.lane.b32.xlu0 %v5392, 21
    %v5855 = vpop.permute.xlu0 %5854
    %5856 = vrot.lane.b32.xlu0 %v5393, 21
    %v5857 = vpop.permute.xlu0 %5856
    %5858 = vrot.lane.b32.xlu0 %v5394, 21
    %v5859 = vpop.permute.xlu0 %5858
    %5860 = vrot.lane.b32.xlu0 %v5395, 21
    %v5861 = vpop.permute.xlu0 %5860
    %5862 = vrot.lane.b32.xlu0 %v5396, 21
    %v5863 = vpop.permute.xlu0 %5862
    %5864 = vrot.lane.b32.xlu0 %v5397, 21
    %v5865 = vpop.permute.xlu0 %5864
    %5866 = vrot.lane.b32.xlu0 %v5398, 21
    %v5867 = vpop.permute.xlu0 %5866
    %5868 = vrot.lane.b32.xlu0 %v5399, 21
    %v5869 = vpop.permute.xlu0 %5868
    %5870 = vrot.lane.b32.xlu0 %v5400, 21
    %v5871 = vpop.permute.xlu0 %5870
    %5872 = vrot.lane.b32.xlu0 %v5401, 21
    %v5873 = vpop.permute.xlu0 %5872
    %5874 = vrot.lane.b32.xlu0 %v5402, 21
    %v5875 = vpop.permute.xlu0 %5874
    %5876 = vrot.lane.b32.xlu0 %v5403, 21
    %v5877 = vpop.permute.xlu0 %5876
    %5878 = vrot.lane.b32.xlu0 %v5404, 21
    %v5879 = vpop.permute.xlu0 %5878
    %5880 = vrot.lane.b32.xlu0 %v5405, 21
    %v5881 = vpop.permute.xlu0 %5880
    %5882 = vrot.lane.b32.xlu0 %v5406, 21
    %v5883 = vpop.permute.xlu0 %5882
    %5884 = vrot.lane.b32.xlu0 %v5407, 21
    %v5885 = vpop.permute.xlu0 %5884
    %5886 = vrot.lane.b32.xlu0 %v5408, 21
    %v5887 = vpop.permute.xlu0 %5886
    %5888 = vrot.lane.b32.xlu0 %v5409, 21
    %v5889 = vpop.permute.xlu0 %5888
    %5890 = vrot.lane.b32.xlu0 %v5410, 21
    %v5891 = vpop.permute.xlu0 %5890
    %5892 = vrot.lane.b32.xlu0 %v5411, 21
    %v5893 = vpop.permute.xlu0 %5892
    %5894 = vrot.lane.b32.xlu0 %v5412, 21
    %v5895 = vpop.permute.xlu0 %5894
    %5896 = vrot.lane.b32.xlu0 %v5413, 21
    %v5897 = vpop.permute.xlu0 %5896
    %5898 = vrot.lane.b32.xlu0 %v5414, 21
    %v5899 = vpop.permute.xlu0 %5898
    %5900 = vrot.lane.b32.xlu0 %v5415, 21
    %v5901 = vpop.permute.xlu0 %5900
    %5902 = vrot.lane.b32.xlu0 %v5416, 21
    %v5903 = vpop.permute.xlu0 %5902
    %5904 = vrot.lane.b32.xlu0 %v5417, 21
    %v5905 = vpop.permute.xlu0 %5904
    %5906 = vrot.lane.b32.xlu0 %v5418, 21
    %v5907 = vpop.permute.xlu0 %5906
    %5908 = vrot.lane.b32.xlu0 %v5419, 21
    %v5909 = vpop.permute.xlu0 %5908
    %5910 = vrot.lane.b32.xlu0 %v5420, 21
    %v5911 = vpop.permute.xlu0 %5910
    %5912 = vrot.lane.b32.xlu0 %v5421, 21
    %v5913 = vpop.permute.xlu0 %5912
    %5914 = vrot.lane.b32.xlu0 %v5422, 21
    %v5915 = vpop.permute.xlu0 %5914
    %5916 = vrot.lane.b32.xlu0 %v5423, 21
    %v5917 = vpop.permute.xlu0 %5916
    %5918 = vrot.lane.b32.xlu0 %v5424, 21
    %v5919 = vpop.permute.xlu0 %5918
    %5920 = vrot.lane.b32.xlu0 %v5425, 21
    %v5921 = vpop.permute.xlu0 %5920
    %5922 = vrot.lane.b32.xlu0 %v5426, 21
    %v5923 = vpop.permute.xlu0 %5922
    %5924 = vrot.lane.b32.xlu0 %v5427, 21
    %v5925 = vpop.permute.xlu0 %5924
    %5926 = vrot.lane.b32.xlu0 %v5428, 21
    %v5927 = vpop.permute.xlu0 %5926
    %5928 = vrot.lane.b32.xlu0 %v5429, 21
    %v5929 = vpop.permute.xlu0 %5928
    %5930 = vrot.lane.b32.xlu0 %v5430, 21
    %v5931 = vpop.permute.xlu0 %5930
    %5932 = vrot.lane.b32.xlu0 %v5431, 21
    %v5933 = vpop.permute.xlu0 %5932
    %5934 = vrot.lane.b32.xlu0 %v5432, 21
    %v5935 = vpop.permute.xlu0 %5934
    %5936 = vrot.lane.b32.xlu0 %v5433, 21
    %v5937 = vpop.permute.xlu0 %5936
    %5938 = vrot.lane.b32.xlu0 %v5434, 21
    %v5939 = vpop.permute.xlu0 %5938
    %5940 = vrot.lane.b32.xlu0 %v5435, 21
    %v5941 = vpop.permute.xlu0 %5940
    %5942 = vrot.lane.b32.xlu0 %v5436, 21
    %v5943 = vpop.permute.xlu0 %5942
    %5944 = vrot.lane.b32.xlu0 %v5437, 21
    %v5945 = vpop.permute.xlu0 %5944
    %5946 = vrot.lane.b32.xlu0 %v5438, 21
    %v5947 = vpop.permute.xlu0 %5946
    %5948 = vrot.lane.b32.xlu0 %v5439, 21
    %v5949 = vpop.permute.xlu0 %5948
    %5950 = vrot.lane.b32.xlu0 %v5440, 21
    %v5951 = vpop.permute.xlu0 %5950
    %5952 = vrot.lane.b32.xlu0 %v5441, 21
    %v5953 = vpop.permute.xlu0 %5952
    %5954 = vrot.lane.b32.xlu0 %v5442, 21
    %v5955 = vpop.permute.xlu0 %5954
    %5956 = vrot.lane.b32.xlu0 %v5443, 21
    %v5957 = vpop.permute.xlu0 %5956
    %5958 = vrot.lane.b32.xlu0 %v5444, 21
    %v5959 = vpop.permute.xlu0 %5958
    %5960 = vrot.lane.b32.xlu0 %v5445, 21
    %v5961 = vpop.permute.xlu0 %5960
    %5962 = vrot.lane.b32.xlu0 %v5446, 21
    %v5963 = vpop.permute.xlu0 %5962
    %5964 = vrot.lane.b32.xlu0 %v5447, 21
    %v5965 = vpop.permute.xlu0 %5964
    %5966 = vrot.lane.b32.xlu0 %v5448, 21
    %v5967 = vpop.permute.xlu0 %5966
    %5968 = vrot.lane.b32.xlu0 %v5449, 21
    %v5969 = vpop.permute.xlu0 %5968
    %5970 = vrot.lane.b32.xlu0 %v5450, 21
    %v5971 = vpop.permute.xlu0 %5970
    %5972 = vrot.lane.b32.xlu0 %v5451, 21
    %v5973 = vpop.permute.xlu0 %5972
    %5974 = vrot.lane.b32.xlu0 %v5452, 21
    %v5975 = vpop.permute.xlu0 %5974
    %5976 = vrot.lane.b32.xlu0 %v5453, 21
    %v5977 = vpop.permute.xlu0 %5976
    %5978 = vrot.lane.b32.xlu0 %v5454, 21
    %v5979 = vpop.permute.xlu0 %5978
    %5980 = vrot.lane.b32.xlu0 %v5455, 21
    %v5981 = vpop.permute.xlu0 %5980
    %5982 = vrot.lane.b32.xlu0 %v5456, 21
    %v5983 = vpop.permute.xlu0 %5982
    %5984 = vrot.lane.b32.xlu0 %v5457, 21
    %v5985 = vpop.permute.xlu0 %5984
    %5986 = vrot.lane.b32.xlu0 %v5458, 21
    %v5987 = vpop.permute.xlu0 %5986
    %5988 = vrot.lane.b32.xlu0 %v5459, 21
    %v5989 = vpop.permute.xlu0 %5988
    %5990 = vrot.lane.b32.xlu0 %v5460, 21
    %v5991 = vpop.permute.xlu0 %5990
    %5992 = vrot.lane.b32.xlu0 %v5461, 21
    %v5993 = vpop.permute.xlu0 %5992
    %5994 = vrot.lane.b32.xlu0 %v5462, 21
    %v5995 = vpop.permute.xlu0 %5994
    %5996 = vrot.lane.b32.xlu0 %v5463, 21
    %v5997 = vpop.permute.xlu0 %5996
    %5998 = vrot.lane.b32.xlu0 %v5464, 21
    %v5999 = vpop.permute.xlu0 %5998
    %6000 = vrot.lane.b32.xlu0 %v5465, 21
    %v6001 = vpop.permute.xlu0 %6000
    %6002 = vrot.lane.b32.xlu0 %v5466, 21
    %v6003 = vpop.permute.xlu0 %6002
    %6004 = vrot.lane.b32.xlu0 %v5467, 21
    %v6005 = vpop.permute.xlu0 %6004
    %6006 = vrot.lane.b32.xlu0 %v5468, 21
    %v6007 = vpop.permute.xlu0 %6006
    %6008 = vrot.lane.b32.xlu0 %v5469, 21
    %v6009 = vpop.permute.xlu0 %6008
    %6010 = vrot.lane.b32.xlu0 %v5470, 21
    %v6011 = vpop.permute.xlu0 %6010
    %6012 = vrot.lane.b32.xlu0 %v5471, 21
    %v6013 = vpop.permute.xlu0 %6012
    %6014 = vrot.lane.b32.xlu0 %v5472, 21
    %v6015 = vpop.permute.xlu0 %6014
    %6016 = vrot.lane.b32.xlu0 %v5473, 21
    %v6017 = vpop.permute.xlu0 %6016
    %6018 = vrot.lane.b32.xlu0 %v5474, 21
    %v6019 = vpop.permute.xlu0 %6018
    %6020 = vrot.lane.b32.xlu0 %v5475, 21
    %v6021 = vpop.permute.xlu0 %6020
    %6022 = vrot.lane.b32.xlu0 %v5476, 21
    %v6023 = vpop.permute.xlu0 %6022
    %6024 = vrot.lane.b32.xlu0 %v5477, 21
    %v6025 = vpop.permute.xlu0 %6024
    %6026 = vrot.lane.b32.xlu0 %v5478, 21
    %v6027 = vpop.permute.xlu0 %6026
    %6028 = vrot.lane.b32.xlu0 %v5479, 21
    %v6029 = vpop.permute.xlu0 %6028
    %6030 = vrot.lane.b32.xlu0 %v5480, 21
    %v6031 = vpop.permute.xlu0 %6030
    %6032 = vrot.lane.b32.xlu0 %v5481, 21
    %v6033 = vpop.permute.xlu0 %6032
    %6034 = vrot.lane.b32.xlu0 %v5482, 21
    %v6035 = vpop.permute.xlu0 %6034
    %6036 = vrot.lane.b32.xlu0 %v5483, 21
    %v6037 = vpop.permute.xlu0 %6036
    %6038 = vrot.lane.b32.xlu0 %v5484, 21
    %v6039 = vpop.permute.xlu0 %6038
    %6040 = vrot.lane.b32.xlu0 %v5485, 21
    %v6041 = vpop.permute.xlu0 %6040
    %6042 = vrot.lane.b32.xlu0 %v5486, 21
    %v6043 = vpop.permute.xlu0 %6042
    %6044 = vrot.lane.b32.xlu0 %v5487, 21
    %v6045 = vpop.permute.xlu0 %6044
    %6046 = vrot.lane.b32.xlu0 %v5488, 21
    %v6047 = vpop.permute.xlu0 %6046
    %6048 = vrot.lane.b32.xlu0 %v5489, 21
    %v6049 = vpop.permute.xlu0 %6048
    %6050 = vrot.lane.b32.xlu0 %v5490, 21
    %v6051 = vpop.permute.xlu0 %6050
    %6052 = vrot.lane.b32.xlu0 %v5491, 21
    %v6053 = vpop.permute.xlu0 %6052
    %6054 = vrot.lane.b32.xlu0 %v5492, 21
    %v6055 = vpop.permute.xlu0 %6054
    %6056 = vrot.lane.b32.xlu0 %v5493, 21
    %v6057 = vpop.permute.xlu0 %6056
    %v6058 = vsel %vm3321, %v3036, %v5695
    %v6059 = vsel %vm3321, %v5695, %v5697
    %v6060 = vsel %vm3321, %v5697, %v5699
    %v6061 = vsel %vm3321, %v5699, %v5701
    %v6062 = vsel %vm3321, %v5701, %v5703
    %v6063 = vsel %vm3321, %v5703, %v5705
    %v6064 = vsel %vm3321, %v5705, %v5707
    %v6065 = vsel %vm3321, %v3036, %v5709
    %v6066 = vsel %vm3321, %v5709, %v5711
    %v6067 = vsel %vm3321, %v5711, %v5713
    %v6068 = vsel %vm3321, %v5713, %v5715
    %v6069 = vsel %vm3321, %v5715, %v5717
    %v6070 = vsel %vm3321, %v5717, %v5719
    %v6071 = vsel %vm3321, %v5719, %v5721
    %v6072 = vsel %vm3321, %v5723, %v5725
    %v6073 = vsel %vm3321, %v5725, %v5727
    %v6074 = vsel %vm3321, %v5727, %v5729
    %v6075 = vsel %vm3321, %v5729, %v5731
    %v6076 = vsel %vm3321, %v5731, %v5733
    %v6077 = vsel %vm3321, %v5733, %v5735
    %v6078 = vsel %vm3321, %v5735, %v5737
    %v6079 = vsel %vm3321, %v5739, %v5741
    %v6080 = vsel %vm3321, %v5741, %v5743
    %v6081 = vsel %vm3321, %v5743, %v5745
    %v6082 = vsel %vm3321, %v5745, %v5747
    %v6083 = vsel %vm3321, %v5747, %v5749
    %v6084 = vsel %vm3321, %v5749, %v5751
    %v6085 = vsel %vm3321, %v5751, %v5753
    %v6086 = vsel %vm3321, %v5755, %v5757
    %v6087 = vsel %vm3321, %v5757, %v5759
    %v6088 = vsel %vm3321, %v5759, %v5761
    %v6089 = vsel %vm3321, %v5761, %v5763
    %v6090 = vsel %vm3321, %v5763, %v5765
    %v6091 = vsel %vm3321, %v5765, %v5767
    %v6092 = vsel %vm3321, %v5767, %v5769
    %v6093 = vsel %vm3321, %v5771, %v5773
    %v6094 = vsel %vm3321, %v5773, %v5775
    %v6095 = vsel %vm3321, %v5775, %v5777
    %v6096 = vsel %vm3321, %v5777, %v5779
    %v6097 = vsel %vm3321, %v5779, %v5781
    %v6098 = vsel %vm3321, %v5781, %v5783
    %v6099 = vsel %vm3321, %v5783, %v5785
    %v6100 = vsel %vm3321, %v5787, %v5789
    %v6101 = vsel %vm3321, %v5789, %v5791
    %v6102 = vsel %vm3321, %v5791, %v5793
    %v6103 = vsel %vm3321, %v5793, %v5795
    %v6104 = vsel %vm3321, %v5795, %v5797
    %v6105 = vsel %vm3321, %v5797, %v5799
    %v6106 = vsel %vm3321, %v5799, %v5801
    %v6107 = vsel %vm3321, %v5803, %v5805
    %v6108 = vsel %vm3321, %v5805, %v5807
    %v6109 = vsel %vm3321, %v5807, %v5809
    %v6110 = vsel %vm3321, %v5809, %v5811
    %v6111 = vsel %vm3321, %v5811, %v5813
    %v6112 = vsel %vm3321, %v5813, %v5815
    %v6113 = vsel %vm3321, %v5815, %v5817
    %v6114 = vsel %vm3321, %v5819, %v5821
    %v6115 = vsel %vm3321, %v5821, %v5823
    %v6116 = vsel %vm3321, %v5823, %v5825
    %v6117 = vsel %vm3321, %v5825, %v5827
    %v6118 = vsel %vm3321, %v5827, %v5829
    %v6119 = vsel %vm3321, %v5829, %v5831
    %v6120 = vsel %vm3321, %v5831, %v5833
    %v6121 = vsel %vm3321, %v5835, %v5837
    %v6122 = vsel %vm3321, %v5837, %v5839
    %v6123 = vsel %vm3321, %v5839, %v5841
    %v6124 = vsel %vm3321, %v5841, %v5843
    %v6125 = vsel %vm3321, %v5843, %v5845
    %v6126 = vsel %vm3321, %v5845, %v5847
    %v6127 = vsel %vm3321, %v5847, %v5849
    %v6128 = vsel %vm3321, %v5851, %v5853
    %v6129 = vsel %vm3321, %v5853, %v5855
    %v6130 = vsel %vm3321, %v5855, %v5857
    %v6131 = vsel %vm3321, %v5857, %v5859
    %v6132 = vsel %vm3321, %v5859, %v5861
    %v6133 = vsel %vm3321, %v5861, %v5863
    %v6134 = vsel %vm3321, %v5863, %v5865
    %v6135 = vsel %vm3321, %v5867, %v5869
    %v6136 = vsel %vm3321, %v5869, %v5871
    %v6137 = vsel %vm3321, %v5871, %v5873
    %v6138 = vsel %vm3321, %v5873, %v5875
    %v6139 = vsel %vm3321, %v5875, %v5877
    %v6140 = vsel %vm3321, %v5877, %v5879
    %v6141 = vsel %vm3321, %v5879, %v5881
    %v6142 = vsel %vm3321, %v5883, %v5885
    %v6143 = vsel %vm3321, %v5885, %v5887
    %v6144 = vsel %vm3321, %v5887, %v5889
    %v6145 = vsel %vm3321, %v5889, %v5891
    %v6146 = vsel %vm3321, %v5891, %v5893
    %v6147 = vsel %vm3321, %v5893, %v5895
    %v6148 = vsel %vm3321, %v5895, %v5897
    %v6149 = vsel %vm3321, %v5899, %v5901
    %v6150 = vsel %vm3321, %v5901, %v5903
    %v6151 = vsel %vm3321, %v5903, %v5905
    %v6152 = vsel %vm3321, %v5905, %v5907
    %v6153 = vsel %vm3321, %v5907, %v5909
    %v6154 = vsel %vm3321, %v5909, %v5911
    %v6155 = vsel %vm3321, %v5911, %v5913
    %v6156 = vsel %vm3321, %v5915, %v5917
    %v6157 = vsel %vm3321, %v5917, %v5919
    %v6158 = vsel %vm3321, %v5919, %v5921
    %v6159 = vsel %vm3321, %v5921, %v5923
    %v6160 = vsel %vm3321, %v5923, %v5925
    %v6161 = vsel %vm3321, %v5925, %v5927
    %v6162 = vsel %vm3321, %v5927, %v5929
    %v6163 = vsel %vm3321, %v5931, %v5933
    %v6164 = vsel %vm3321, %v5933, %v5935
    %v6165 = vsel %vm3321, %v5935, %v5937
    %v6166 = vsel %vm3321, %v5937, %v5939
    %v6167 = vsel %vm3321, %v5939, %v5941
    %v6168 = vsel %vm3321, %v5941, %v5943
    %v6169 = vsel %vm3321, %v5943, %v5945
    %v6170 = vsel %vm3321, %v5947, %v5949
    %v6171 = vsel %vm3321, %v5949, %v5951
    %v6172 = vsel %vm3321, %v5951, %v5953
    %v6173 = vsel %vm3321, %v5953, %v5955
    %v6174 = vsel %vm3321, %v5955, %v5957
    %v6175 = vsel %vm3321, %v5957, %v5959
    %v6176 = vsel %vm3321, %v5959, %v5961
    %v6177 = vsel %vm3321, %v5963, %v5965
    %v6178 = vsel %vm3321, %v5965, %v5967
    %v6179 = vsel %vm3321, %v5967, %v5969
    %v6180 = vsel %vm3321, %v5969, %v5971
    %v6181 = vsel %vm3321, %v5971, %v5973
    %v6182 = vsel %vm3321, %v5973, %v5975
    %v6183 = vsel %vm3321, %v5975, %v5977
    %v6184 = vsel %vm3321, %v5979, %v5981
    %v6185 = vsel %vm3321, %v5981, %v5983
    %v6186 = vsel %vm3321, %v5983, %v5985
    %v6187 = vsel %vm3321, %v5985, %v5987
    %v6188 = vsel %vm3321, %v5987, %v5989
    %v6189 = vsel %vm3321, %v5989, %v5991
    %v6190 = vsel %vm3321, %v5991, %v5993
    %v6191 = vsel %vm3321, %v5995, %v5997
    %v6192 = vsel %vm3321, %v5997, %v5999
    %v6193 = vsel %vm3321, %v5999, %v6001
    %v6194 = vsel %vm3321, %v6001, %v6003
    %v6195 = vsel %vm3321, %v6003, %v6005
    %v6196 = vsel %vm3321, %v6005, %v6007
    %v6197 = vsel %vm3321, %v6007, %v6009
    %v6198 = vsel %vm3321, %v6011, %v6013
    %v6199 = vsel %vm3321, %v6013, %v6015
    %v6200 = vsel %vm3321, %v6015, %v6017
    %v6201 = vsel %vm3321, %v6017, %v6019
    %v6202 = vsel %vm3321, %v6019, %v6021
    %v6203 = vsel %vm3321, %v6021, %v6023
    %v6204 = vsel %vm3321, %v6023, %v6025
    %v6205 = vsel %vm3321, %v6027, %v6029
    %v6206 = vsel %vm3321, %v6029, %v6031
    %v6207 = vsel %vm3321, %v6031, %v6033
    %v6208 = vsel %vm3321, %v6033, %v6035
    %v6209 = vsel %vm3321, %v6035, %v6037
    %v6210 = vsel %vm3321, %v6037, %v6039
    %v6211 = vsel %vm3321, %v6039, %v6041
    %v6212 = vsel %vm3321, %v6043, %v6045
    %v6213 = vsel %vm3321, %v6045, %v6047
    %v6214 = vsel %vm3321, %v6047, %v6049
    %v6215 = vsel %vm3321, %v6049, %v6051
    %v6216 = vsel %vm3321, %v6051, %v6053
    %v6217 = vsel %vm3321, %v6053, %v6055
    %v6218 = vsel %vm3321, %v6055, %v6057
    %v6374 = vsel %vm317, %v5509, 0
    %v6377 = vsel %vm1360, %v6212, 0
    %v6380 = vsel %vm1360, %v6213, 0
    %v6383 = vsel %vm1360, %v6214, 0
    %v6386 = vsel %vm1360, %v6215, 0
    %v6389 = vsel %vm1360, %v6216, 0
    %v6392 = vsel %vm1360, %v6217, 0
    %v6395 = vsel %vm1360, %v6218, 0
    %6397 = vmatprep.subr.bf16.mxu0 %v6108
    %6398 = vmatpush1.bf16.msra.mxu0 %v6107
    %6399 = vmatprep.subr.bf16.mxu0 %v6101
    %6400 = vmatpush1.bf16.msra.mxu0 %v6100
    %6401 = vmatprep.subr.bf16.mxu0 %v6094
    %6402 = vmatpush1.bf16.msra.mxu0 %v6093
    %6403 = vmatprep.subr.bf16.mxu0 %v6087
    %6404 = vmatpush1.bf16.msra.mxu0 %v6086
    %6405 = vmatprep.subr.bf16.mxu0 %v6080
    %6406 = vmatpush1.bf16.msra.mxu0 %v6079
    %6407 = vmatprep.subr.bf16.mxu0 %v6073
    %6408 = vmatpush1.bf16.msra.mxu0 %v6072
    %6409 = vmatprep.subr.bf16.mxu0 %v6066
    %6410 = vmatpush1.bf16.msra.mxu0 %v6065
    %6411 = vmatprep.subr.bf16.mxu0 %v6059
    %6412 = vmatpush1.bf16.msra.mxu0 %v6058
    %6413 = vmatprep.subr.bf16.mxu0 %v6164
    %6414 = vmatpush2.bf16.msra.mxu0 %v6163
    %6415 = vmatprep.subr.bf16.mxu0 %v6157
    %6416 = vmatpush2.bf16.msra.mxu0 %v6156
    %6417 = vmatprep.subr.bf16.mxu0 %v6150
    %6418 = vmatpush2.bf16.msra.mxu0 %v6149
    %6419 = vmatprep.subr.bf16.mxu0 %v6143
    %6420 = vmatpush2.bf16.msra.mxu0 %v6142
    %6421 = vmatprep.subr.bf16.mxu0 %v6136
    %6422 = vmatpush2.bf16.msra.mxu0 %v6135
    %6423 = vmatprep.subr.bf16.mxu0 %v6129
    %6424 = vmatpush2.bf16.msra.mxu0 %v6128
    %6425 = vmatprep.subr.bf16.mxu0 %v6122
    %6426 = vmatpush2.bf16.msra.mxu0 %v6121
    %6427 = vmatprep.subr.bf16.mxu0 %v6115
    %6428 = vmatpush2.bf16.msra.mxu0 %v6114
    %6429 = vmatprep.mubr.bf16.mxu0 %v5508
    %6430 = vmatmul.mubr.bf16.gmra.mxu0 %v5507
    %v6431 = vpop.f32.mrf.mxu0
    %v6432 = vadd.f32 %v5500, %v6431
    %v6433 = vpop.f32.mrf.mxu0
    %v6434 = vadd.f32 %v5500, %v6433
    %v6435 = vpop.f32.mrf.mxu0
    %v6436 = vpop.f32.mrf.mxu0
    %6437 = vdwg.mxu0
    %6438 = vmatprep.subr.bf16.mxu0 0
    %6439 = vmatpush1.bf16.msra.mxu0 0
    %6440 = vmatprep.subr.bf16.mxu0 %v6380
    %6441 = vmatpush1.bf16.msra.mxu0 %v6377
    %6442 = vmatprep.subr.bf16.mxu0 %v6206
    %6443 = vmatpush1.bf16.msra.mxu0 %v6205
    %6444 = vmatprep.subr.bf16.mxu0 %v6199
    %6445 = vmatpush1.bf16.msra.mxu0 %v6198
    %6446 = vmatprep.subr.bf16.mxu0 %v6192
    %6447 = vmatpush1.bf16.msra.mxu0 %v6191
    %6448 = vmatprep.subr.bf16.mxu0 %v6185
    %6449 = vmatpush1.bf16.msra.mxu0 %v6184
    %6450 = vmatprep.subr.bf16.mxu0 %v6178
    %6451 = vmatpush1.bf16.msra.mxu0 %v6177
    %6452 = vmatprep.subr.bf16.mxu0 %v6171
    %6453 = vmatpush1.bf16.msra.mxu0 %v6170
    %6454 = vmatprep.subr.bf16.mxu0 0
    %6455 = vmatpush2.bf16.msra.mxu0 0
    %6456 = vmatprep.subr.bf16.mxu0 0
    %6457 = vmatpush2.bf16.msra.mxu0 0
    %6458 = vmatprep.subr.bf16.mxu0 0
    %6459 = vmatpush2.bf16.msra.mxu0 0
    %6460 = vmatprep.subr.bf16.mxu0 0
    %6461 = vmatpush2.bf16.msra.mxu0 0
    %6462 = vmatprep.subr.bf16.mxu0 0
    %6463 = vmatpush2.bf16.msra.mxu0 0
    %6464 = vmatprep.subr.bf16.mxu0 0
    %6465 = vmatpush2.bf16.msra.mxu0 0
    %6466 = vmatprep.subr.bf16.mxu0 0
    %6467 = vmatpush2.bf16.msra.mxu0 0
    %6468 = vmatprep.subr.bf16.mxu0 0
    %6469 = vmatpush2.bf16.msra.mxu0 0
    %6470 = vmatprep.mubr.bf16.mxu0 0
    %6471 = vmatmul.mubr.bf16.gmra.mxu0 %v6374
    %v6472 = vpop.f32.mrf.mxu0
    %v6473 = vadd.f32 %v6432, %v6472
    %v6474 = vpop.f32.mrf.mxu0
    %v6475 = vadd.f32 %v6434, %v6474
    %v6476 = vpop.f32.mrf.mxu0
    %v6477 = vpop.f32.mrf.mxu0
    %6478 = vdwg.mxu0
    %6479 = vmatprep.subr.bf16.mxu0 %v6110
    %6480 = vmatpush1.bf16.msra.mxu0 %v6109
    %6481 = vmatprep.subr.bf16.mxu0 %v6103
    %6482 = vmatpush1.bf16.msra.mxu0 %v6102
    %6483 = vmatprep.subr.bf16.mxu0 %v6096
    %6484 = vmatpush1.bf16.msra.mxu0 %v6095
    %6485 = vmatprep.subr.bf16.mxu0 %v6089
    %6486 = vmatpush1.bf16.msra.mxu0 %v6088
    %6487 = vmatprep.subr.bf16.mxu0 %v6082
    %6488 = vmatpush1.bf16.msra.mxu0 %v6081
    %6489 = vmatprep.subr.bf16.mxu0 %v6075
    %6490 = vmatpush1.bf16.msra.mxu0 %v6074
    %6491 = vmatprep.subr.bf16.mxu0 %v6068
    %6492 = vmatpush1.bf16.msra.mxu0 %v6067
    %6493 = vmatprep.subr.bf16.mxu0 %v6061
    %6494 = vmatpush1.bf16.msra.mxu0 %v6060
    %6495 = vmatprep.subr.bf16.mxu0 %v6166
    %6496 = vmatpush2.bf16.msra.mxu0 %v6165
    %6497 = vmatprep.subr.bf16.mxu0 %v6159
    %6498 = vmatpush2.bf16.msra.mxu0 %v6158
    %6499 = vmatprep.subr.bf16.mxu0 %v6152
    %6500 = vmatpush2.bf16.msra.mxu0 %v6151
    %6501 = vmatprep.subr.bf16.mxu0 %v6145
    %6502 = vmatpush2.bf16.msra.mxu0 %v6144
    %6503 = vmatprep.subr.bf16.mxu0 %v6138
    %6504 = vmatpush2.bf16.msra.mxu0 %v6137
    %6505 = vmatprep.subr.bf16.mxu0 %v6131
    %6506 = vmatpush2.bf16.msra.mxu0 %v6130
    %6507 = vmatprep.subr.bf16.mxu0 %v6124
    %6508 = vmatpush2.bf16.msra.mxu0 %v6123
    %6509 = vmatprep.subr.bf16.mxu0 %v6117
    %6510 = vmatpush2.bf16.msra.mxu0 %v6116
    %6511 = vmatprep.mubr.bf16.mxu0 %v5508
    %6512 = vmatmul.mubr.bf16.gmra.mxu0 %v5507
    %v6513 = vpop.f32.mrf.mxu0
    %v6514 = vadd.f32 %v5500, %v6513
    %v6515 = vpop.f32.mrf.mxu0
    %v6516 = vadd.f32 %v5500, %v6515
    %v6517 = vpop.f32.mrf.mxu0
    %v6518 = vpop.f32.mrf.mxu0
    %6519 = vdwg.mxu0
    %6520 = vmatprep.subr.bf16.mxu0 0
    %6521 = vmatpush1.bf16.msra.mxu0 0
    %6522 = vmatprep.subr.bf16.mxu0 %v6386
    %6523 = vmatpush1.bf16.msra.mxu0 %v6383
    %6524 = vmatprep.subr.bf16.mxu0 %v6208
    %6525 = vmatpush1.bf16.msra.mxu0 %v6207
    %6526 = vmatprep.subr.bf16.mxu0 %v6201
    %6527 = vmatpush1.bf16.msra.mxu0 %v6200
    %6528 = vmatprep.subr.bf16.mxu0 %v6194
    %6529 = vmatpush1.bf16.msra.mxu0 %v6193
    %6530 = vmatprep.subr.bf16.mxu0 %v6187
    %6531 = vmatpush1.bf16.msra.mxu0 %v6186
    %6532 = vmatprep.subr.bf16.mxu0 %v6180
    %6533 = vmatpush1.bf16.msra.mxu0 %v6179
    %6534 = vmatprep.subr.bf16.mxu0 %v6173
    %6535 = vmatpush1.bf16.msra.mxu0 %v6172
    %6536 = vmatprep.subr.bf16.mxu0 0
    %6537 = vmatpush2.bf16.msra.mxu0 0
    %6538 = vmatprep.subr.bf16.mxu0 0
    %6539 = vmatpush2.bf16.msra.mxu0 0
    %6540 = vmatprep.subr.bf16.mxu0 0
    %6541 = vmatpush2.bf16.msra.mxu0 0
    %6542 = vmatprep.subr.bf16.mxu0 0
    %6543 = vmatpush2.bf16.msra.mxu0 0
    %6544 = vmatprep.subr.bf16.mxu0 0
    %6545 = vmatpush2.bf16.msra.mxu0 0
    %6546 = vmatprep.subr.bf16.mxu0 0
    %6547 = vmatpush2.bf16.msra.mxu0 0
    %6548 = vmatprep.subr.bf16.mxu0 0
    %6549 = vmatpush2.bf16.msra.mxu0 0
    %6550 = vmatprep.subr.bf16.mxu0 0
    %6551 = vmatpush2.bf16.msra.mxu0 0
    %6552 = vmatprep.mubr.bf16.mxu0 0
    %6553 = vmatmul.mubr.bf16.gmra.mxu0 %v6374
    %v6554 = vpop.f32.mrf.mxu0
    %v6555 = vadd.f32 %v6514, %v6554
    %v6556 = vpop.f32.mrf.mxu0
    %v6557 = vadd.f32 %v6516, %v6556
    %v6558 = vpop.f32.mrf.mxu0
    %v6559 = vpop.f32.mrf.mxu0
    %6560 = vdwg.mxu0
    %6561 = vmatprep.subr.bf16.mxu0 %v6112
    %6562 = vmatpush1.bf16.msra.mxu0 %v6111
    %6563 = vmatprep.subr.bf16.mxu0 %v6105
    %6564 = vmatpush1.bf16.msra.mxu0 %v6104
    %6565 = vmatprep.subr.bf16.mxu0 %v6098
    %6566 = vmatpush1.bf16.msra.mxu0 %v6097
    %6567 = vmatprep.subr.bf16.mxu0 %v6091
    %6568 = vmatpush1.bf16.msra.mxu0 %v6090
    %6569 = vmatprep.subr.bf16.mxu0 %v6084
    %6570 = vmatpush1.bf16.msra.mxu0 %v6083
    %6571 = vmatprep.subr.bf16.mxu0 %v6077
    %6572 = vmatpush1.bf16.msra.mxu0 %v6076
    %6573 = vmatprep.subr.bf16.mxu0 %v6070
    %6574 = vmatpush1.bf16.msra.mxu0 %v6069
    %6575 = vmatprep.subr.bf16.mxu0 %v6063
    %6576 = vmatpush1.bf16.msra.mxu0 %v6062
    %6577 = vmatprep.subr.bf16.mxu0 %v6168
    %6578 = vmatpush2.bf16.msra.mxu0 %v6167
    %6579 = vmatprep.subr.bf16.mxu0 %v6161
    %6580 = vmatpush2.bf16.msra.mxu0 %v6160
    %6581 = vmatprep.subr.bf16.mxu0 %v6154
    %6582 = vmatpush2.bf16.msra.mxu0 %v6153
    %6583 = vmatprep.subr.bf16.mxu0 %v6147
    %6584 = vmatpush2.bf16.msra.mxu0 %v6146
    %6585 = vmatprep.subr.bf16.mxu0 %v6140
    %6586 = vmatpush2.bf16.msra.mxu0 %v6139
    %6587 = vmatprep.subr.bf16.mxu0 %v6133
    %6588 = vmatpush2.bf16.msra.mxu0 %v6132
    %6589 = vmatprep.subr.bf16.mxu0 %v6126
    %6590 = vmatpush2.bf16.msra.mxu0 %v6125
    %6591 = vmatprep.subr.bf16.mxu0 %v6119
    %6592 = vmatpush2.bf16.msra.mxu0 %v6118
    %6593 = vmatprep.mubr.bf16.mxu0 %v5508
    %6594 = vmatmul.mubr.bf16.gmra.mxu0 %v5507
    %v6595 = vpop.f32.mrf.mxu0
    %v6596 = vadd.f32 %v5500, %v6595
    %v6597 = vpop.f32.mrf.mxu0
    %v6598 = vadd.f32 %v5500, %v6597
    %v6599 = vpop.f32.mrf.mxu0
    %v6600 = vpop.f32.mrf.mxu0
    %6601 = vdwg.mxu0
    %6602 = vmatprep.subr.bf16.mxu0 0
    %6603 = vmatpush1.bf16.msra.mxu0 0
    %6604 = vmatprep.subr.bf16.mxu0 %v6392
    %6605 = vmatpush1.bf16.msra.mxu0 %v6389
    %6606 = vmatprep.subr.bf16.mxu0 %v6210
    %6607 = vmatpush1.bf16.msra.mxu0 %v6209
    %6608 = vmatprep.subr.bf16.mxu0 %v6203
    %6609 = vmatpush1.bf16.msra.mxu0 %v6202
    %6610 = vmatprep.subr.bf16.mxu0 %v6196
    %6611 = vmatpush1.bf16.msra.mxu0 %v6195
    %6612 = vmatprep.subr.bf16.mxu0 %v6189
    %6613 = vmatpush1.bf16.msra.mxu0 %v6188
    %6614 = vmatprep.subr.bf16.mxu0 %v6182
    %6615 = vmatpush1.bf16.msra.mxu0 %v6181
    %6616 = vmatprep.subr.bf16.mxu0 %v6175
    %6617 = vmatpush1.bf16.msra.mxu0 %v6174
    %6618 = vmatprep.subr.bf16.mxu0 0
    %6619 = vmatpush2.bf16.msra.mxu0 0
    %6620 = vmatprep.subr.bf16.mxu0 0
    %6621 = vmatpush2.bf16.msra.mxu0 0
    %6622 = vmatprep.subr.bf16.mxu0 0
    %6623 = vmatpush2.bf16.msra.mxu0 0
    %6624 = vmatprep.subr.bf16.mxu0 0
    %6625 = vmatpush2.bf16.msra.mxu0 0
    %6626 = vmatprep.subr.bf16.mxu0 0
    %6627 = vmatpush2.bf16.msra.mxu0 0
    %6628 = vmatprep.subr.bf16.mxu0 0
    %6629 = vmatpush2.bf16.msra.mxu0 0
    %6630 = vmatprep.subr.bf16.mxu0 0
    %6631 = vmatpush2.bf16.msra.mxu0 0
    %6632 = vmatprep.subr.bf16.mxu0 0
    %6633 = vmatpush2.bf16.msra.mxu0 0
    %6634 = vmatprep.mubr.bf16.mxu0 0
    %6635 = vmatmul.mubr.bf16.gmra.mxu0 %v6374
    %v6636 = vpop.f32.mrf.mxu0
    %v6637 = vadd.f32 %v6596, %v6636
    %v6638 = vpop.f32.mrf.mxu0
    %v6639 = vadd.f32 %v6598, %v6638
    %v6640 = vpop.f32.mrf.mxu0
    %v6641 = vpop.f32.mrf.mxu0
    %6642 = vdwg.mxu0
    %6643 = vmatprep.subr.bf16.mxu0 0
    %6644 = vmatpush1.bf16.msra.mxu0 %v6113
    %6645 = vmatprep.subr.bf16.mxu0 0
    %6646 = vmatpush1.bf16.msra.mxu0 %v6106
    %6647 = vmatprep.subr.bf16.mxu0 0
    %6648 = vmatpush1.bf16.msra.mxu0 %v6099
    %6649 = vmatprep.subr.bf16.mxu0 0
    %6650 = vmatpush1.bf16.msra.mxu0 %v6092
    %6651 = vmatprep.subr.bf16.mxu0 0
    %6652 = vmatpush1.bf16.msra.mxu0 %v6085
    %6653 = vmatprep.subr.bf16.mxu0 0
    %6654 = vmatpush1.bf16.msra.mxu0 %v6078
    %6655 = vmatprep.subr.bf16.mxu0 0
    %6656 = vmatpush1.bf16.msra.mxu0 %v6071
    %6657 = vmatprep.subr.bf16.mxu0 0
    %6658 = vmatpush1.bf16.msra.mxu0 %v6064
    %6659 = vmatprep.subr.bf16.mxu0 0
    %6660 = vmatpush2.bf16.msra.mxu0 %v6169
    %6661 = vmatprep.subr.bf16.mxu0 0
    %6662 = vmatpush2.bf16.msra.mxu0 %v6162
    %6663 = vmatprep.subr.bf16.mxu0 0
    %6664 = vmatpush2.bf16.msra.mxu0 %v6155
    %6665 = vmatprep.subr.bf16.mxu0 0
    %6666 = vmatpush2.bf16.msra.mxu0 %v6148
    %6667 = vmatprep.subr.bf16.mxu0 0
    %6668 = vmatpush2.bf16.msra.mxu0 %v6141
    %6669 = vmatprep.subr.bf16.mxu0 0
    %6670 = vmatpush2.bf16.msra.mxu0 %v6134
    %6671 = vmatprep.subr.bf16.mxu0 0
    %6672 = vmatpush2.bf16.msra.mxu0 %v6127
    %6673 = vmatprep.subr.bf16.mxu0 0
    %6674 = vmatpush2.bf16.msra.mxu0 %v6120
    %6675 = vmatprep.mubr.bf16.mxu0 %v5508
    %6676 = vmatmul.mubr.bf16.gmra.mxu0 %v5507
    %v6677 = vpop.f32.mrf.mxu0
    %v6678 = vadd.f32 %v5500, %v6677
    %v6679 = vpop.f32.mrf.mxu0
    %v6680 = vpop.f32.mrf.mxu0
    %v6681 = vpop.f32.mrf.mxu0
    %6682 = vdwg.mxu0
    %6683 = vmatprep.subr.bf16.mxu0 0
    %6684 = vmatpush1.bf16.msra.mxu0 0
    %6685 = vmatprep.subr.bf16.mxu0 0
    %6686 = vmatpush1.bf16.msra.mxu0 %v6395
    %6687 = vmatprep.subr.bf16.mxu0 0
    %6688 = vmatpush1.bf16.msra.mxu0 %v6211
    %6689 = vmatprep.subr.bf16.mxu0 0
    %6690 = vmatpush1.bf16.msra.mxu0 %v6204
    %6691 = vmatprep.subr.bf16.mxu0 0
    %6692 = vmatpush1.bf16.msra.mxu0 %v6197
    %6693 = vmatprep.subr.bf16.mxu0 0
    %6694 = vmatpush1.bf16.msra.mxu0 %v6190
    %6695 = vmatprep.subr.bf16.mxu0 0
    %6696 = vmatpush1.bf16.msra.mxu0 %v6183
    %6697 = vmatprep.subr.bf16.mxu0 0
    %6698 = vmatpush1.bf16.msra.mxu0 %v6176
    %6699 = vmatprep.subr.bf16.mxu0 0
    %6700 = vmatpush2.bf16.msra.mxu0 0
    %6701 = vmatprep.subr.bf16.mxu0 0
    %6702 = vmatpush2.bf16.msra.mxu0 0
    %6703 = vmatprep.subr.bf16.mxu0 0
    %6704 = vmatpush2.bf16.msra.mxu0 0
    %6705 = vmatprep.subr.bf16.mxu0 0
    %6706 = vmatpush2.bf16.msra.mxu0 0
    %6707 = vmatprep.subr.bf16.mxu0 0
    %6708 = vmatpush2.bf16.msra.mxu0 0
    %6709 = vmatprep.subr.bf16.mxu0 0
    %6710 = vmatpush2.bf16.msra.mxu0 0
    %6711 = vmatprep.subr.bf16.mxu0 0
    %6712 = vmatpush2.bf16.msra.mxu0 0
    %6713 = vmatprep.subr.bf16.mxu0 0
    %6714 = vmatpush2.bf16.msra.mxu0 0
    %6715 = vmatprep.mubr.bf16.mxu0 0
    %6716 = vmatmul.mubr.bf16.gmra.mxu0 %v6374
    %v6717 = vpop.f32.mrf.mxu0
    %v6718 = vadd.f32 %v6678, %v6717
    %v6719 = vpop.f32.mrf.mxu0
    %v6720 = vpop.f32.mrf.mxu0
    %v6721 = vpop.f32.mrf.mxu0
    %6722 = vdwg.mxu0
    %v6730 = vcombine.low %v6473, %v6475
    %v6731 = vcombine.low %v6555, %v6557
    %v6732 = vcombine.low %v6637, %v6639
    %v6734 = vunpack.c.l.s4 1966171168
    %v6735 = vunpack.c.0.s8 %v6734
    %v6736 = vlaneseq
    %v6737 = vshrl.u32 %v6736, 7
    %v6738 = vsub.s32 %v6735, %v6737
    %v6739 = vrot.slane %v6730, %v6738
    %v6741 = vunpack.c.l.s4 1966171168
    %v6742 = vunpack.c.0.s8 %v6741
    %v6743 = vlaneseq
    %v6744 = vshrl.u32 %v6743, 7
    %v6745 = vsub.s32 %v6742, %v6744
    %v6746 = vrot.slane %v6731, %v6745
    %v6748 = vunpack.c.l.s4 1966171168
    %v6749 = vunpack.c.0.s8 %v6748
    %v6750 = vlaneseq
    %v6751 = vshrl.u32 %v6750, 7
    %v6752 = vsub.s32 %v6749, %v6751
    %v6753 = vrot.slane %v6732, %v6752
    %v6755 = vunpack.c.l.s4 1966171168
    %v6756 = vunpack.c.0.s8 %v6755
    %v6757 = vlaneseq
    %v6758 = vshrl.u32 %v6757, 7
    %v6759 = vsub.s32 %v6756, %v6758
    %v6760 = vrot.slane %v6718, %v6759
    %v6761 = vcombine.low %v6739, %v6746
    %v6762 = vcombine.low %v6753, %v6760
    %v6764 = vunpack.c.l.s4 1966171168
    %v6765 = vunpack.c.0.s8 %v6764
    %v6766 = vlaneseq
    %v6767 = vshrl.u32 %v6766, 7
    %v6768 = vsub.s32 %v6765, %v6767
    %v6769 = vrot.slane %v6761, %v6768
    %v6771 = vunpack.c.l.s4 1966171168
    %v6772 = vunpack.c.0.s8 %v6771
    %v6773 = vlaneseq
    %v6774 = vshrl.u32 %v6773, 7
    %v6775 = vsub.s32 %v6772, %v6774
    %v6776 = vrot.slane %v6762, %v6775
    %v6777 = vcombine.low %v6769, %v6776
    %v6779 = vlaneseq
    %vm6780 = vcmp.ge.s32.totalorder %v6779, 0
    %vm6781 = vcmp.lt.s32.totalorder %v6779, 800
    %vm6782 = vmand %vm6780, %vm6781
    %6783 = vst.msk [vmem:[%s9] sm:$0x7f] %vm6782, %v6777
    // Predicated region
    $region42: #{error_attention_forward.1} parent=1 // pred_check
      _
    $region43: #{error_attention_forward.1} parent=1 // pred_check_branch
      %6785 = sbr.rel (0) target = $region45
    $region44: #{error_attention_forward.1} parent=1 // pred_region
      _
    $region45: #{error_attention_forward.1} parent=1 // pred_fallthru
      _
    // Predicated region
    $region46: #{error_attention_forward.1} parent=1 // pred_check
      _
    $region47: #{error_attention_forward.1} parent=1 // pred_check_branch
      %6787 = sbr.rel (0) target = $region49
    $region48: #{error_attention_forward.1} parent=1 // pred_region
      _
    $region49: #{error_attention_forward.1} parent=1 // pred_fallthru
      _
    %6788 = vsyncpa [#allocation3], 1

</llo_original>
